<compile_context>
chip_gen: v6e
topology: v6e:2x2x1
jax: 0.10.0
libtpu: 0.0.40
codegen_flags: <defaults>
</compile_context>

<pallas_src>
import functools

import jax
import jax.numpy as jnp
from jax import lax
from jax.experimental import pallas as pl
from jax.experimental.pallas import tpu as pltpu


def _layernorm(x, gamma, beta, eps):
    mu = jnp.mean(x, axis=-1, keepdims=True)
    xc = x - mu
    var = jnp.mean(xc * xc, axis=-1, keepdims=True)
    return xc * lax.rsqrt(var + eps) * gamma + beta


def crosspath_kernel(x1_ref, x2_ref,
                     w1y_ref, w1u_ref, b1y_ref, b1u_ref,
                     w2y_ref, w2u_ref, b2y_ref, b2u_ref,
                     wkv1_ref, wkv2_ref,
                     we1y_ref, we1a_ref, be1_ref,
                     we2y_ref, we2a_ref, be2_ref,
                     g1_ref, beta1_ref, g2_ref, beta2_ref,
                     mask_ref,
                     o1_ref, o2_ref,
                     s1_acc, s2_acc, ctx1_sc, ctx2_sc,
                     *, d, scale, eps):
    p_ax = pl.program_id(1)          # 0: accumulate K^T V scores, 1: produce outputs
    nt = pl.program_id(2)            # token-tile index
    bt, tn, dim = x1_ref.shape
    m = bt * tn
    f32, bf16 = jnp.float32, jnp.bfloat16

    def relu_proj(xb, w_ref, b_ref):
        return jnp.maximum(
            jnp.dot(xb, w_ref[...], preferred_element_type=f32) + b_ref[...], 0.0)

    # ---------------- pass 0: accumulate per-head K^T V over token tiles -------------
    @pl.when(p_ax == 0)
    def _accumulate():
        @pl.when(nt == 0)
        def _():
            s1_acc[...] = jnp.zeros_like(s1_acc)
            s2_acc[...] = jnp.zeros_like(s2_acc)

        x1b = x1_ref[...].astype(bf16).reshape(m, dim)
        x2b = x2_ref[...].astype(bf16).reshape(m, dim)
        u1 = relu_proj(x1b, w1u_ref, b1u_ref)            # (m, d) f32
        u2 = relu_proj(x2b, w2u_ref, b2u_ref)

        # packed (d, 2d) kv weight: one wide matmul; slice is lane-aligned if d%128==0.
        kv1 = jnp.dot(u1.astype(bf16), wkv1_ref[...], preferred_element_type=f32)
        kv2 = jnp.dot(u2.astype(bf16), wkv2_ref[...], preferred_element_type=f32)
        k1 = kv1[:, :d].astype(bf16).reshape(bt, tn, d)
        v1 = kv1[:, d:].astype(bf16).reshape(bt, tn, d)
        k2 = kv2[:, :d].astype(bf16).reshape(bt, tn, d)
        v2 = kv2[:, d:].astype(bf16).reshape(bt, tn, d)

        # contract the token axis (K^T V) with bf16 operands, f32 accumulation.
        # TODO(synk): verify via pl.lower_as_mlir that this batched contraction does
        # not emit an XLU transpose of the (tn, d) K block.
        s1_acc[...] += jnp.einsum('bnd,bne->bde', k1, v1, preferred_element_type=f32)
        s2_acc[...] += jnp.einsum('bnd,bne->bde', k2, v2, preferred_element_type=f32)

    # ---------------- pass 1: softmax, apply ctx, end-proj, residual + LN ------------
    @pl.when(p_ax == 1)
    def _produce():
        @pl.when(nt == 0)
        def _():
            def ctx_of(s_acc_ref):
                # softmax over torch dim=-2, restricted to the block-diagonal head
                # structure by a finite additive mask (-1e30 -> off-head entries
                # underflow to exactly 0, no NaN); identical to the per-head softmax.
                s = s_acc_ref[...] * scale + mask_ref[...]
                mx = jnp.max(s, axis=1, keepdims=True)
                e = jnp.exp(s - mx)
                den = jnp.sum(e, axis=1, keepdims=True)
                return e * pl.reciprocal(den, approx=True)
            ctx1_sc[...] = ctx_of(s1_acc).astype(bf16)
            ctx2_sc[...] = ctx_of(s2_acc).astype(bf16)

        def stream_out(x_ref, wy_ref, by_ref, wu_ref, bu_ref,
                       wey_ref, wea_ref, be_ref, g_ref, beta_ref, ctx_ref, o_ref):
            x = x_ref[...].reshape(m, dim)               # native dtype
            xb = x.astype(bf16)
            # y-path: computed and consumed immediately (never stays live).
            y = relu_proj(xb, wy_ref, by_ref)
            p_out = jnp.dot(y.astype(bf16), wey_ref[...],
                            preferred_element_type=f32) + be_ref[...]
            # attention path: recompute u (one cheap matmul) rather than stashing it.
            u = relu_proj(xb, wu_ref, bu_ref)
            a = jnp.einsum('bnd,bde->bne',
                           u.astype(bf16).reshape(bt, tn, d), ctx_ref[...],
                           preferred_element_type=f32).reshape(m, d)
            p_out = p_out + jnp.dot(a.astype(bf16), wea_ref[...],
                                    preferred_element_type=f32)
            # residual + LayerNorm in f32.
            o = _layernorm(x.astype(f32) + p_out, g_ref[...], beta_ref[...], eps)
            o_ref[...] = o.reshape(bt, tn, dim).astype(o_ref.dtype)
            # TODO(synk): when dim < 128, present a lane-dense output slab
            # (wrapper-side reshape) to avoid masked vst partial stores.

        # cross: stream-1 queries attend over stream-2's context and vice versa.
        stream_out(x1_ref, w1y_ref, b1y_ref, w1u_ref, b1u_ref,
                   we1y_ref, we1a_ref, be1_ref, g1_ref, beta1_ref, ctx2_sc, o1_ref)
        stream_out(x2_ref, w2y_ref, b2y_ref, w2u_ref, b2u_ref,
                   we2y_ref, we2a_ref, be2_ref, g2_ref, beta2_ref, ctx1_sc, o2_ref)


def _choose_tiles(B, N, dim, d, in_itemsize, out_itemsize, weight_bytes, budget):
    """Pick (batch_tile, token_tile) maximizing block size within the VMEM budget,
    preferring token_tile == N (single HBM pass over x) and keeping grid[0] >= 2
    when B >= 2 so both v7x TensorCores are used."""
    def footprint(bt, tn):
        m = bt * tn
        xo = 2 * 2 * m * dim * (in_itemsize + out_itemsize)   # 2 streams, double-buffered
        scr = bt * d * d * (2 * 4 + 2 * 2)                      # f32 score acc + bf16 ctx
        tmp = 2 * m * (12 * dim + 20 * d)                       # conservative live temps
        return xo + scr + tmp + 2 * weight_bytes

    tn_cands = [t for t in range(N, 0, -1) if N % t == 0 and (t == N or t % 8 == 0)]
    max_bt = B if B < 2 else max(1, B // 2)
    bt_cands = [b for b in range(max_bt, 0, -1) if B % b == 0]

    for tn in tn_cands:
        for bt in bt_cands:
            if bt > 1 and tn % 8 != 0:
                continue                                        # keep reshapes tile-friendly
            if footprint(bt, tn) <= budget:
                return bt, tn
    return 1, tn_cands[-1]


def crosspath_pallas(x1, x2, params, *, dim, reduction, num_heads,
                     batch_tile=None, token_tile=None):
    B, N, C = x1.shape
    assert C == dim
    d = dim // reduction
    assert d % num_heads == 0
    hd = d // num_heads
    scale = float(hd) ** -0.5
    eps = 1e-5

    (wcp1, bcp1, wcp2, bcp2, wkv1, wkv2,
     wep1, bep1, wep2, bep2, g1, bt1, g2, bt2) = params

    f32, bf16 = jnp.float32, jnp.bfloat16
    out_dtype = x1.dtype                       # native-dtype I/O: no forced f32 traffic

    # ---- one-time host-side weight prep (outside the grid loop) ---------------------
    # channel-proj split into y/u halves (pass 0 only needs the u half).
    w1y, w1u = wcp1[:, :d].astype(bf16), wcp1[:, d:].astype(bf16)
    w2y, w2u = wcp2[:, :d].astype(bf16), wcp2[:, d:].astype(bf16)
    b1y, b1u = bcp1[:, :d].astype(f32), bcp1[:, d:].astype(f32)
    b2y, b2u = bcp2[:, :d].astype(f32), bcp2[:, d:].astype(f32)
    # kv weights kept packed (d, 2d) -> better MXU column fill on 256-wide MXUs.
    wkv1b, wkv2b = wkv1.astype(bf16), wkv2.astype(bf16)
    # end-proj split (y half / attention half): avoids the cat() lane relayout.
    we1y, we1a = wep1[:d, :].astype(bf16), wep1[d:, :].astype(bf16)
    we2y, we2a = wep2[:d, :].astype(bf16), wep2[d:, :].astype(bf16)
    be1, be2 = bep1.astype(f32), bep2.astype(f32)
    g1f, bt1f = g1.astype(f32), bt1.astype(f32)
    g2f, bt2f = g2.astype(f32), bt2.astype(f32)

    # precomputed block-diagonal additive softmax mask (0 in-head, -1e30 cross-head).
    head_id = jnp.arange(d, dtype=jnp.int32) // hd
    maskb = jnp.where(head_id[:, None] == head_id[None, :],
                      jnp.float32(0.0), jnp.float32(-1e30))

    weights = (w1y, w1u, b1y, b1u, w2y, w2u, b2y, b2u,
               wkv1b, wkv2b,
               we1y, we1a, be1, we2y, we2a, be2,
               g1f, bt1f, g2f, bt2f, maskb)
    weight_bytes = sum(int(w.size) * w.dtype.itemsize for w in weights)

    # ---- generation-aware VMEM budgeting ---------------------------------------------
    try:
        vmem_cap = int(pltpu.get_tpu_info().vmem_capacity_bytes)
    except Exception:
        vmem_cap = 64 * 1024 * 1024            # assume the smallest (v7x-like) part
    if vmem_cap >= 100 * 1024 * 1024:          # v5e / v6e: 128 MiB physical VMEM
        vmem_limit = 100 * 1024 * 1024
    else:                                      # v7x: 64 MiB physical VMEM
        vmem_limit = 48 * 1024 * 1024
    budget = vmem_limit - 8 * 1024 * 1024      # headroom for Mosaic internal scratch

    bt_auto, tn_auto = _choose_tiles(B, N, dim, d, x1.dtype.itemsize,
                                     jnp.dtype(out_dtype).itemsize,
                                     weight_bytes, budget)
    bt = batch_tile if batch_tile is not None else bt_auto
    tn = token_tile if token_tile is not None else tn_auto
    assert B % bt == 0 and N % tn == 0

    grid = (B // bt, 2, N // tn)               # (batch tiles, pass, token tiles)

    x_spec = pl.BlockSpec((bt, tn, dim), lambda b, p, n: (b, n, 0))
    # pass 0 never writes the output; pinning its block index at (b, 0) means every
    # output block is flushed exactly once, right after pass 1 fully writes it.
    o_spec = pl.BlockSpec((bt, tn, dim), lambda b, p, n: (b, n * p, 0))

    def const_spec(a):                         # grid-invariant params, DMA'd once
        return pl.BlockSpec(a.shape, lambda b, p, n: (0,) * a.ndim)
    # TODO(synk): single-buffer (pl.Buffered(1)) the constant weight specs once
    # supported, to reclaim their second pipeline buffer on v7x.

    kernel = functools.partial(crosspath_kernel, d=d, scale=scale, eps=eps)

    return pl.pallas_call(
        kernel,
        out_shape=(jax.ShapeDtypeStruct((B, N, dim), out_dtype),
                   jax.ShapeDtypeStruct((B, N, dim), out_dtype)),
        grid=grid,
        in_specs=[x_spec, x_spec] + [const_spec(w) for w in weights],
        out_specs=(o_spec, o_spec),
        scratch_shapes=[pltpu.VMEM((bt, d, d), f32),    # stream-1 score accumulator
                        pltpu.VMEM((bt, d, d), f32),    # stream-2 score accumulator
                        pltpu.VMEM((bt, d, d), bf16),   # ctx1 (post-softmax)
                        pltpu.VMEM((bt, d, d), bf16)],  # ctx2 (post-softmax)
        compiler_params=pltpu.CompilerParams(
            dimension_semantics=("parallel", "arbitrary", "arbitrary"),
            vmem_limit_bytes=vmem_limit),
    )(x1, x2, *weights)


def crosspath_ref(x1, x2, params, *, dim, reduction, num_heads):
    """Pure-JAX reference mirroring the PyTorch forward (per-head formulation with
    explicit chunk/cat) under the same bf16-operand / f32-accumulation policy."""
    (wcp1, bcp1, wcp2, bcp2, wkv1, wkv2,
     wep1, bep1, wep2, bep2, g1, bt1, g2, bt2) = params
    B, N, C = x1.shape
    d = dim // reduction
    h = num_heads
    hd = d // h
    scale = hd ** -0.5
    f32, bf16 = jnp.float32, jnp.bfloat16
    bf = lambda t: t.astype(bf16)

    h1 = jax.nn.relu(jnp.dot(bf(x1), bf(wcp1), preferred_element_type=f32) + bcp1[0])
    h2 = jax.nn.relu(jnp.dot(bf(x2), bf(wcp2), preferred_element_type=f32) + bcp2[0])
    y1, u1 = h1[..., :d], h1[..., d:]
    y2, u2 = h2[..., :d], h2[..., d:]

    def heads(t):  # (B, N, d) -> (B, h, N, hd)
        return t.reshape(B, N, h, hd).transpose(0, 2, 1, 3)

    q1, q2 = heads(u1), heads(u2)
    kv1 = jnp.dot(bf(u1), bf(wkv1), preferred_element_type=f32)
    kv2 = jnp.dot(bf(u2), bf(wkv2), preferred_element_type=f32)
    k1, v1 = heads(kv1[..., :d]), heads(kv1[..., d:])
    k2, v2 = heads(kv2[..., :d]), heads(kv2[..., d:])

    ctx1 = jnp.einsum('bhnd,bhne->bhde', bf(k1), bf(v1),
                      preferred_element_type=f32) * scale
    ctx1 = jax.nn.softmax(ctx1, axis=-2)
    ctx2 = jnp.einsum('bhnd,bhne->bhde', bf(k2), bf(v2),
                      preferred_element_type=f32) * scale
    ctx2 = jax.nn.softmax(ctx2, axis=-2)

    a1 = jnp.einsum('bhnd,bhde->bhne', bf(q1), bf(ctx2),
                    preferred_element_type=f32).transpose(0, 2, 1, 3).reshape(B, N, d)
    a2 = jnp.einsum('bhnd,bhde->bhne', bf(q2), bf(ctx1),
                    preferred_element_type=f32).transpose(0, 2, 1, 3).reshape(B, N, d)

    p1 = jnp.dot(bf(jnp.concatenate([y1, a1], -1)), bf(wep1),
                 preferred_element_type=f32) + bep1[0]
    p2 = jnp.dot(bf(jnp.concatenate([y2, a2], -1)), bf(wep2),
                 preferred_element_type=f32) + bep2[0]

    def ln(x, g, b):
        mu = jnp.mean(x, -1, keepdims=True)
        var = jnp.mean((x - mu) ** 2, -1, keepdims=True)
        return (x - mu) / jnp.sqrt(var + 1e-5) * g[0] + b[0]

    return ln(x1.astype(f32) + p1, g1, bt1), ln(x2.astype(f32) + p2, g2, bt2)


if __name__ == "__main__":
    # Small, shape-consistent config: dim=32, reduction=1, num_heads=4 -> head_dim=8
    B, N, dim = 2, 8, 32
    reduction, num_heads = 1, 4
    d = dim // reduction

    key = jax.random.PRNGKey(0)
    keys = jax.random.split(key, 12)

    x1 = jax.random.normal(keys[0], (B, N, dim), jnp.float32)
    x2 = jax.random.normal(keys[1], (B, N, dim), jnp.float32)

    # Linear weights stored as (in, out); biases as (1, out).
    w_scale = 0.05
    wcp1 = w_scale * jax.random.normal(keys[2], (dim, 2 * d), jnp.float32)
    bcp1 = w_scale * jax.random.normal(keys[3], (1, 2 * d), jnp.float32)
    wcp2 = w_scale * jax.random.normal(keys[4], (dim, 2 * d), jnp.float32)
    bcp2 = w_scale * jax.random.normal(keys[5], (1, 2 * d), jnp.float32)
    wkv1 = w_scale * jax.random.normal(keys[6], (d, 2 * d), jnp.float32)   # qkv_bias=False
    wkv2 = w_scale * jax.random.normal(keys[7], (d, 2 * d), jnp.float32)
    wep1 = w_scale * jax.random.normal(keys[8], (2 * d, dim), jnp.float32)
    bep1 = w_scale * jax.random.normal(keys[9], (1, dim), jnp.float32)
    wep2 = w_scale * jax.random.normal(keys[10], (2 * d, dim), jnp.float32)
    bep2 = w_scale * jax.random.normal(keys[11], (1, dim), jnp.float32)
    g1 = jnp.ones((1, dim), jnp.float32)
    bt1 = jnp.zeros((1, dim), jnp.float32)
    g2 = jnp.ones((1, dim), jnp.float32)
    bt2 = jnp.zeros((1, dim), jnp.float32)

    params = (wcp1, bcp1, wcp2, bcp2, wkv1, wkv2,
              wep1, bep1, wep2, bep2, g1, bt1, g2, bt2)

    out1, out2 = crosspath_pallas(x1, x2, params,
                                  dim=dim, reduction=reduction, num_heads=num_heads)
    jax.block_until_ready((out1, out2))

    r1, r2 = crosspath_ref(x1, x2, params,
                           dim=dim, reduction=reduction, num_heads=num_heads)
    # Tolerance covers the approximate-reciprocal softmax denominator and f32
    # accumulation-order differences (bf16 operand casts are mirrored in the ref).
    assert jnp.allclose(out1, r1, atol=2e-3, rtol=2e-3), "out1 mismatch vs reference"
    assert jnp.allclose(out2, r2, atol=2e-3, rtol=2e-3), "out2 mismatch vs reference"

    print("KERNEL_OK")
</pallas_src>

<mosaic_0001>
module attributes {stable_mosaic.version = 11 : i64} {
  func.func @crosspath_kernel(%arg0: i32, %arg1: i32, %arg2: i32, %arg3: memref<1x8x32xf32, #tpu.memory_space<vmem>>, %arg4: memref<1x8x32xf32, #tpu.memory_space<vmem>>, %arg5: memref<32x32xbf16, #tpu.memory_space<vmem>>, %arg6: memref<32x32xbf16, #tpu.memory_space<vmem>>, %arg7: memref<1x32xf32, #tpu.memory_space<vmem>>, %arg8: memref<1x32xf32, #tpu.memory_space<vmem>>, %arg9: memref<32x32xbf16, #tpu.memory_space<vmem>>, %arg10: memref<32x32xbf16, #tpu.memory_space<vmem>>, %arg11: memref<1x32xf32, #tpu.memory_space<vmem>>, %arg12: memref<1x32xf32, #tpu.memory_space<vmem>>, %arg13: memref<32x64xbf16, #tpu.memory_space<vmem>>, %arg14: memref<32x64xbf16, #tpu.memory_space<vmem>>, %arg15: memref<32x32xbf16, #tpu.memory_space<vmem>>, %arg16: memref<32x32xbf16, #tpu.memory_space<vmem>>, %arg17: memref<1x32xf32, #tpu.memory_space<vmem>>, %arg18: memref<32x32xbf16, #tpu.memory_space<vmem>>, %arg19: memref<32x32xbf16, #tpu.memory_space<vmem>>, %arg20: memref<1x32xf32, #tpu.memory_space<vmem>>, %arg21: memref<1x32xf32, #tpu.memory_space<vmem>>, %arg22: memref<1x32xf32, #tpu.memory_space<vmem>>, %arg23: memref<1x32xf32, #tpu.memory_space<vmem>>, %arg24: memref<1x32xf32, #tpu.memory_space<vmem>>, %arg25: memref<32x32xf32, #tpu.memory_space<vmem>>, %arg26: memref<1x8x32xf32, #tpu.memory_space<vmem>>, %arg27: memref<1x8x32xf32, #tpu.memory_space<vmem>>, %arg28: memref<1x32x32xf32, #tpu.memory_space<vmem>>, %arg29: memref<1x32x32xf32, #tpu.memory_space<vmem>>, %arg30: memref<1x32x32xbf16, #tpu.memory_space<vmem>>, %arg31: memref<1x32x32xbf16, #tpu.memory_space<vmem>>) attributes {dimension_semantics = [#tpu.dimension_semantics<parallel>, #tpu.dimension_semantics<arbitrary>, #tpu.dimension_semantics<arbitrary>], iteration_bounds = array<i64: 2, 2, 1>, scalar_prefetch = 0 : i64, scratch_operands = 4 : i64, tpu.core_type = #tpu.core_type<tc>, window_params = [{transform_indices = @transform_0, window_bounds = array<i64: 1, 8, 32>}, {transform_indices = @transform_1, window_bounds = array<i64: 1, 8, 32>}, {pipeline_mode = #tpu.pipeline_mode<synchronous>, transform_indices = @transform_2, window_bounds = array<i64: 32, 32>}, {pipeline_mode = #tpu.pipeline_mode<synchronous>, transform_indices = @transform_3, window_bounds = array<i64: 32, 32>}, {pipeline_mode = #tpu.pipeline_mode<synchronous>, transform_indices = @transform_4, window_bounds = array<i64: 1, 32>}, {pipeline_mode = #tpu.pipeline_mode<synchronous>, transform_indices = @transform_5, window_bounds = array<i64: 1, 32>}, {pipeline_mode = #tpu.pipeline_mode<synchronous>, transform_indices = @transform_6, window_bounds = array<i64: 32, 32>}, {pipeline_mode = #tpu.pipeline_mode<synchronous>, transform_indices = @transform_7, window_bounds = array<i64: 32, 32>}, {pipeline_mode = #tpu.pipeline_mode<synchronous>, transform_indices = @transform_8, window_bounds = array<i64: 1, 32>}, {pipeline_mode = #tpu.pipeline_mode<synchronous>, transform_indices = @transform_9, window_bounds = array<i64: 1, 32>}, {pipeline_mode = #tpu.pipeline_mode<synchronous>, transform_indices = @transform_10, window_bounds = array<i64: 32, 64>}, {pipeline_mode = #tpu.pipeline_mode<synchronous>, transform_indices = @transform_11, window_bounds = array<i64: 32, 64>}, {pipeline_mode = #tpu.pipeline_mode<synchronous>, transform_indices = @transform_12, window_bounds = array<i64: 32, 32>}, {pipeline_mode = #tpu.pipeline_mode<synchronous>, transform_indices = @transform_13, window_bounds = array<i64: 32, 32>}, {pipeline_mode = #tpu.pipeline_mode<synchronous>, transform_indices = @transform_14, window_bounds = array<i64: 1, 32>}, {pipeline_mode = #tpu.pipeline_mode<synchronous>, transform_indices = @transform_15, window_bounds = array<i64: 32, 32>}, {pipeline_mode = #tpu.pipeline_mode<synchronous>, transform_indices = @transform_16, window_bounds = array<i64: 32, 32>}, {pipeline_mode = #tpu.pipeline_mode<synchronous>, transform_indices = @transform_17, window_bounds = array<i64: 1, 32>}, {pipeline_mode = #tpu.pipeline_mode<synchronous>, transform_indices = @transform_18, window_bounds = array<i64: 1, 32>}, {pipeline_mode = #tpu.pipeline_mode<synchronous>, transform_indices = @transform_19, window_bounds = array<i64: 1, 32>}, {pipeline_mode = #tpu.pipeline_mode<synchronous>, transform_indices = @transform_20, window_bounds = array<i64: 1, 32>}, {pipeline_mode = #tpu.pipeline_mode<synchronous>, transform_indices = @transform_21, window_bounds = array<i64: 1, 32>}, {pipeline_mode = #tpu.pipeline_mode<synchronous>, transform_indices = @transform_22, window_bounds = array<i64: 32, 32>}, {transform_indices = @transform_23, window_bounds = array<i64: 1, 8, 32>}, {transform_indices = @transform_24, window_bounds = array<i64: 1, 8, 32>}]} {
    %c0_i32 = arith.constant 0 : i32
    %0 = arith.cmpi eq, %arg1, %c0_i32 : i32
    %1 = arith.extui %0 : i1 to i32
    %c0_i32_0 = arith.constant 0 : i32
    %2 = arith.cmpi ne, %1, %c0_i32_0 : i32
    scf.if %2 {
      %c0_i32_2 = arith.constant 0 : i32
      %6 = arith.cmpi eq, %arg2, %c0_i32_2 : i32
      %7 = arith.extui %6 : i1 to i32
      %c0_i32_3 = arith.constant 0 : i32
      %8 = arith.cmpi ne, %7, %c0_i32_3 : i32
      scf.if %8 {
        %cst_40 = arith.constant 0.000000e+00 : f32
        %55 = vector.broadcast %cst_40 : f32 to vector<1x32x32xf32>
        %c0_41 = arith.constant 0 : index
        %c0_42 = arith.constant 0 : index
        %c0_43 = arith.constant 0 : index
        %56 = vector.load %arg28[%c0_41, %c0_42, %c0_43] : memref<1x32x32xf32, #tpu.memory_space<vmem>>, vector<1x32x32xf32>
        tpu.vector_store %arg28[%c0_41, %c0_42, %c0_43], %55 {strides = array<i32>} : memref<1x32x32xf32, #tpu.memory_space<vmem>>, vector<1x32x32xf32>,
        %cst_44 = arith.constant 0.000000e+00 : f32
        %57 = vector.broadcast %cst_44 : f32 to vector<1x32x32xf32>
        %c0_45 = arith.constant 0 : index
        %c0_46 = arith.constant 0 : index
        %c0_47 = arith.constant 0 : index
        %58 = vector.load %arg29[%c0_45, %c0_46, %c0_47] : memref<1x32x32xf32, #tpu.memory_space<vmem>>, vector<1x32x32xf32>
        tpu.vector_store %arg29[%c0_45, %c0_46, %c0_47], %57 {strides = array<i32>} : memref<1x32x32xf32, #tpu.memory_space<vmem>>, vector<1x32x32xf32>,
      } else {
      }
      %c0 = arith.constant 0 : index
      %c0_4 = arith.constant 0 : index
      %c0_5 = arith.constant 0 : index
      %9 = vector.load %arg3[%c0, %c0_4, %c0_5] : memref<1x8x32xf32, #tpu.memory_space<vmem>>, vector<1x8x32xf32>
      %10 = arith.truncf %9 : vector<1x8x32xf32> to vector<1x8x32xbf16>
      %11 = vector.shape_cast %10 : vector<1x8x32xbf16> to vector<8x32xbf16>
      %c0_6 = arith.constant 0 : index
      %c0_7 = arith.constant 0 : index
      %c0_8 = arith.constant 0 : index
      %12 = vector.load %arg4[%c0_6, %c0_7, %c0_8] : memref<1x8x32xf32, #tpu.memory_space<vmem>>, vector<1x8x32xf32>
      %13 = arith.truncf %12 : vector<1x8x32xf32> to vector<1x8x32xbf16>
      %14 = vector.shape_cast %13 : vector<1x8x32xbf16> to vector<8x32xbf16>
      %c0_9 = arith.constant 0 : index
      %c0_10 = arith.constant 0 : index
      %15 = vector.load %arg6[%c0_9, %c0_10] : memref<32x32xbf16, #tpu.memory_space<vmem>>, vector<32x32xbf16>
      %cst = arith.constant dense<0.000000e+00> : vector<8x32xf32>
      %16 = tpu.matmul %11, %15, %cst {dimension_numbers = #tpu.dot_dimension_numbers<[1], [0], [0], [1], [0, 0, 1, 1], [], []>} : vector<8x32xbf16>, vector<32x32xbf16>, vector<8x32xf32> -> vector<8x32xf32>
      %c0_11 = arith.constant 0 : index
      %c0_12 = arith.constant 0 : index
      %17 = vector.load %arg8[%c0_11, %c0_12] : memref<1x32xf32, #tpu.memory_space<vmem>>, vector<1x32xf32>
      %18 = vector.broadcast %17 : vector<1x32xf32> to vector<8x32xf32>
      %19 = arith.addf %16, %18 : vector<8x32xf32>
      %cst_13 = arith.constant 0.000000e+00 : f32
      %20 = vector.broadcast %cst_13 : f32 to vector<8x32xf32>
      %21 = arith.maximumf %19, %20 : vector<8x32xf32>
      %c0_14 = arith.constant 0 : index
      %c0_15 = arith.constant 0 : index
      %22 = vector.load %arg10[%c0_14, %c0_15] : memref<32x32xbf16, #tpu.memory_space<vmem>>, vector<32x32xbf16>
      %cst_16 = arith.constant dense<0.000000e+00> : vector<8x32xf32>
      %23 = tpu.matmul %14, %22, %cst_16 {dimension_numbers = #tpu.dot_dimension_numbers<[1], [0], [0], [1], [0, 0, 1, 1], [], []>} : vector<8x32xbf16>, vector<32x32xbf16>, vector<8x32xf32> -> vector<8x32xf32>
      %c0_17 = arith.constant 0 : index
      %c0_18 = arith.constant 0 : index
      %24 = vector.load %arg12[%c0_17, %c0_18] : memref<1x32xf32, #tpu.memory_space<vmem>>, vector<1x32xf32>
      %25 = vector.broadcast %24 : vector<1x32xf32> to vector<8x32xf32>
      %26 = arith.addf %23, %25 : vector<8x32xf32>
      %cst_19 = arith.constant 0.000000e+00 : f32
      %27 = vector.broadcast %cst_19 : f32 to vector<8x32xf32>
      %28 = arith.maximumf %26, %27 : vector<8x32xf32>
      %29 = arith.truncf %21 : vector<8x32xf32> to vector<8x32xbf16>
      %c0_20 = arith.constant 0 : index
      %c0_21 = arith.constant 0 : index
      %30 = vector.load %arg13[%c0_20, %c0_21] : memref<32x64xbf16, #tpu.memory_space<vmem>>, vector<32x64xbf16>
      %cst_22 = arith.constant dense<0.000000e+00> : vector<8x64xf32>
      %31 = tpu.matmul %29, %30, %cst_22 {dimension_numbers = #tpu.dot_dimension_numbers<[1], [0], [0], [1], [0, 0, 1, 1], [], []>} : vector<8x32xbf16>, vector<32x64xbf16>, vector<8x64xf32> -> vector<8x64xf32>
      %32 = arith.truncf %28 : vector<8x32xf32> to vector<8x32xbf16>
      %c0_23 = arith.constant 0 : index
      %c0_24 = arith.constant 0 : index
      %33 = vector.load %arg14[%c0_23, %c0_24] : memref<32x64xbf16, #tpu.memory_space<vmem>>, vector<32x64xbf16>
      %cst_25 = arith.constant dense<0.000000e+00> : vector<8x64xf32>
      %34 = tpu.matmul %32, %33, %cst_25 {dimension_numbers = #tpu.dot_dimension_numbers<[1], [0], [0], [1], [0, 0, 1, 1], [], []>} : vector<8x32xbf16>, vector<32x64xbf16>, vector<8x64xf32> -> vector<8x64xf32>
      %35 = vector.extract_strided_slice %31 {offsets = [0, 0], sizes = [8, 32], strides = [1, 1]} : vector<8x64xf32> to vector<8x32xf32>
      %36 = arith.truncf %35 : vector<8x32xf32> to vector<8x32xbf16>
      %37 = vector.shape_cast %36 : vector<8x32xbf16> to vector<1x8x32xbf16>
      %38 = vector.extract_strided_slice %31 {offsets = [0, 32], sizes = [8, 32], strides = [1, 1]} : vector<8x64xf32> to vector<8x32xf32>
      %39 = arith.truncf %38 : vector<8x32xf32> to vector<8x32xbf16>
      %40 = vector.shape_cast %39 : vector<8x32xbf16> to vector<1x8x32xbf16>
      %41 = vector.extract_strided_slice %34 {offsets = [0, 0], sizes = [8, 32], strides = [1, 1]} : vector<8x64xf32> to vector<8x32xf32>
      %42 = arith.truncf %41 : vector<8x32xf32> to vector<8x32xbf16>
      %43 = vector.shape_cast %42 : vector<8x32xbf16> to vector<1x8x32xbf16>
      %44 = vector.extract_strided_slice %34 {offsets = [0, 32], sizes = [8, 32], strides = [1, 1]} : vector<8x64xf32> to vector<8x32xf32>
      %45 = arith.truncf %44 : vector<8x32xf32> to vector<8x32xbf16>
      %46 = vector.shape_cast %45 : vector<8x32xbf16> to vector<1x8x32xbf16>
      %c0_26 = arith.constant 0 : index
      %c0_27 = arith.constant 0 : index
      %c0_28 = arith.constant 0 : index
      %47 = vector.load %arg28[%c0_26, %c0_27, %c0_28] : memref<1x32x32xf32, #tpu.memory_space<vmem>>, vector<1x32x32xf32>
      "tpu.trace_start"() <{level = 10 : i32, message = "bnd,bne->bde"}> : () -> ()
      %cst_29 = arith.constant dense<0.000000e+00> : vector<1x32x32xf32>
      %48 = tpu.matmul %37, %40, %cst_29 {dimension_numbers = #tpu.dot_dimension_numbers<[1], [1], [2], [2], [0, 0, 0, 2, 1, 2], [0], [0]>} : vector<1x8x32xbf16>, vector<1x8x32xbf16>, vector<1x32x32xf32> -> vector<1x32x32xf32>
      "tpu.trace_stop"() : () -> ()
      %49 = arith.addf %47, %48 : vector<1x32x32xf32>
      %c0_30 = arith.constant 0 : index
      %c0_31 = arith.constant 0 : index
      %c0_32 = arith.constant 0 : index
      %50 = vector.load %arg28[%c0_30, %c0_31, %c0_32] : memref<1x32x32xf32, #tpu.memory_space<vmem>>, vector<1x32x32xf32>
      tpu.vector_store %arg28[%c0_30, %c0_31, %c0_32], %49 {strides = array<i32>} : memref<1x32x32xf32, #tpu.memory_space<vmem>>, vector<1x32x32xf32>,
      %c0_33 = arith.constant 0 : index
      %c0_34 = arith.constant 0 : index
      %c0_35 = arith.constant 0 : index
      %51 = vector.load %arg29[%c0_33, %c0_34, %c0_35] : memref<1x32x32xf32, #tpu.memory_space<vmem>>, vector<1x32x32xf32>
      "tpu.trace_start"() <{level = 10 : i32, message = "bnd,bne->bde"}> : () -> ()
      %cst_36 = arith.constant dense<0.000000e+00> : vector<1x32x32xf32>
      %52 = tpu.matmul %43, %46, %cst_36 {dimension_numbers = #tpu.dot_dimension_numbers<[1], [1], [2], [2], [0, 0, 0, 2, 1, 2], [0], [0]>} : vector<1x8x32xbf16>, vector<1x8x32xbf16>, vector<1x32x32xf32> -> vector<1x32x32xf32>
      "tpu.trace_stop"() : () -> ()
      %53 = arith.addf %51, %52 : vector<1x32x32xf32>
      %c0_37 = arith.constant 0 : index
      %c0_38 = arith.constant 0 : index
      %c0_39 = arith.constant 0 : index
      %54 = vector.load %arg29[%c0_37, %c0_38, %c0_39] : memref<1x32x32xf32, #tpu.memory_space<vmem>>, vector<1x32x32xf32>
      tpu.vector_store %arg29[%c0_37, %c0_38, %c0_39], %53 {strides = array<i32>} : memref<1x32x32xf32, #tpu.memory_space<vmem>>, vector<1x32x32xf32>,
    } else {
    }
    %c1_i32 = arith.constant 1 : i32
    %3 = arith.cmpi eq, %arg1, %c1_i32 : i32
    %4 = arith.extui %3 : i1 to i32
    %c0_i32_1 = arith.constant 0 : i32
    %5 = arith.cmpi ne, %4, %c0_i32_1 : i32
    scf.if %5 {
      %c0_i32_2 = arith.constant 0 : i32
      %6 = arith.cmpi eq, %arg2, %c0_i32_2 : i32
      %7 = arith.extui %6 : i1 to i32
      %c0_i32_3 = arith.constant 0 : i32
      %8 = arith.cmpi ne, %7, %c0_i32_3 : i32
      scf.if %8 {
        %c0_80 = arith.constant 0 : index
        %c0_81 = arith.constant 0 : index
        %c0_82 = arith.constant 0 : index
        %123 = vector.load %arg28[%c0_80, %c0_81, %c0_82] : memref<1x32x32xf32, #tpu.memory_space<vmem>>, vector<1x32x32xf32>
        %cst_83 = arith.constant 0.353553385 : f32
        %124 = vector.broadcast %cst_83 : f32 to vector<1x32x32xf32>
        %125 = arith.mulf %123, %124 : vector<1x32x32xf32>
        %c0_84 = arith.constant 0 : index
        %c0_85 = arith.constant 0 : index
        %126 = vector.load %arg25[%c0_84, %c0_85] : memref<32x32xf32, #tpu.memory_space<vmem>>, vector<32x32xf32>
        %127 = vector.shape_cast %126 : vector<32x32xf32> to vector<1x32x32xf32>
        %128 = arith.addf %125, %127 : vector<1x32x32xf32>
        %cst_86 = arith.constant dense<0xFF800000> : vector<1x32xf32>
        %129 = vector.multi_reduction <maximumf>, %128, %cst_86 [1] : vector<1x32x32xf32> to vector<1x32xf32>
        %130 = vector.shape_cast %129 : vector<1x32xf32> to vector<1x1x32xf32>
        %131 = vector.broadcast %130 : vector<1x1x32xf32> to vector<1x32x32xf32>
        %132 = arith.subf %128, %131 : vector<1x32x32xf32>
        %133 = math.exp %132 : vector<1x32x32xf32>
        %cst_87 = arith.constant dense<0.000000e+00> : vector<1x32xf32>
        %134 = vector.multi_reduction <add>, %133, %cst_87 [1] : vector<1x32x32xf32> to vector<1x32xf32>
        %135 = vector.shape_cast %134 : vector<1x32xf32> to vector<1x1x32xf32>
        %136 = tpu.reciprocal %135 {approx = true} : vector<1x1x32xf32> -> vector<1x1x32xf32>
        %137 = vector.broadcast %136 : vector<1x1x32xf32> to vector<1x32x32xf32>
        %138 = arith.mulf %133, %137 : vector<1x32x32xf32>
        %139 = arith.truncf %138 : vector<1x32x32xf32> to vector<1x32x32xbf16>
        %c0_88 = arith.constant 0 : index
        %c0_89 = arith.constant 0 : index
        %c0_90 = arith.constant 0 : index
        %140 = vector.load %arg30[%c0_88, %c0_89, %c0_90] : memref<1x32x32xbf16, #tpu.memory_space<vmem>>, vector<1x32x32xbf16>
        tpu.vector_store %arg30[%c0_88, %c0_89, %c0_90], %139 {strides = array<i32>} : memref<1x32x32xbf16, #tpu.memory_space<vmem>>, vector<1x32x32xbf16>,
        %c0_91 = arith.constant 0 : index
        %c0_92 = arith.constant 0 : index
        %c0_93 = arith.constant 0 : index
        %141 = vector.load %arg29[%c0_91, %c0_92, %c0_93] : memref<1x32x32xf32, #tpu.memory_space<vmem>>, vector<1x32x32xf32>
        %cst_94 = arith.constant 0.353553385 : f32
        %142 = vector.broadcast %cst_94 : f32 to vector<1x32x32xf32>
        %143 = arith.mulf %141, %142 : vector<1x32x32xf32>
        %c0_95 = arith.constant 0 : index
        %c0_96 = arith.constant 0 : index
        %144 = vector.load %arg25[%c0_95, %c0_96] : memref<32x32xf32, #tpu.memory_space<vmem>>, vector<32x32xf32>
        %145 = vector.shape_cast %144 : vector<32x32xf32> to vector<1x32x32xf32>
        %146 = arith.addf %143, %145 : vector<1x32x32xf32>
        %cst_97 = arith.constant dense<0xFF800000> : vector<1x32xf32>
        %147 = vector.multi_reduction <maximumf>, %146, %cst_97 [1] : vector<1x32x32xf32> to vector<1x32xf32>
        %148 = vector.shape_cast %147 : vector<1x32xf32> to vector<1x1x32xf32>
        %149 = vector.broadcast %148 : vector<1x1x32xf32> to vector<1x32x32xf32>
        %150 = arith.subf %146, %149 : vector<1x32x32xf32>
        %151 = math.exp %150 : vector<1x32x32xf32>
        %cst_98 = arith.constant dense<0.000000e+00> : vector<1x32xf32>
        %152 = vector.multi_reduction <add>, %151, %cst_98 [1] : vector<1x32x32xf32> to vector<1x32xf32>
        %153 = vector.shape_cast %152 : vector<1x32xf32> to vector<1x1x32xf32>
        %154 = tpu.reciprocal %153 {approx = true} : vector<1x1x32xf32> -> vector<1x1x32xf32>
        %155 = vector.broadcast %154 : vector<1x1x32xf32> to vector<1x32x32xf32>
        %156 = arith.mulf %151, %155 : vector<1x32x32xf32>
        %157 = arith.truncf %156 : vector<1x32x32xf32> to vector<1x32x32xbf16>
        %c0_99 = arith.constant 0 : index
        %c0_100 = arith.constant 0 : index
        %c0_101 = arith.constant 0 : index
        %158 = vector.load %arg31[%c0_99, %c0_100, %c0_101] : memref<1x32x32xbf16, #tpu.memory_space<vmem>>, vector<1x32x32xbf16>
        tpu.vector_store %arg31[%c0_99, %c0_100, %c0_101], %157 {strides = array<i32>} : memref<1x32x32xbf16, #tpu.memory_space<vmem>>, vector<1x32x32xbf16>,
      } else {
      }
      %c0 = arith.constant 0 : index
      %c0_4 = arith.constant 0 : index
      %c0_5 = arith.constant 0 : index
      %9 = vector.load %arg3[%c0, %c0_4, %c0_5] : memref<1x8x32xf32, #tpu.memory_space<vmem>>, vector<1x8x32xf32>
      %10 = vector.shape_cast %9 : vector<1x8x32xf32> to vector<8x32xf32>
      %11 = arith.truncf %10 : vector<8x32xf32> to vector<8x32xbf16>
      %c0_6 = arith.constant 0 : index
      %c0_7 = arith.constant 0 : index
      %12 = vector.load %arg5[%c0_6, %c0_7] : memref<32x32xbf16, #tpu.memory_space<vmem>>, vector<32x32xbf16>
      %cst = arith.constant dense<0.000000e+00> : vector<8x32xf32>
      %13 = tpu.matmul %11, %12, %cst {dimension_numbers = #tpu.dot_dimension_numbers<[1], [0], [0], [1], [0, 0, 1, 1], [], []>} : vector<8x32xbf16>, vector<32x32xbf16>, vector<8x32xf32> -> vector<8x32xf32>
      %c0_8 = arith.constant 0 : index
      %c0_9 = arith.constant 0 : index
      %14 = vector.load %arg7[%c0_8, %c0_9] : memref<1x32xf32, #tpu.memory_space<vmem>>, vector<1x32xf32>
      %15 = vector.broadcast %14 : vector<1x32xf32> to vector<8x32xf32>
      %16 = arith.addf %13, %15 : vector<8x32xf32>
      %cst_10 = arith.constant 0.000000e+00 : f32
      %17 = vector.broadcast %cst_10 : f32 to vector<8x32xf32>
      %18 = arith.maximumf %16, %17 : vector<8x32xf32>
      %19 = arith.truncf %18 : vector<8x32xf32> to vector<8x32xbf16>
      %c0_11 = arith.constant 0 : index
      %c0_12 = arith.constant 0 : index
      %20 = vector.load %arg15[%c0_11, %c0_12] : memref<32x32xbf16, #tpu.memory_space<vmem>>, vector<32x32xbf16>
      %cst_13 = arith.constant dense<0.000000e+00> : vector<8x32xf32>
      %21 = tpu.matmul %19, %20, %cst_13 {dimension_numbers = #tpu.dot_dimension_numbers<[1], [0], [0], [1], [0, 0, 1, 1], [], []>} : vector<8x32xbf16>, vector<32x32xbf16>, vector<8x32xf32> -> vector<8x32xf32>
      %c0_14 = arith.constant 0 : index
      %c0_15 = arith.constant 0 : index
      %22 = vector.load %arg17[%c0_14, %c0_15] : memref<1x32xf32, #tpu.memory_space<vmem>>, vector<1x32xf32>
      %23 = vector.broadcast %22 : vector<1x32xf32> to vector<8x32xf32>
      %24 = arith.addf %21, %23 : vector<8x32xf32>
      %c0_16 = arith.constant 0 : index
      %c0_17 = arith.constant 0 : index
      %25 = vector.load %arg6[%c0_16, %c0_17] : memref<32x32xbf16, #tpu.memory_space<vmem>>, vector<32x32xbf16>
      %cst_18 = arith.constant dense<0.000000e+00> : vector<8x32xf32>
      %26 = tpu.matmul %11, %25, %cst_18 {dimension_numbers = #tpu.dot_dimension_numbers<[1], [0], [0], [1], [0, 0, 1, 1], [], []>} : vector<8x32xbf16>, vector<32x32xbf16>, vector<8x32xf32> -> vector<8x32xf32>
      %c0_19 = arith.constant 0 : index
      %c0_20 = arith.constant 0 : index
      %27 = vector.load %arg8[%c0_19, %c0_20] : memref<1x32xf32, #tpu.memory_space<vmem>>, vector<1x32xf32>
      %28 = vector.broadcast %27 : vector<1x32xf32> to vector<8x32xf32>
      %29 = arith.addf %26, %28 : vector<8x32xf32>
      %cst_21 = arith.constant 0.000000e+00 : f32
      %30 = vector.broadcast %cst_21 : f32 to vector<8x32xf32>
      %31 = arith.maximumf %29, %30 : vector<8x32xf32>
      %32 = arith.truncf %31 : vector<8x32xf32> to vector<8x32xbf16>
      %33 = vector.shape_cast %32 : vector<8x32xbf16> to vector<1x8x32xbf16>
      %c0_22 = arith.constant 0 : index
      %c0_23 = arith.constant 0 : index
      %c0_24 = arith.constant 0 : index
      %34 = vector.load %arg31[%c0_22, %c0_23, %c0_24] : memref<1x32x32xbf16, #tpu.memory_space<vmem>>, vector<1x32x32xbf16>
      "tpu.trace_start"() <{level = 10 : i32, message = "bnd,bde->bne"}> : () -> ()
      %cst_25 = arith.constant dense<0.000000e+00> : vector<1x8x32xf32>
      %35 = tpu.matmul %33, %34, %cst_25 {dimension_numbers = #tpu.dot_dimension_numbers<[2], [1], [1], [2], [0, 0, 0, 1, 1, 2], [0], [0]>} : vector<1x8x32xbf16>, vector<1x32x32xbf16>, vector<1x8x32xf32> -> vector<1x8x32xf32>
      "tpu.trace_stop"() : () -> ()
      %36 = vector.shape_cast %35 : vector<1x8x32xf32> to vector<8x32xf32>
      %37 = arith.truncf %36 : vector<8x32xf32> to vector<8x32xbf16>
      %c0_26 = arith.constant 0 : index
      %c0_27 = arith.constant 0 : index
      %38 = vector.load %arg16[%c0_26, %c0_27] : memref<32x32xbf16, #tpu.memory_space<vmem>>, vector<32x32xbf16>
      %cst_28 = arith.constant dense<0.000000e+00> : vector<8x32xf32>
      %39 = tpu.matmul %37, %38, %cst_28 {dimension_numbers = #tpu.dot_dimension_numbers<[1], [0], [0], [1], [0, 0, 1, 1], [], []>} : vector<8x32xbf16>, vector<32x32xbf16>, vector<8x32xf32> -> vector<8x32xf32>
      %40 = arith.addf %24, %39 : vector<8x32xf32>
      %41 = arith.addf %10, %40 : vector<8x32xf32>
      %c0_29 = arith.constant 0 : index
      %c0_30 = arith.constant 0 : index
      %42 = vector.load %arg21[%c0_29, %c0_30] : memref<1x32xf32, #tpu.memory_space<vmem>>, vector<1x32xf32>
      %c0_31 = arith.constant 0 : index
      %c0_32 = arith.constant 0 : index
      %43 = vector.load %arg22[%c0_31, %c0_32] : memref<1x32xf32, #tpu.memory_space<vmem>>, vector<1x32xf32>
      %cst_33 = arith.constant dense<0.000000e+00> : vector<8xf32>
      %44 = vector.multi_reduction <add>, %41, %cst_33 [1] : vector<8x32xf32> to vector<8xf32>
      %45 = vector.shape_cast %44 : vector<8xf32> to vector<8x1xf32>
      %cst_34 = arith.constant 3.200000e+01 : f32
      %46 = vector.broadcast %cst_34 : f32 to vector<8x1xf32>
      %47 = arith.divf %45, %46 : vector<8x1xf32>
      %48 = vector.broadcast %47 : vector<8x1xf32> to vector<8x32xf32>
      %49 = arith.subf %41, %48 : vector<8x32xf32>
      %50 = arith.mulf %49, %49 : vector<8x32xf32>
      %cst_35 = arith.constant dense<0.000000e+00> : vector<8xf32>
      %51 = vector.multi_reduction <add>, %50, %cst_35 [1] : vector<8x32xf32> to vector<8xf32>
      %52 = vector.shape_cast %51 : vector<8xf32> to vector<8x1xf32>
      %cst_36 = arith.constant 3.200000e+01 : f32
      %53 = vector.broadcast %cst_36 : f32 to vector<8x1xf32>
      %54 = arith.divf %52, %53 : vector<8x1xf32>
      %cst_37 = arith.constant 9.99999974E-6 : f32
      %55 = vector.broadcast %cst_37 : f32 to vector<8x1xf32>
      %56 = arith.addf %54, %55 : vector<8x1xf32>
      %57 = math.rsqrt %56 : vector<8x1xf32>
      %58 = vector.broadcast %57 : vector<8x1xf32> to vector<8x32xf32>
      %59 = arith.mulf %49, %58 : vector<8x32xf32>
      %60 = vector.broadcast %42 : vector<1x32xf32> to vector<8x32xf32>
      %61 = arith.mulf %59, %60 : vector<8x32xf32>
      %62 = vector.broadcast %43 : vector<1x32xf32> to vector<8x32xf32>
      %63 = arith.addf %61, %62 : vector<8x32xf32>
      %64 = vector.shape_cast %63 : vector<8x32xf32> to vector<1x8x32xf32>
      %c0_38 = arith.constant 0 : index
      %c0_39 = arith.constant 0 : index
      %c0_40 = arith.constant 0 : index
      %65 = vector.load %arg26[%c0_38, %c0_39, %c0_40] : memref<1x8x32xf32, #tpu.memory_space<vmem>>, vector<1x8x32xf32>
      tpu.vector_store %arg26[%c0_38, %c0_39, %c0_40], %64 {strides = array<i32>} : memref<1x8x32xf32, #tpu.memory_space<vmem>>, vector<1x8x32xf32>,
      %c0_41 = arith.constant 0 : index
      %c0_42 = arith.constant 0 : index
      %c0_43 = arith.constant 0 : index
      %66 = vector.load %arg4[%c0_41, %c0_42, %c0_43] : memref<1x8x32xf32, #tpu.memory_space<vmem>>, vector<1x8x32xf32>
      %67 = vector.shape_cast %66 : vector<1x8x32xf32> to vector<8x32xf32>
      %68 = arith.truncf %67 : vector<8x32xf32> to vector<8x32xbf16>
      %c0_44 = arith.constant 0 : index
      %c0_45 = arith.constant 0 : index
      %69 = vector.load %arg9[%c0_44, %c0_45] : memref<32x32xbf16, #tpu.memory_space<vmem>>, vector<32x32xbf16>
      %cst_46 = arith.constant dense<0.000000e+00> : vector<8x32xf32>
      %70 = tpu.matmul %68, %69, %cst_46 {dimension_numbers = #tpu.dot_dimension_numbers<[1], [0], [0], [1], [0, 0, 1, 1], [], []>} : vector<8x32xbf16>, vector<32x32xbf16>, vector<8x32xf32> -> vector<8x32xf32>
      %c0_47 = arith.constant 0 : index
      %c0_48 = arith.constant 0 : index
      %71 = vector.load %arg11[%c0_47, %c0_48] : memref<1x32xf32, #tpu.memory_space<vmem>>, vector<1x32xf32>
      %72 = vector.broadcast %71 : vector<1x32xf32> to vector<8x32xf32>
      %73 = arith.addf %70, %72 : vector<8x32xf32>
      %cst_49 = arith.constant 0.000000e+00 : f32
      %74 = vector.broadcast %cst_49 : f32 to vector<8x32xf32>
      %75 = arith.maximumf %73, %74 : vector<8x32xf32>
      %76 = arith.truncf %75 : vector<8x32xf32> to vector<8x32xbf16>
      %c0_50 = arith.constant 0 : index
      %c0_51 = arith.constant 0 : index
      %77 = vector.load %arg18[%c0_50, %c0_51] : memref<32x32xbf16, #tpu.memory_space<vmem>>, vector<32x32xbf16>
      %cst_52 = arith.constant dense<0.000000e+00> : vector<8x32xf32>
      %78 = tpu.matmul %76, %77, %cst_52 {dimension_numbers = #tpu.dot_dimension_numbers<[1], [0], [0], [1], [0, 0, 1, 1], [], []>} : vector<8x32xbf16>, vector<32x32xbf16>, vector<8x32xf32> -> vector<8x32xf32>
      %c0_53 = arith.constant 0 : index
      %c0_54 = arith.constant 0 : index
      %79 = vector.load %arg20[%c0_53, %c0_54] : memref<1x32xf32, #tpu.memory_space<vmem>>, vector<1x32xf32>
      %80 = vector.broadcast %79 : vector<1x32xf32> to vector<8x32xf32>
      %81 = arith.addf %78, %80 : vector<8x32xf32>
      %c0_55 = arith.constant 0 : index
      %c0_56 = arith.constant 0 : index
      %82 = vector.load %arg10[%c0_55, %c0_56] : memref<32x32xbf16, #tpu.memory_space<vmem>>, vector<32x32xbf16>
      %cst_57 = arith.constant dense<0.000000e+00> : vector<8x32xf32>
      %83 = tpu.matmul %68, %82, %cst_57 {dimension_numbers = #tpu.dot_dimension_numbers<[1], [0], [0], [1], [0, 0, 1, 1], [], []>} : vector<8x32xbf16>, vector<32x32xbf16>, vector<8x32xf32> -> vector<8x32xf32>
      %c0_58 = arith.constant 0 : index
      %c0_59 = arith.constant 0 : index
      %84 = vector.load %arg12[%c0_58, %c0_59] : memref<1x32xf32, #tpu.memory_space<vmem>>, vector<1x32xf32>
      %85 = vector.broadcast %84 : vector<1x32xf32> to vector<8x32xf32>
      %86 = arith.addf %83, %85 : vector<8x32xf32>
      %cst_60 = arith.constant 0.000000e+00 : f32
      %87 = vector.broadcast %cst_60 : f32 to vector<8x32xf32>
      %88 = arith.maximumf %86, %87 : vector<8x32xf32>
      %89 = arith.truncf %88 : vector<8x32xf32> to vector<8x32xbf16>
      %90 = vector.shape_cast %89 : vector<8x32xbf16> to vector<1x8x32xbf16>
      %c0_61 = arith.constant 0 : index
      %c0_62 = arith.constant 0 : index
      %c0_63 = arith.constant 0 : index
      %91 = vector.load %arg30[%c0_61, %c0_62, %c0_63] : memref<1x32x32xbf16, #tpu.memory_space<vmem>>, vector<1x32x32xbf16>
      "tpu.trace_start"() <{level = 10 : i32, message = "bnd,bde->bne"}> : () -> ()
      %cst_64 = arith.constant dense<0.000000e+00> : vector<1x8x32xf32>
      %92 = tpu.matmul %90, %91, %cst_64 {dimension_numbers = #tpu.dot_dimension_numbers<[2], [1], [1], [2], [0, 0, 0, 1, 1, 2], [0], [0]>} : vector<1x8x32xbf16>, vector<1x32x32xbf16>, vector<1x8x32xf32> -> vector<1x8x32xf32>
      "tpu.trace_stop"() : () -> ()
      %93 = vector.shape_cast %92 : vector<1x8x32xf32> to vector<8x32xf32>
      %94 = arith.truncf %93 : vector<8x32xf32> to vector<8x32xbf16>
      %c0_65 = arith.constant 0 : index
      %c0_66 = arith.constant 0 : index
      %95 = vector.load %arg19[%c0_65, %c0_66] : memref<32x32xbf16, #tpu.memory_space<vmem>>, vector<32x32xbf16>
      %cst_67 = arith.constant dense<0.000000e+00> : vector<8x32xf32>
      %96 = tpu.matmul %94, %95, %cst_67 {dimension_numbers = #tpu.dot_dimension_numbers<[1], [0], [0], [1], [0, 0, 1, 1], [], []>} : vector<8x32xbf16>, vector<32x32xbf16>, vector<8x32xf32> -> vector<8x32xf32>
      %97 = arith.addf %81, %96 : vector<8x32xf32>
      %98 = arith.addf %67, %97 : vector<8x32xf32>
      %c0_68 = arith.constant 0 : index
      %c0_69 = arith.constant 0 : index
      %99 = vector.load %arg23[%c0_68, %c0_69] : memref<1x32xf32, #tpu.memory_space<vmem>>, vector<1x32xf32>
      %c0_70 = arith.constant 0 : index
      %c0_71 = arith.constant 0 : index
      %100 = vector.load %arg24[%c0_70, %c0_71] : memref<1x32xf32, #tpu.memory_space<vmem>>, vector<1x32xf32>
      %cst_72 = arith.constant dense<0.000000e+00> : vector<8xf32>
      %101 = vector.multi_reduction <add>, %98, %cst_72 [1] : vector<8x32xf32> to vector<8xf32>
      %102 = vector.shape_cast %101 : vector<8xf32> to vector<8x1xf32>
      %cst_73 = arith.constant 3.200000e+01 : f32
      %103 = vector.broadcast %cst_73 : f32 to vector<8x1xf32>
      %104 = arith.divf %102, %103 : vector<8x1xf32>
      %105 = vector.broadcast %104 : vector<8x1xf32> to vector<8x32xf32>
      %106 = arith.subf %98, %105 : vector<8x32xf32>
      %107 = arith.mulf %106, %106 : vector<8x32xf32>
      %cst_74 = arith.constant dense<0.000000e+00> : vector<8xf32>
      %108 = vector.multi_reduction <add>, %107, %cst_74 [1] : vector<8x32xf32> to vector<8xf32>
      %109 = vector.shape_cast %108 : vector<8xf32> to vector<8x1xf32>
      %cst_75 = arith.constant 3.200000e+01 : f32
      %110 = vector.broadcast %cst_75 : f32 to vector<8x1xf32>
      %111 = arith.divf %109, %110 : vector<8x1xf32>
      %cst_76 = arith.constant 9.99999974E-6 : f32
      %112 = vector.broadcast %cst_76 : f32 to vector<8x1xf32>
      %113 = arith.addf %111, %112 : vector<8x1xf32>
      %114 = math.rsqrt %113 : vector<8x1xf32>
      %115 = vector.broadcast %114 : vector<8x1xf32> to vector<8x32xf32>
      %116 = arith.mulf %106, %115 : vector<8x32xf32>
      %117 = vector.broadcast %99 : vector<1x32xf32> to vector<8x32xf32>
      %118 = arith.mulf %116, %117 : vector<8x32xf32>
      %119 = vector.broadcast %100 : vector<1x32xf32> to vector<8x32xf32>
      %120 = arith.addf %118, %119 : vector<8x32xf32>
      %121 = vector.shape_cast %120 : vector<8x32xf32> to vector<1x8x32xf32>
      %c0_77 = arith.constant 0 : index
      %c0_78 = arith.constant 0 : index
      %c0_79 = arith.constant 0 : index
      %122 = vector.load %arg27[%c0_77, %c0_78, %c0_79] : memref<1x8x32xf32, #tpu.memory_space<vmem>>, vector<1x8x32xf32>
      tpu.vector_store %arg27[%c0_77, %c0_78, %c0_79], %121 {strides = array<i32>} : memref<1x8x32xf32, #tpu.memory_space<vmem>>, vector<1x8x32xf32>,
    } else {
    }
    return
  }
  func.func @transform_0(%arg0: i32, %arg1: i32, %arg2: i32) -> (i32, i32, i32) {
    %c0_i32 = arith.constant 0 : i32
    %c0_i32_0 = arith.constant 0 : i32
    return %arg0, %arg2, %c0_i32 : i32, i32, i32
  }
  func.func @transform_1(%arg0: i32, %arg1: i32, %arg2: i32) -> (i32, i32, i32) {
    %c0_i32 = arith.constant 0 : i32
    %c0_i32_0 = arith.constant 0 : i32
    return %arg0, %arg2, %c0_i32 : i32, i32, i32
  }
  func.func @transform_2(%arg0: i32, %arg1: i32, %arg2: i32) -> (i32, i32) {
    %c0_i32 = arith.constant 0 : i32
    %c0_i32_0 = arith.constant 0 : i32
    %c0_i32_1 = arith.constant 0 : i32
    return %c0_i32, %c0_i32_0 : i32, i32
  }
  func.func @transform_3(%arg0: i32, %arg1: i32, %arg2: i32) -> (i32, i32) {
    %c0_i32 = arith.constant 0 : i32
    %c0_i32_0 = arith.constant 0 : i32
    %c0_i32_1 = arith.constant 0 : i32
    return %c0_i32, %c0_i32_0 : i32, i32
  }
  func.func @transform_4(%arg0: i32, %arg1: i32, %arg2: i32) -> (i32, i32) {
    %c0_i32 = arith.constant 0 : i32
    %c0_i32_0 = arith.constant 0 : i32
    %c0_i32_1 = arith.constant 0 : i32
    return %c0_i32, %c0_i32_0 : i32, i32
  }
  func.func @transform_5(%arg0: i32, %arg1: i32, %arg2: i32) -> (i32, i32) {
    %c0_i32 = arith.constant 0 : i32
    %c0_i32_0 = arith.constant 0 : i32
    %c0_i32_1 = arith.constant 0 : i32
    return %c0_i32, %c0_i32_0 : i32, i32
  }
  func.func @transform_6(%arg0: i32, %arg1: i32, %arg2: i32) -> (i32, i32) {
    %c0_i32 = arith.constant 0 : i32
    %c0_i32_0 = arith.constant 0 : i32
    %c0_i32_1 = arith.constant 0 : i32
    return %c0_i32, %c0_i32_0 : i32, i32
  }
  func.func @transform_7(%arg0: i32, %arg1: i32, %arg2: i32) -> (i32, i32) {
    %c0_i32 = arith.constant 0 : i32
    %c0_i32_0 = arith.constant 0 : i32
    %c0_i32_1 = arith.constant 0 : i32
    return %c0_i32, %c0_i32_0 : i32, i32
  }
  func.func @transform_8(%arg0: i32, %arg1: i32, %arg2: i32) -> (i32, i32) {
    %c0_i32 = arith.constant 0 : i32
    %c0_i32_0 = arith.constant 0 : i32
    %c0_i32_1 = arith.constant 0 : i32
    return %c0_i32, %c0_i32_0 : i32, i32
  }
  func.func @transform_9(%arg0: i32, %arg1: i32, %arg2: i32) -> (i32, i32) {
    %c0_i32 = arith.constant 0 : i32
    %c0_i32_0 = arith.constant 0 : i32
    %c0_i32_1 = arith.constant 0 : i32
    return %c0_i32, %c0_i32_0 : i32, i32
  }
  func.func @transform_10(%arg0: i32, %arg1: i32, %arg2: i32) -> (i32, i32) {
    %c0_i32 = arith.constant 0 : i32
    %c0_i32_0 = arith.constant 0 : i32
    %c0_i32_1 = arith.constant 0 : i32
    return %c0_i32, %c0_i32_0 : i32, i32
  }
  func.func @transform_11(%arg0: i32, %arg1: i32, %arg2: i32) -> (i32, i32) {
    %c0_i32 = arith.constant 0 : i32
    %c0_i32_0 = arith.constant 0 : i32
    %c0_i32_1 = arith.constant 0 : i32
    return %c0_i32, %c0_i32_0 : i32, i32
  }
  func.func @transform_12(%arg0: i32, %arg1: i32, %arg2: i32) -> (i32, i32) {
    %c0_i32 = arith.constant 0 : i32
    %c0_i32_0 = arith.constant 0 : i32
    %c0_i32_1 = arith.constant 0 : i32
    return %c0_i32, %c0_i32_0 : i32, i32
  }
  func.func @transform_13(%arg0: i32, %arg1: i32, %arg2: i32) -> (i32, i32) {
    %c0_i32 = arith.constant 0 : i32
    %c0_i32_0 = arith.constant 0 : i32
    %c0_i32_1 = arith.constant 0 : i32
    return %c0_i32, %c0_i32_0 : i32, i32
  }
  func.func @transform_14(%arg0: i32, %arg1: i32, %arg2: i32) -> (i32, i32) {
    %c0_i32 = arith.constant 0 : i32
    %c0_i32_0 = arith.constant 0 : i32
    %c0_i32_1 = arith.constant 0 : i32
    return %c0_i32, %c0_i32_0 : i32, i32
  }
  func.func @transform_15(%arg0: i32, %arg1: i32, %arg2: i32) -> (i32, i32) {
    %c0_i32 = arith.constant 0 : i32
    %c0_i32_0 = arith.constant 0 : i32
    %c0_i32_1 = arith.constant 0 : i32
    return %c0_i32, %c0_i32_0 : i32, i32
  }
  func.func @transform_16(%arg0: i32, %arg1: i32, %arg2: i32) -> (i32, i32) {
    %c0_i32 = arith.constant 0 : i32
    %c0_i32_0 = arith.constant 0 : i32
    %c0_i32_1 = arith.constant 0 : i32
    return %c0_i32, %c0_i32_0 : i32, i32
  }
  func.func @transform_17(%arg0: i32, %arg1: i32, %arg2: i32) -> (i32, i32) {
    %c0_i32 = arith.constant 0 : i32
    %c0_i32_0 = arith.constant 0 : i32
    %c0_i32_1 = arith.constant 0 : i32
    return %c0_i32, %c0_i32_0 : i32, i32
  }
  func.func @transform_18(%arg0: i32, %arg1: i32, %arg2: i32) -> (i32, i32) {
    %c0_i32 = arith.constant 0 : i32
    %c0_i32_0 = arith.constant 0 : i32
    %c0_i32_1 = arith.constant 0 : i32
    return %c0_i32, %c0_i32_0 : i32, i32
  }
  func.func @transform_19(%arg0: i32, %arg1: i32, %arg2: i32) -> (i32, i32) {
    %c0_i32 = arith.constant 0 : i32
    %c0_i32_0 = arith.constant 0 : i32
    %c0_i32_1 = arith.constant 0 : i32
    return %c0_i32, %c0_i32_0 : i32, i32
  }
  func.func @transform_20(%arg0: i32, %arg1: i32, %arg2: i32) -> (i32, i32) {
    %c0_i32 = arith.constant 0 : i32
    %c0_i32_0 = arith.constant 0 : i32
    %c0_i32_1 = arith.constant 0 : i32
    return %c0_i32, %c0_i32_0 : i32, i32
  }
  func.func @transform_21(%arg0: i32, %arg1: i32, %arg2: i32) -> (i32, i32) {
    %c0_i32 = arith.constant 0 : i32
    %c0_i32_0 = arith.constant 0 : i32
    %c0_i32_1 = arith.constant 0 : i32
    return %c0_i32, %c0_i32_0 : i32, i32
  }
  func.func @transform_22(%arg0: i32, %arg1: i32, %arg2: i32) -> (i32, i32) {
    %c0_i32 = arith.constant 0 : i32
    %c0_i32_0 = arith.constant 0 : i32
    %c0_i32_1 = arith.constant 0 : i32
    return %c0_i32, %c0_i32_0 : i32, i32
  }
  func.func @transform_23(%arg0: i32, %arg1: i32, %arg2: i32) -> (i32, i32, i32) {
    %0 = arith.muli %arg2, %arg1 : i32
    %c0_i32 = arith.constant 0 : i32
    %c0_i32_0 = arith.constant 0 : i32
    return %arg0, %0, %c0_i32 : i32, i32, i32
  }
  func.func @transform_24(%arg0: i32, %arg1: i32, %arg2: i32) -> (i32, i32, i32) {
    %0 = arith.muli %arg2, %arg1 : i32
    %c0_i32 = arith.constant 0 : i32
    %c0_i32_0 = arith.constant 0 : i32
    return %arg0, %0, %c0_i32 : i32, i32, i32
  }
}

</mosaic_0001>

<llo_original>
// kernel: tpu_custom_call.1
$region0: #{tpu_custom_call.1}
  #allocation0 [shape = 'u32[]', space=smem, size = 0x4, offset = 0x4, fixed_abs, tag = 'smem constant byte address 0x4 - core index']
  #allocation1 [shape = 'u32[144,128]{1,0:T(1,128)}', space=vmem, size = 0x12000, scoped, tag = 'internal scratch']
  #allocation2 [shape = 'f32[1,32,32]{2,1,0:T(8,128)}', space=vmem, size = 0x4000, scoped, tag = 'scratch operand']
  #allocation3 [shape = 'f32[1,32,32]{2,1,0:T(8,128)}', space=vmem, size = 0x4000, scoped, tag = 'scratch operand']
  #allocation4 [shape = 'bf16[1,32,32]{2,1,0:T(8,128)(2,1)}', space=vmem, size = 0x2000, scoped, tag = 'scratch operand']
  #allocation5 [shape = 'bf16[1,32,32]{2,1,0:T(8,128)(2,1)}', space=vmem, size = 0x2000, scoped, tag = 'scratch operand']
  %s0 = inlined_call_operand.hbm [shape: f32[2,8,32], index: 0, kind: input, shape index: {}]
  %s1 = inlined_call_operand.hbm [shape: f32[2,8,32], index: 1, kind: input, shape index: {}]
  %s2 = inlined_call_operand.hbm [shape: bf16[32,32], index: 2, kind: input, shape index: {}]
  %s3 = inlined_call_operand.hbm [shape: bf16[32,32], index: 3, kind: input, shape index: {}]
  %s4 = inlined_call_operand.vmem [shape: f32[1,32], index: 4, kind: input, shape index: {}]
  %s5 = inlined_call_operand.vmem [shape: f32[1,32], index: 5, kind: input, shape index: {}]
  %s6 = inlined_call_operand.hbm [shape: bf16[32,32], index: 6, kind: input, shape index: {}]
  %s7 = inlined_call_operand.hbm [shape: bf16[32,32], index: 7, kind: input, shape index: {}]
  %s8 = inlined_call_operand.vmem [shape: f32[1,32], index: 8, kind: input, shape index: {}]
  %s9 = inlined_call_operand.vmem [shape: f32[1,32], index: 9, kind: input, shape index: {}]
  %s10 = inlined_call_operand.hbm [shape: bf16[32,64], index: 10, kind: input, shape index: {}]
  %s11 = inlined_call_operand.hbm [shape: bf16[32,64], index: 11, kind: input, shape index: {}]
  %s12 = inlined_call_operand.hbm [shape: bf16[32,32], index: 12, kind: input, shape index: {}]
  %s13 = inlined_call_operand.hbm [shape: bf16[32,32], index: 13, kind: input, shape index: {}]
  %s14 = inlined_call_operand.vmem [shape: f32[1,32], index: 14, kind: input, shape index: {}]
  %s15 = inlined_call_operand.hbm [shape: bf16[32,32], index: 15, kind: input, shape index: {}]
  %s16 = inlined_call_operand.hbm [shape: bf16[32,32], index: 16, kind: input, shape index: {}]
  %s17 = inlined_call_operand.vmem [shape: f32[1,32], index: 17, kind: input, shape index: {}]
  %s18 = inlined_call_operand.vmem [shape: f32[1,32], index: 18, kind: input, shape index: {}]
  %s19 = inlined_call_operand.vmem [shape: f32[1,32], index: 19, kind: input, shape index: {}]
  %s20 = inlined_call_operand.hbm [shape: f32[1,32], index: 20, kind: input, shape index: {}]
  %s21 = inlined_call_operand.hbm [shape: f32[1,32], index: 21, kind: input, shape index: {}]
  %s22 = inlined_call_operand.vmem [shape: f32[32,32], index: 22, kind: input, shape index: {}]
  %s23 = inlined_call_operand.hbm [shape: f32[2,8,32], index: 23, kind: output, shape index: {0}]
  %s24 = inlined_call_operand.hbm [shape: f32[2,8,32], index: 24, kind: output, shape index: {1}]
  %25 = xla_tuple %s23, %s24
  %s26 = sld [smem:[#allocation0]]
  $region205: #{tpu_custom_call.1} parent=0
    _
  %s28 = ssub.s32 1, %s26
  %s29 = scalar_select 0, %s28, %s26
  $region1: #{tpu_custom_call.1} parent=0
    #allocation6 [shape = 'u8[8192]{0}', space=vmem, size = 0x2000, scoped, tag = 'input window, operand 0']
    #allocation7 [shape = 's32[2]{0}', space=sflag, size = 0x8, scoped, tag = 'scoped memory for tpu_custom_call.1']
    #allocation8 [shape = 's32[2]{0}', space=sflag, size = 0x8, scoped, tag = 'scoped memory for tpu_custom_call.1']
    #allocation9 [shape = 'u8[8192]{0}', space=vmem, size = 0x2000, scoped, tag = 'input window, operand 1']
    #allocation10 [shape = 's32[2]{0}', space=sflag, size = 0x8, scoped, tag = 'scoped memory for tpu_custom_call.1']
    #allocation11 [shape = 'u8[8192]{0}', space=vmem, size = 0x2000, scoped, tag = 'input window, operand 2, single buffered']
    #allocation12 [shape = 'u8[8192]{0}', space=vmem, size = 0x2000, scoped, tag = 'input window, operand 3, single buffered']
    #allocation13 [shape = 's32[1]{0}', space=sflag, size = 0x4, scoped, tag = 'scoped memory for tpu_custom_call.1']
    #allocation14 [shape = 'u8[8192]{0}', space=vmem, size = 0x2000, scoped, tag = 'input window, operand 6, single buffered']
    #allocation15 [shape = 'u8[8192]{0}', space=vmem, size = 0x2000, scoped, tag = 'input window, operand 7, single buffered']
    #allocation16 [shape = 's32[1]{0}', space=sflag, size = 0x4, scoped, tag = 'scoped memory for tpu_custom_call.1']
    #allocation17 [shape = 'u8[8192]{0}', space=vmem, size = 0x2000, scoped, tag = 'input window, operand 10, single buffered']
    #allocation18 [shape = 'u8[8192]{0}', space=vmem, size = 0x2000, scoped, tag = 'input window, operand 11, single buffered']
    #allocation19 [shape = 's32[1]{0}', space=sflag, size = 0x4, scoped, tag = 'scoped memory for tpu_custom_call.1']
    #allocation20 [shape = 'u8[8192]{0}', space=vmem, size = 0x2000, scoped, tag = 'input window, operand 12, single buffered']
    #allocation21 [shape = 'u8[8192]{0}', space=vmem, size = 0x2000, scoped, tag = 'input window, operand 13, single buffered']
    #allocation22 [shape = 's32[1]{0}', space=sflag, size = 0x4, scoped, tag = 'scoped memory for tpu_custom_call.1']
    #allocation23 [shape = 'u8[8192]{0}', space=vmem, size = 0x2000, scoped, tag = 'input window, operand 15, single buffered']
    #allocation24 [shape = 'u8[8192]{0}', space=vmem, size = 0x2000, scoped, tag = 'input window, operand 16, single buffered']
    #allocation25 [shape = 's32[1]{0}', space=sflag, size = 0x4, scoped, tag = 'scoped memory for tpu_custom_call.1']
    #allocation26 [shape = 'u8[512]{0}', space=vmem, size = 0x400, scoped, tag = 'input window, operand 20, single buffered']
    #allocation27 [shape = 'u8[512]{0}', space=vmem, size = 0x400, scoped, tag = 'input window, operand 21, single buffered']
    #allocation28 [shape = 's32[1]{0}', space=sflag, size = 0x4, scoped, tag = 'scoped memory for tpu_custom_call.1']
    #allocation29 [shape = 'u8[8192]{0}', space=vmem, size = 0x2000, scoped, tag = 'output window, operand 0']
    #allocation30 [shape = 'u8[8192]{0}', space=vmem, size = 0x2000, scoped, tag = 'output window, operand 1']
    #allocation31 [shape = 's32[2]{0}', space=sflag, size = 0x8, scoped, tag = 'scoped memory for tpu_custom_call.1']
    %30 = vsyncpa [#allocation7], 0
    %s31 = scalar_lea.sflag [#allocation7], 1
    %32 = vsyncpa %s31, 0
    %33 = vsyncpa [#allocation10], 0
    %s34 = scalar_lea.sflag [#allocation10], 1
    %35 = vsyncpa %s34, 0
    %36 = vsyncpa [#allocation13], 0
    %37 = vsyncpa [#allocation16], 0
    %38 = vsyncpa [#allocation19], 0
    %39 = vsyncpa [#allocation22], 0
    %40 = vsyncpa [#allocation25], 0
    %41 = vsyncpa [#allocation28], 0
    %42 = vsyncpa [#allocation8], 0
    %s43 = scalar_lea.sflag [#allocation8], 1
    %44 = vsyncpa %s43, 0
    %45 = vsyncpa [#allocation31], 0
    %s46 = scalar_lea.sflag [#allocation31], 1
    %47 = vsyncpa %s46, 0
    loop: start=0, step=1, limit=6
    $region2: #{tpu_custom_call.1} parent=1 // loop_pre_header
      _
    $region3: #{tpu_custom_call.1} parent=1 // loop_header
      %s49 = sphi 0, %s53
      %p50 = scmp.ge.s32.totalorder %s49, 6
      %s56 = sphi 0, %s75
      %s57 = sphi 0, %s71
      %s58 = sphi 0, %s67
      %s59 = sphi 0, %s56
      %s60 = sphi 0, %s57
      %s61 = sphi 0, %s58
      %s62 = sphi 0, %s59
      %s63 = sphi 0, %s60
      %s64 = sphi 0, %s61
      %s80 = sphi 0, %s82
      %s83 = sphi 0, %s80
      %s84 = sphi 0, %s83
      %s100 = sphi 0, %s84
      %s108 = sphi 0, %s110
      %s111 = sphi 0, %s108
      %s112 = sphi 0, %s111
      %s128 = sphi 0, %s112
      %s132 = sphi 0, %s132
      %s134 = sphi 0, %s132
      %s135 = sphi 0, %s134
      %s149 = sphi 0, %s135
      %s153 = sphi 0, %s153
      %s155 = sphi 0, %s153
      %s156 = sphi 0, %s155
      %s170 = sphi 0, %s156
      %s174 = sphi 0, %s174
      %s176 = sphi 0, %s174
      %s177 = sphi 0, %s176
      %s191 = sphi 0, %s177
      %s195 = sphi 0, %s195
      %s197 = sphi 0, %s195
      %s198 = sphi 0, %s197
      %s212 = sphi 0, %s198
      %s216 = sphi 0, %s216
      %s218 = sphi 0, %s216
      %s219 = sphi 0, %s218
      %s233 = sphi 0, %s219
      %s237 = sphi 0, %s237
      %s239 = sphi 0, %s237
      %s240 = sphi 0, %s239
      %s254 = sphi 0, %s240
      %s258 = sphi 0, %s258
      %s260 = sphi 0, %s258
      %s261 = sphi 0, %s260
      %s275 = sphi 0, %s261
      %s279 = sphi 0, %s279
      %s281 = sphi 0, %s279
      %s282 = sphi 0, %s281
      %s296 = sphi 0, %s282
      %s300 = sphi 0, %s300
      %s302 = sphi 0, %s300
      %s303 = sphi 0, %s302
      %s317 = sphi 0, %s303
      %s321 = sphi 0, %s321
      %s323 = sphi 0, %s321
      %s324 = sphi 0, %s323
      %s338 = sphi 0, %s324
      %s342 = sphi 0, %s342
      %s344 = sphi 0, %s342
      %s345 = sphi 0, %s344
      %s359 = sphi 0, %s345
      %s363 = sphi 0, %s363
      %s365 = sphi 0, %s363
      %s366 = sphi 0, %s365
      %s380 = sphi 0, %s366
      %s384 = sphi 0, %s384
      %s386 = sphi 0, %s384
      %s387 = sphi 0, %s386
      %s401 = sphi 0, %s387
      %s405 = sphi 0, %s405
      %s407 = sphi 0, %s405
      %s408 = sphi 0, %s407
      %s422 = sphi 0, %s408
      %s426 = sphi 0, %s426
      %s428 = sphi 0, %s426
      %s429 = sphi 0, %s428
      %s443 = sphi 0, %s429
      %s447 = sphi 0, %s447
      %s449 = sphi 0, %s447
      %s450 = sphi 0, %s449
      %s464 = sphi 0, %s450
      %s468 = sphi 0, %s468
      %s470 = sphi 0, %s468
      %s471 = sphi 0, %s470
      %s485 = sphi 0, %s471
      %s489 = sphi 0, %s489
      %s491 = sphi 0, %s489
      %s492 = sphi 0, %s491
      %s506 = sphi 0, %s492
      %s510 = sphi 0, %s510
      %s512 = sphi 0, %s510
      %s513 = sphi 0, %s512
      %s527 = sphi 0, %s513
      %s531 = sphi 0, %s531
      %s533 = sphi 0, %s531
      %s534 = sphi 0, %s533
      %s548 = sphi 0, %s534
      %s552 = sphi 0, %s552
      %s554 = sphi 0, %s552
      %s555 = sphi 0, %s554
      %s569 = sphi 0, %s555
      %s579 = sphi 0, %s581
      %s582 = sphi 0, %s579
      %s583 = sphi 0, %s582
      %s599 = sphi 0, %s583
      %s609 = sphi 0, %s611
      %s612 = sphi 0, %s609
      %s613 = sphi 0, %s612
      %s629 = sphi 0, %s613
    $region4: #{tpu_custom_call.1} parent=1 // loop_header_branch
      %52 = sbr.rel (%p50) target = $region8
    $region5: #{tpu_custom_call.1} parent=1 // loop_body
      %s54 = ssub.s32 %s49, 1
      %s55 = ssub.s32 %s49, 2
      %s65 = sadd.s32 1, %s58
      %p66 = scmp.ge.s32.totalorder %s65, 1
      %s67 = scalar_select %p66, 0, %s65
      %s68 = sadd.s32 1, %s57
      %s69 = scalar_select %p66, %s68, %s57
      %p70 = scmp.ge.s32.totalorder %s69, 2
      %s71 = scalar_select %p70, 0, %s69
      %s72 = sadd.s32 1, %s56
      %s73 = scalar_select %p70, %s72, %s56
      %p74 = scmp.ge.s32.totalorder %s73, 2
      %s75 = scalar_select %p74, 0, %s73
      %s76 = ssub.s32 %s56, %s75
      %s77 = ssub.s32 %s58, %s67
      %s78 = sor.u32 %s76, %s77
      %p79 = scmp.eq.s32.totalorder %s78, 0
      %s81 = sadd.s32 %s80, 1
      %s82 = scalar_select %p79, %s80, %s81
      %p85 = pneg %p79
      %p86 = scmp.eq.s32.totalorder %s49, 3
      %p87 = por %p85, %p86
      %p88 = scmp.ne.s32.totalorder %s80, %s83
      %p89 = scmp.eq.s32.totalorder %s49, 0
      %p90 = por %p88, %p89
      %p91 = scmp.ne.s32.totalorder %s80, %s83
      %p92 = scmp.eq.s32.totalorder %s54, 3
      %p93 = por %p91, %p92
      %p94 = scmp.ne.s32.totalorder %s83, %s84
      %p95 = scmp.eq.s32.totalorder %s54, 0
      %p96 = por %p94, %p95
      %p97 = scmp.ne.s32.totalorder %s83, %s84
      %p98 = scmp.eq.s32.totalorder %s55, 3
      %p99 = por %p97, %p98
      %p101 = scmp.ne.s32.totalorder %s84, %s100
      %p102 = scmp.eq.s32.totalorder %s55, 0
      %p103 = por %p101, %p102
      %s104 = ssub.s32 %s56, %s75
      %s105 = ssub.s32 %s58, %s67
      %s106 = sor.u32 %s104, %s105
      %p107 = scmp.eq.s32.totalorder %s106, 0
      %s109 = sadd.s32 %s108, 1
      %s110 = scalar_select %p107, %s108, %s109
      %p113 = pneg %p107
      %p114 = scmp.eq.s32.totalorder %s49, 3
      %p115 = por %p113, %p114
      %p116 = scmp.ne.s32.totalorder %s108, %s111
      %p117 = scmp.eq.s32.totalorder %s49, 0
      %p118 = por %p116, %p117
      %p119 = scmp.ne.s32.totalorder %s108, %s111
      %p120 = scmp.eq.s32.totalorder %s54, 3
      %p121 = por %p119, %p120
      %p122 = scmp.ne.s32.totalorder %s111, %s112
      %p123 = scmp.eq.s32.totalorder %s54, 0
      %p124 = por %p122, %p123
      %p125 = scmp.ne.s32.totalorder %s111, %s112
      %p126 = scmp.eq.s32.totalorder %s55, 3
      %p127 = por %p125, %p126
      %p129 = scmp.ne.s32.totalorder %s112, %s128
      %p130 = scmp.eq.s32.totalorder %s55, 0
      %p131 = por %p129, %p130
      %s133 = sadd.s32 %s132, 1
      %p136 = scmp.eq.s32.totalorder %s49, 3
      %p137 = scmp.ne.s32.totalorder %s132, %s134
      %p138 = scmp.eq.s32.totalorder %s49, 0
      %p139 = por %p137, %p138
      %p140 = scmp.ne.s32.totalorder %s132, %s134
      %p141 = scmp.eq.s32.totalorder %s54, 3
      %p142 = por %p140, %p141
      %p143 = scmp.ne.s32.totalorder %s134, %s135
      %p144 = scmp.eq.s32.totalorder %s54, 0
      %p145 = por %p143, %p144
      %p146 = scmp.ne.s32.totalorder %s134, %s135
      %p147 = scmp.eq.s32.totalorder %s55, 3
      %p148 = por %p146, %p147
      %p150 = scmp.ne.s32.totalorder %s135, %s149
      %p151 = scmp.eq.s32.totalorder %s55, 0
      %p152 = por %p150, %p151
      %s154 = sadd.s32 %s153, 1
      %p157 = scmp.eq.s32.totalorder %s49, 3
      %p158 = scmp.ne.s32.totalorder %s153, %s155
      %p159 = scmp.eq.s32.totalorder %s49, 0
      %p160 = por %p158, %p159
      %p161 = scmp.ne.s32.totalorder %s153, %s155
      %p162 = scmp.eq.s32.totalorder %s54, 3
      %p163 = por %p161, %p162
      %p164 = scmp.ne.s32.totalorder %s155, %s156
      %p165 = scmp.eq.s32.totalorder %s54, 0
      %p166 = por %p164, %p165
      %p167 = scmp.ne.s32.totalorder %s155, %s156
      %p168 = scmp.eq.s32.totalorder %s55, 3
      %p169 = por %p167, %p168
      %p171 = scmp.ne.s32.totalorder %s156, %s170
      %p172 = scmp.eq.s32.totalorder %s55, 0
      %p173 = por %p171, %p172
      %s175 = sadd.s32 %s174, 1
      %p178 = scmp.eq.s32.totalorder %s49, 3
      %p179 = scmp.ne.s32.totalorder %s174, %s176
      %p180 = scmp.eq.s32.totalorder %s49, 0
      %p181 = por %p179, %p180
      %p182 = scmp.ne.s32.totalorder %s174, %s176
      %p183 = scmp.eq.s32.totalorder %s54, 3
      %p184 = por %p182, %p183
      %p185 = scmp.ne.s32.totalorder %s176, %s177
      %p186 = scmp.eq.s32.totalorder %s54, 0
      %p187 = por %p185, %p186
      %p188 = scmp.ne.s32.totalorder %s176, %s177
      %p189 = scmp.eq.s32.totalorder %s55, 3
      %p190 = por %p188, %p189
      %p192 = scmp.ne.s32.totalorder %s177, %s191
      %p193 = scmp.eq.s32.totalorder %s55, 0
      %p194 = por %p192, %p193
      %s196 = sadd.s32 %s195, 1
      %p199 = scmp.eq.s32.totalorder %s49, 3
      %p200 = scmp.ne.s32.totalorder %s195, %s197
      %p201 = scmp.eq.s32.totalorder %s49, 0
      %p202 = por %p200, %p201
      %p203 = scmp.ne.s32.totalorder %s195, %s197
      %p204 = scmp.eq.s32.totalorder %s54, 3
      %p205 = por %p203, %p204
      %p206 = scmp.ne.s32.totalorder %s197, %s198
      %p207 = scmp.eq.s32.totalorder %s54, 0
      %p208 = por %p206, %p207
      %p209 = scmp.ne.s32.totalorder %s197, %s198
      %p210 = scmp.eq.s32.totalorder %s55, 3
      %p211 = por %p209, %p210
      %p213 = scmp.ne.s32.totalorder %s198, %s212
      %p214 = scmp.eq.s32.totalorder %s55, 0
      %p215 = por %p213, %p214
      %s217 = sadd.s32 %s216, 1
      %p220 = scmp.eq.s32.totalorder %s49, 3
      %p221 = scmp.ne.s32.totalorder %s216, %s218
      %p222 = scmp.eq.s32.totalorder %s49, 0
      %p223 = por %p221, %p222
      %p224 = scmp.ne.s32.totalorder %s216, %s218
      %p225 = scmp.eq.s32.totalorder %s54, 3
      %p226 = por %p224, %p225
      %p227 = scmp.ne.s32.totalorder %s218, %s219
      %p228 = scmp.eq.s32.totalorder %s54, 0
      %p229 = por %p227, %p228
      %p230 = scmp.ne.s32.totalorder %s218, %s219
      %p231 = scmp.eq.s32.totalorder %s55, 3
      %p232 = por %p230, %p231
      %p234 = scmp.ne.s32.totalorder %s219, %s233
      %p235 = scmp.eq.s32.totalorder %s55, 0
      %p236 = por %p234, %p235
      %s238 = sadd.s32 %s237, 1
      %p241 = scmp.eq.s32.totalorder %s49, 3
      %p242 = scmp.ne.s32.totalorder %s237, %s239
      %p243 = scmp.eq.s32.totalorder %s49, 0
      %p244 = por %p242, %p243
      %p245 = scmp.ne.s32.totalorder %s237, %s239
      %p246 = scmp.eq.s32.totalorder %s54, 3
      %p247 = por %p245, %p246
      %p248 = scmp.ne.s32.totalorder %s239, %s240
      %p249 = scmp.eq.s32.totalorder %s54, 0
      %p250 = por %p248, %p249
      %p251 = scmp.ne.s32.totalorder %s239, %s240
      %p252 = scmp.eq.s32.totalorder %s55, 3
      %p253 = por %p251, %p252
      %p255 = scmp.ne.s32.totalorder %s240, %s254
      %p256 = scmp.eq.s32.totalorder %s55, 0
      %p257 = por %p255, %p256
      %s259 = sadd.s32 %s258, 1
      %p262 = scmp.eq.s32.totalorder %s49, 3
      %p263 = scmp.ne.s32.totalorder %s258, %s260
      %p264 = scmp.eq.s32.totalorder %s49, 0
      %p265 = por %p263, %p264
      %p266 = scmp.ne.s32.totalorder %s258, %s260
      %p267 = scmp.eq.s32.totalorder %s54, 3
      %p268 = por %p266, %p267
      %p269 = scmp.ne.s32.totalorder %s260, %s261
      %p270 = scmp.eq.s32.totalorder %s54, 0
      %p271 = por %p269, %p270
      %p272 = scmp.ne.s32.totalorder %s260, %s261
      %p273 = scmp.eq.s32.totalorder %s55, 3
      %p274 = por %p272, %p273
      %p276 = scmp.ne.s32.totalorder %s261, %s275
      %p277 = scmp.eq.s32.totalorder %s55, 0
      %p278 = por %p276, %p277
      %s280 = sadd.s32 %s279, 1
      %p283 = scmp.eq.s32.totalorder %s49, 3
      %p284 = scmp.ne.s32.totalorder %s279, %s281
      %p285 = scmp.eq.s32.totalorder %s49, 0
      %p286 = por %p284, %p285
      %p287 = scmp.ne.s32.totalorder %s279, %s281
      %p288 = scmp.eq.s32.totalorder %s54, 3
      %p289 = por %p287, %p288
      %p290 = scmp.ne.s32.totalorder %s281, %s282
      %p291 = scmp.eq.s32.totalorder %s54, 0
      %p292 = por %p290, %p291
      %p293 = scmp.ne.s32.totalorder %s281, %s282
      %p294 = scmp.eq.s32.totalorder %s55, 3
      %p295 = por %p293, %p294
      %p297 = scmp.ne.s32.totalorder %s282, %s296
      %p298 = scmp.eq.s32.totalorder %s55, 0
      %p299 = por %p297, %p298
      %s301 = sadd.s32 %s300, 1
      %p304 = scmp.eq.s32.totalorder %s49, 3
      %p305 = scmp.ne.s32.totalorder %s300, %s302
      %p306 = scmp.eq.s32.totalorder %s49, 0
      %p307 = por %p305, %p306
      %p308 = scmp.ne.s32.totalorder %s300, %s302
      %p309 = scmp.eq.s32.totalorder %s54, 3
      %p310 = por %p308, %p309
      %p311 = scmp.ne.s32.totalorder %s302, %s303
      %p312 = scmp.eq.s32.totalorder %s54, 0
      %p313 = por %p311, %p312
      %p314 = scmp.ne.s32.totalorder %s302, %s303
      %p315 = scmp.eq.s32.totalorder %s55, 3
      %p316 = por %p314, %p315
      %p318 = scmp.ne.s32.totalorder %s303, %s317
      %p319 = scmp.eq.s32.totalorder %s55, 0
      %p320 = por %p318, %p319
      %s322 = sadd.s32 %s321, 1
      %p325 = scmp.eq.s32.totalorder %s49, 3
      %p326 = scmp.ne.s32.totalorder %s321, %s323
      %p327 = scmp.eq.s32.totalorder %s49, 0
      %p328 = por %p326, %p327
      %p329 = scmp.ne.s32.totalorder %s321, %s323
      %p330 = scmp.eq.s32.totalorder %s54, 3
      %p331 = por %p329, %p330
      %p332 = scmp.ne.s32.totalorder %s323, %s324
      %p333 = scmp.eq.s32.totalorder %s54, 0
      %p334 = por %p332, %p333
      %p335 = scmp.ne.s32.totalorder %s323, %s324
      %p336 = scmp.eq.s32.totalorder %s55, 3
      %p337 = por %p335, %p336
      %p339 = scmp.ne.s32.totalorder %s324, %s338
      %p340 = scmp.eq.s32.totalorder %s55, 0
      %p341 = por %p339, %p340
      %s343 = sadd.s32 %s342, 1
      %p346 = scmp.eq.s32.totalorder %s49, 3
      %p347 = scmp.ne.s32.totalorder %s342, %s344
      %p348 = scmp.eq.s32.totalorder %s49, 0
      %p349 = por %p347, %p348
      %p350 = scmp.ne.s32.totalorder %s342, %s344
      %p351 = scmp.eq.s32.totalorder %s54, 3
      %p352 = por %p350, %p351
      %p353 = scmp.ne.s32.totalorder %s344, %s345
      %p354 = scmp.eq.s32.totalorder %s54, 0
      %p355 = por %p353, %p354
      %p356 = scmp.ne.s32.totalorder %s344, %s345
      %p357 = scmp.eq.s32.totalorder %s55, 3
      %p358 = por %p356, %p357
      %p360 = scmp.ne.s32.totalorder %s345, %s359
      %p361 = scmp.eq.s32.totalorder %s55, 0
      %p362 = por %p360, %p361
      %s364 = sadd.s32 %s363, 1
      %p367 = scmp.eq.s32.totalorder %s49, 3
      %p368 = scmp.ne.s32.totalorder %s363, %s365
      %p369 = scmp.eq.s32.totalorder %s49, 0
      %p370 = por %p368, %p369
      %p371 = scmp.ne.s32.totalorder %s363, %s365
      %p372 = scmp.eq.s32.totalorder %s54, 3
      %p373 = por %p371, %p372
      %p374 = scmp.ne.s32.totalorder %s365, %s366
      %p375 = scmp.eq.s32.totalorder %s54, 0
      %p376 = por %p374, %p375
      %p377 = scmp.ne.s32.totalorder %s365, %s366
      %p378 = scmp.eq.s32.totalorder %s55, 3
      %p379 = por %p377, %p378
      %p381 = scmp.ne.s32.totalorder %s366, %s380
      %p382 = scmp.eq.s32.totalorder %s55, 0
      %p383 = por %p381, %p382
      %s385 = sadd.s32 %s384, 1
      %p388 = scmp.eq.s32.totalorder %s49, 3
      %p389 = scmp.ne.s32.totalorder %s384, %s386
      %p390 = scmp.eq.s32.totalorder %s49, 0
      %p391 = por %p389, %p390
      %p392 = scmp.ne.s32.totalorder %s384, %s386
      %p393 = scmp.eq.s32.totalorder %s54, 3
      %p394 = por %p392, %p393
      %p395 = scmp.ne.s32.totalorder %s386, %s387
      %p396 = scmp.eq.s32.totalorder %s54, 0
      %p397 = por %p395, %p396
      %p398 = scmp.ne.s32.totalorder %s386, %s387
      %p399 = scmp.eq.s32.totalorder %s55, 3
      %p400 = por %p398, %p399
      %p402 = scmp.ne.s32.totalorder %s387, %s401
      %p403 = scmp.eq.s32.totalorder %s55, 0
      %p404 = por %p402, %p403
      %s406 = sadd.s32 %s405, 1
      %p409 = scmp.eq.s32.totalorder %s49, 3
      %p410 = scmp.ne.s32.totalorder %s405, %s407
      %p411 = scmp.eq.s32.totalorder %s49, 0
      %p412 = por %p410, %p411
      %p413 = scmp.ne.s32.totalorder %s405, %s407
      %p414 = scmp.eq.s32.totalorder %s54, 3
      %p415 = por %p413, %p414
      %p416 = scmp.ne.s32.totalorder %s407, %s408
      %p417 = scmp.eq.s32.totalorder %s54, 0
      %p418 = por %p416, %p417
      %p419 = scmp.ne.s32.totalorder %s407, %s408
      %p420 = scmp.eq.s32.totalorder %s55, 3
      %p421 = por %p419, %p420
      %p423 = scmp.ne.s32.totalorder %s408, %s422
      %p424 = scmp.eq.s32.totalorder %s55, 0
      %p425 = por %p423, %p424
      %s427 = sadd.s32 %s426, 1
      %p430 = scmp.eq.s32.totalorder %s49, 3
      %p431 = scmp.ne.s32.totalorder %s426, %s428
      %p432 = scmp.eq.s32.totalorder %s49, 0
      %p433 = por %p431, %p432
      %p434 = scmp.ne.s32.totalorder %s426, %s428
      %p435 = scmp.eq.s32.totalorder %s54, 3
      %p436 = por %p434, %p435
      %p437 = scmp.ne.s32.totalorder %s428, %s429
      %p438 = scmp.eq.s32.totalorder %s54, 0
      %p439 = por %p437, %p438
      %p440 = scmp.ne.s32.totalorder %s428, %s429
      %p441 = scmp.eq.s32.totalorder %s55, 3
      %p442 = por %p440, %p441
      %p444 = scmp.ne.s32.totalorder %s429, %s443
      %p445 = scmp.eq.s32.totalorder %s55, 0
      %p446 = por %p444, %p445
      %s448 = sadd.s32 %s447, 1
      %p451 = scmp.eq.s32.totalorder %s49, 3
      %p452 = scmp.ne.s32.totalorder %s447, %s449
      %p453 = scmp.eq.s32.totalorder %s49, 0
      %p454 = por %p452, %p453
      %p455 = scmp.ne.s32.totalorder %s447, %s449
      %p456 = scmp.eq.s32.totalorder %s54, 3
      %p457 = por %p455, %p456
      %p458 = scmp.ne.s32.totalorder %s449, %s450
      %p459 = scmp.eq.s32.totalorder %s54, 0
      %p460 = por %p458, %p459
      %p461 = scmp.ne.s32.totalorder %s449, %s450
      %p462 = scmp.eq.s32.totalorder %s55, 3
      %p463 = por %p461, %p462
      %p465 = scmp.ne.s32.totalorder %s450, %s464
      %p466 = scmp.eq.s32.totalorder %s55, 0
      %p467 = por %p465, %p466
      %s469 = sadd.s32 %s468, 1
      %p472 = scmp.eq.s32.totalorder %s49, 3
      %p473 = scmp.ne.s32.totalorder %s468, %s470
      %p474 = scmp.eq.s32.totalorder %s49, 0
      %p475 = por %p473, %p474
      %p476 = scmp.ne.s32.totalorder %s468, %s470
      %p477 = scmp.eq.s32.totalorder %s54, 3
      %p478 = por %p476, %p477
      %p479 = scmp.ne.s32.totalorder %s470, %s471
      %p480 = scmp.eq.s32.totalorder %s54, 0
      %p481 = por %p479, %p480
      %p482 = scmp.ne.s32.totalorder %s470, %s471
      %p483 = scmp.eq.s32.totalorder %s55, 3
      %p484 = por %p482, %p483
      %p486 = scmp.ne.s32.totalorder %s471, %s485
      %p487 = scmp.eq.s32.totalorder %s55, 0
      %p488 = por %p486, %p487
      %s490 = sadd.s32 %s489, 1
      %p493 = scmp.eq.s32.totalorder %s49, 3
      %p494 = scmp.ne.s32.totalorder %s489, %s491
      %p495 = scmp.eq.s32.totalorder %s49, 0
      %p496 = por %p494, %p495
      %p497 = scmp.ne.s32.totalorder %s489, %s491
      %p498 = scmp.eq.s32.totalorder %s54, 3
      %p499 = por %p497, %p498
      %p500 = scmp.ne.s32.totalorder %s491, %s492
      %p501 = scmp.eq.s32.totalorder %s54, 0
      %p502 = por %p500, %p501
      %p503 = scmp.ne.s32.totalorder %s491, %s492
      %p504 = scmp.eq.s32.totalorder %s55, 3
      %p505 = por %p503, %p504
      %p507 = scmp.ne.s32.totalorder %s492, %s506
      %p508 = scmp.eq.s32.totalorder %s55, 0
      %p509 = por %p507, %p508
      %s511 = sadd.s32 %s510, 1
      %p514 = scmp.eq.s32.totalorder %s49, 3
      %p515 = scmp.ne.s32.totalorder %s510, %s512
      %p516 = scmp.eq.s32.totalorder %s49, 0
      %p517 = por %p515, %p516
      %p518 = scmp.ne.s32.totalorder %s510, %s512
      %p519 = scmp.eq.s32.totalorder %s54, 3
      %p520 = por %p518, %p519
      %p521 = scmp.ne.s32.totalorder %s512, %s513
      %p522 = scmp.eq.s32.totalorder %s54, 0
      %p523 = por %p521, %p522
      %p524 = scmp.ne.s32.totalorder %s512, %s513
      %p525 = scmp.eq.s32.totalorder %s55, 3
      %p526 = por %p524, %p525
      %p528 = scmp.ne.s32.totalorder %s513, %s527
      %p529 = scmp.eq.s32.totalorder %s55, 0
      %p530 = por %p528, %p529
      %s532 = sadd.s32 %s531, 1
      %p535 = scmp.eq.s32.totalorder %s49, 3
      %p536 = scmp.ne.s32.totalorder %s531, %s533
      %p537 = scmp.eq.s32.totalorder %s49, 0
      %p538 = por %p536, %p537
      %p539 = scmp.ne.s32.totalorder %s531, %s533
      %p540 = scmp.eq.s32.totalorder %s54, 3
      %p541 = por %p539, %p540
      %p542 = scmp.ne.s32.totalorder %s533, %s534
      %p543 = scmp.eq.s32.totalorder %s54, 0
      %p544 = por %p542, %p543
      %p545 = scmp.ne.s32.totalorder %s533, %s534
      %p546 = scmp.eq.s32.totalorder %s55, 3
      %p547 = por %p545, %p546
      %p549 = scmp.ne.s32.totalorder %s534, %s548
      %p550 = scmp.eq.s32.totalorder %s55, 0
      %p551 = por %p549, %p550
      %s553 = sadd.s32 %s552, 1
      %p556 = scmp.eq.s32.totalorder %s49, 3
      %p557 = scmp.ne.s32.totalorder %s552, %s554
      %p558 = scmp.eq.s32.totalorder %s49, 0
      %p559 = por %p557, %p558
      %p560 = scmp.ne.s32.totalorder %s552, %s554
      %p561 = scmp.eq.s32.totalorder %s54, 3
      %p562 = por %p560, %p561
      %p563 = scmp.ne.s32.totalorder %s554, %s555
      %p564 = scmp.eq.s32.totalorder %s54, 0
      %p565 = por %p563, %p564
      %p566 = scmp.ne.s32.totalorder %s554, %s555
      %p567 = scmp.eq.s32.totalorder %s55, 3
      %p568 = por %p566, %p567
      %p570 = scmp.ne.s32.totalorder %s555, %s569
      %p571 = scmp.eq.s32.totalorder %s55, 0
      %p572 = por %p570, %p571
      %s573 = smul.u32 %s58, %s57
      %s574 = smul.u32 %s67, %s71
      %s575 = ssub.s32 %s56, %s75
      %s576 = ssub.s32 %s573, %s574
      %s577 = sor.u32 %s575, %s576
      %p578 = scmp.eq.s32.totalorder %s577, 0
      %s580 = sadd.s32 %s579, 1
      %s581 = scalar_select %p578, %s579, %s580
      %p584 = pneg %p578
      %p585 = scmp.eq.s32.totalorder %s49, 3
      %p586 = por %p584, %p585
      %p587 = scmp.ne.s32.totalorder %s579, %s582
      %p588 = scmp.eq.s32.totalorder %s49, 0
      %p589 = por %p587, %p588
      %p590 = scmp.ne.s32.totalorder %s579, %s582
      %p591 = scmp.eq.s32.totalorder %s54, 3
      %p592 = por %p590, %p591
      %p593 = scmp.ne.s32.totalorder %s582, %s583
      %p594 = scmp.eq.s32.totalorder %s54, 0
      %p595 = por %p593, %p594
      %p596 = scmp.ne.s32.totalorder %s582, %s583
      %p597 = scmp.eq.s32.totalorder %s55, 3
      %p598 = por %p596, %p597
      %p600 = scmp.ne.s32.totalorder %s583, %s599
      %p601 = scmp.eq.s32.totalorder %s55, 0
      %p602 = por %p600, %p601
      %s603 = smul.u32 %s58, %s57
      %s604 = smul.u32 %s67, %s71
      %s605 = ssub.s32 %s56, %s75
      %s606 = ssub.s32 %s603, %s604
      %s607 = sor.u32 %s605, %s606
      %p608 = scmp.eq.s32.totalorder %s607, 0
      %s610 = sadd.s32 %s609, 1
      %s611 = scalar_select %p608, %s609, %s610
      %p614 = pneg %p608
      %p615 = scmp.eq.s32.totalorder %s49, 3
      %p616 = por %p614, %p615
      %p617 = scmp.ne.s32.totalorder %s609, %s612
      %p618 = scmp.eq.s32.totalorder %s49, 0
      %p619 = por %p617, %p618
      %p620 = scmp.ne.s32.totalorder %s609, %s612
      %p621 = scmp.eq.s32.totalorder %s54, 3
      %p622 = por %p620, %p621
      %p623 = scmp.ne.s32.totalorder %s612, %s613
      %p624 = scmp.eq.s32.totalorder %s54, 0
      %p625 = por %p623, %p624
      %p626 = scmp.ne.s32.totalorder %s612, %s613
      %p627 = scmp.eq.s32.totalorder %s55, 3
      %p628 = por %p626, %p627
      %p630 = scmp.ne.s32.totalorder %s613, %s629
      %p631 = scmp.eq.s32.totalorder %s55, 0
      %p632 = por %p630, %p631
      %p633 = scmp.le.s32.totalorder 1, %s49
      %p634 = scmp.lt.s32.totalorder %s49, 5
      %p635 = pnand %p633, %p634
      %p636 = pneg %p635
      // Predicated region
      $region9: #{tpu_custom_call.1} parent=5 // pred_check
        _
      $region10: #{tpu_custom_call.1} parent=5 // pred_check_branch
        %638 = sbr.rel (%p635) target = $region12
      $region11: #{tpu_custom_call.1} parent=5 // pred_region
        %s639 = ssub.s32 %s49, 1
        // Predicated region
        $region13: #{tpu_custom_call.1} parent=11 // pred_check
          %p640 = pneg %p145
        $region14: #{tpu_custom_call.1} parent=11 // pred_check_branch
          %642 = sbr.rel (%p640) target = $region16
        $region15: #{tpu_custom_call.1} parent=11 // pred_region
          %s644 = ssub.s32 256, 256
          %645 = vsyncadd [#allocation10], %s644
          %s646 = sshll.u32 [#allocation11], 4
          %s647 = int_to_ptr.vmem [resolvable:$true] %s646
          %652 = dma.hbm_to_vmem [thread:$0]  %s2, 256, %s647, [#allocation10], 64, 64, 4
        $region16: #{tpu_custom_call.1} parent=11 // pred_fallthru
          _
        // Predicated region
        $region17: #{tpu_custom_call.1} parent=11 // pred_check
          %p653 = pneg %p166
        $region18: #{tpu_custom_call.1} parent=11 // pred_check_branch
          %655 = sbr.rel (%p653) target = $region20
        $region19: #{tpu_custom_call.1} parent=11 // pred_region
          %s657 = ssub.s32 256, 256
          %658 = vsyncadd [#allocation13], %s657
          %s659 = sshll.u32 [#allocation12], 4
          %s660 = int_to_ptr.vmem [resolvable:$true] %s659
          %665 = dma.hbm_to_vmem [thread:$0]  %s3, 256, %s660, [#allocation13], 64, 64, 4
        $region20: #{tpu_custom_call.1} parent=11 // pred_fallthru
          _
        // Predicated region
        $region21: #{tpu_custom_call.1} parent=11 // pred_check
          %p666 = pneg %p187
        $region22: #{tpu_custom_call.1} parent=11 // pred_check_branch
          %668 = sbr.rel (%p666) target = $region24
        $region23: #{tpu_custom_call.1} parent=11 // pred_region
          _
        $region24: #{tpu_custom_call.1} parent=11 // pred_fallthru
          _
        // Predicated region
        $region25: #{tpu_custom_call.1} parent=11 // pred_check
          %p669 = pneg %p208
        $region26: #{tpu_custom_call.1} parent=11 // pred_check_branch
          %671 = sbr.rel (%p669) target = $region28
        $region27: #{tpu_custom_call.1} parent=11 // pred_region
          _
        $region28: #{tpu_custom_call.1} parent=11 // pred_fallthru
          _
        // Predicated region
        $region29: #{tpu_custom_call.1} parent=11 // pred_check
          %p672 = pneg %p229
        $region30: #{tpu_custom_call.1} parent=11 // pred_check_branch
          %674 = sbr.rel (%p672) target = $region32
        $region31: #{tpu_custom_call.1} parent=11 // pred_region
          %s676 = ssub.s32 256, 256
          %677 = vsyncadd [#allocation13], %s676
          %s678 = sshll.u32 [#allocation14], 4
          %s679 = int_to_ptr.vmem [resolvable:$true] %s678
          %684 = dma.hbm_to_vmem [thread:$0]  %s6, 256, %s679, [#allocation13], 64, 64, 4
        $region32: #{tpu_custom_call.1} parent=11 // pred_fallthru
          _
        // Predicated region
        $region33: #{tpu_custom_call.1} parent=11 // pred_check
          %p685 = pneg %p250
        $region34: #{tpu_custom_call.1} parent=11 // pred_check_branch
          %687 = sbr.rel (%p685) target = $region36
        $region35: #{tpu_custom_call.1} parent=11 // pred_region
          %s689 = ssub.s32 256, 256
          %690 = vsyncadd [#allocation16], %s689
          %s691 = sshll.u32 [#allocation15], 4
          %s692 = int_to_ptr.vmem [resolvable:$true] %s691
          %697 = dma.hbm_to_vmem [thread:$0]  %s7, 256, %s692, [#allocation16], 64, 64, 4
        $region36: #{tpu_custom_call.1} parent=11 // pred_fallthru
          _
        // Predicated region
        $region37: #{tpu_custom_call.1} parent=11 // pred_check
          %p698 = pneg %p271
        $region38: #{tpu_custom_call.1} parent=11 // pred_check_branch
          %700 = sbr.rel (%p698) target = $region40
        $region39: #{tpu_custom_call.1} parent=11 // pred_region
          _
        $region40: #{tpu_custom_call.1} parent=11 // pred_fallthru
          _
        // Predicated region
        $region41: #{tpu_custom_call.1} parent=11 // pred_check
          %p701 = pneg %p292
        $region42: #{tpu_custom_call.1} parent=11 // pred_check_branch
          %703 = sbr.rel (%p701) target = $region44
        $region43: #{tpu_custom_call.1} parent=11 // pred_region
          _
        $region44: #{tpu_custom_call.1} parent=11 // pred_fallthru
          _
        // Predicated region
        $region45: #{tpu_custom_call.1} parent=11 // pred_check
          %p704 = pneg %p313
        $region46: #{tpu_custom_call.1} parent=11 // pred_check_branch
          %706 = sbr.rel (%p704) target = $region48
        $region47: #{tpu_custom_call.1} parent=11 // pred_region
          %s708 = ssub.s32 256, 256
          %709 = vsyncadd [#allocation16], %s708
          %s710 = sshll.u32 [#allocation17], 4
          %s711 = int_to_ptr.vmem [resolvable:$true] %s710
          %716 = dma.hbm_to_vmem [thread:$0]  %s10, 256, %s711, [#allocation16], 64, 64, 4
        $region48: #{tpu_custom_call.1} parent=11 // pred_fallthru
          _
        // Predicated region
        $region49: #{tpu_custom_call.1} parent=11 // pred_check
          %p717 = pneg %p334
        $region50: #{tpu_custom_call.1} parent=11 // pred_check_branch
          %719 = sbr.rel (%p717) target = $region52
        $region51: #{tpu_custom_call.1} parent=11 // pred_region
          %s721 = ssub.s32 256, 256
          %722 = vsyncadd [#allocation19], %s721
          %s723 = sshll.u32 [#allocation18], 4
          %s724 = int_to_ptr.vmem [resolvable:$true] %s723
          %729 = dma.hbm_to_vmem [thread:$0]  %s11, 256, %s724, [#allocation19], 64, 64, 4
        $region52: #{tpu_custom_call.1} parent=11 // pred_fallthru
          _
        // Predicated region
        $region53: #{tpu_custom_call.1} parent=11 // pred_check
          %p730 = pneg %p355
        $region54: #{tpu_custom_call.1} parent=11 // pred_check_branch
          %732 = sbr.rel (%p730) target = $region56
        $region55: #{tpu_custom_call.1} parent=11 // pred_region
          %s734 = ssub.s32 256, 256
          %735 = vsyncadd [#allocation19], %s734
          %s736 = sshll.u32 [#allocation20], 4
          %s737 = int_to_ptr.vmem [resolvable:$true] %s736
          %742 = dma.hbm_to_vmem [thread:$0]  %s12, 256, %s737, [#allocation19], 64, 64, 4
        $region56: #{tpu_custom_call.1} parent=11 // pred_fallthru
          _
        // Predicated region
        $region57: #{tpu_custom_call.1} parent=11 // pred_check
          %p743 = pneg %p376
        $region58: #{tpu_custom_call.1} parent=11 // pred_check_branch
          %745 = sbr.rel (%p743) target = $region60
        $region59: #{tpu_custom_call.1} parent=11 // pred_region
          %s747 = ssub.s32 256, 256
          %748 = vsyncadd [#allocation22], %s747
          %s749 = sshll.u32 [#allocation21], 4
          %s750 = int_to_ptr.vmem [resolvable:$true] %s749
          %755 = dma.hbm_to_vmem [thread:$0]  %s13, 256, %s750, [#allocation22], 64, 64, 4
        $region60: #{tpu_custom_call.1} parent=11 // pred_fallthru
          _
        // Predicated region
        $region61: #{tpu_custom_call.1} parent=11 // pred_check
          %p756 = pneg %p397
        $region62: #{tpu_custom_call.1} parent=11 // pred_check_branch
          %758 = sbr.rel (%p756) target = $region64
        $region63: #{tpu_custom_call.1} parent=11 // pred_region
          _
        $region64: #{tpu_custom_call.1} parent=11 // pred_fallthru
          _
        // Predicated region
        $region65: #{tpu_custom_call.1} parent=11 // pred_check
          %p759 = pneg %p418
        $region66: #{tpu_custom_call.1} parent=11 // pred_check_branch
          %761 = sbr.rel (%p759) target = $region68
        $region67: #{tpu_custom_call.1} parent=11 // pred_region
          %s763 = ssub.s32 256, 256
          %764 = vsyncadd [#allocation22], %s763
          %s765 = sshll.u32 [#allocation23], 4
          %s766 = int_to_ptr.vmem [resolvable:$true] %s765
          %771 = dma.hbm_to_vmem [thread:$0]  %s15, 256, %s766, [#allocation22], 64, 64, 4
        $region68: #{tpu_custom_call.1} parent=11 // pred_fallthru
          _
        // Predicated region
        $region69: #{tpu_custom_call.1} parent=11 // pred_check
          %p772 = pneg %p439
        $region70: #{tpu_custom_call.1} parent=11 // pred_check_branch
          %774 = sbr.rel (%p772) target = $region72
        $region71: #{tpu_custom_call.1} parent=11 // pred_region
          %s776 = ssub.s32 256, 256
          %777 = vsyncadd [#allocation25], %s776
          %s778 = sshll.u32 [#allocation24], 4
          %s779 = int_to_ptr.vmem [resolvable:$true] %s778
          %784 = dma.hbm_to_vmem [thread:$0]  %s16, 256, %s779, [#allocation25], 64, 64, 4
        $region72: #{tpu_custom_call.1} parent=11 // pred_fallthru
          _
        // Predicated region
        $region73: #{tpu_custom_call.1} parent=11 // pred_check
          %p785 = pneg %p460
        $region74: #{tpu_custom_call.1} parent=11 // pred_check_branch
          %787 = sbr.rel (%p785) target = $region76
        $region75: #{tpu_custom_call.1} parent=11 // pred_region
          _
        $region76: #{tpu_custom_call.1} parent=11 // pred_fallthru
          _
        // Predicated region
        $region77: #{tpu_custom_call.1} parent=11 // pred_check
          %p788 = pneg %p481
        $region78: #{tpu_custom_call.1} parent=11 // pred_check_branch
          %790 = sbr.rel (%p788) target = $region80
        $region79: #{tpu_custom_call.1} parent=11 // pred_region
          _
        $region80: #{tpu_custom_call.1} parent=11 // pred_fallthru
          _
        // Predicated region
        $region81: #{tpu_custom_call.1} parent=11 // pred_check
          %p791 = pneg %p502
        $region82: #{tpu_custom_call.1} parent=11 // pred_check_branch
          %793 = sbr.rel (%p791) target = $region84
        $region83: #{tpu_custom_call.1} parent=11 // pred_region
          _
        $region84: #{tpu_custom_call.1} parent=11 // pred_fallthru
          _
        // Predicated region
        $region85: #{tpu_custom_call.1} parent=11 // pred_check
          %p794 = pneg %p523
        $region86: #{tpu_custom_call.1} parent=11 // pred_check_branch
          %796 = sbr.rel (%p794) target = $region88
        $region87: #{tpu_custom_call.1} parent=11 // pred_region
          %s798 = ssub.s32 16, 16
          %799 = vsyncadd [#allocation25], %s798
          %s801 = sshll.u32 [#allocation26], 4
          %s802 = int_to_ptr.vmem [resolvable:$true] %s801
          %804 = dma.hbm_to_vmem [thread:$0]  %s20, 16, %s802, [#allocation25]
        $region88: #{tpu_custom_call.1} parent=11 // pred_fallthru
          _
        // Predicated region
        $region89: #{tpu_custom_call.1} parent=11 // pred_check
          %p805 = pneg %p544
        $region90: #{tpu_custom_call.1} parent=11 // pred_check_branch
          %807 = sbr.rel (%p805) target = $region92
        $region91: #{tpu_custom_call.1} parent=11 // pred_region
          %s809 = ssub.s32 16, 16
          %810 = vsyncadd [#allocation28], %s809
          %s812 = sshll.u32 [#allocation27], 4
          %s813 = int_to_ptr.vmem [resolvable:$true] %s812
          %815 = dma.hbm_to_vmem [thread:$0]  %s21, 16, %s813, [#allocation28]
        $region92: #{tpu_custom_call.1} parent=11 // pred_fallthru
          _
        // Predicated region
        $region93: #{tpu_custom_call.1} parent=11 // pred_check
          %p816 = pneg %p565
        $region94: #{tpu_custom_call.1} parent=11 // pred_check_branch
          %818 = sbr.rel (%p816) target = $region96
        $region95: #{tpu_custom_call.1} parent=11 // pred_region
          _
        $region96: #{tpu_custom_call.1} parent=11 // pred_fallthru
          _
      $region12: #{tpu_custom_call.1} parent=5 // pred_fallthru
        _
      %p819 = scmp.lt.s32.totalorder %s49, 4
      // Predicated region
      $region97: #{tpu_custom_call.1} parent=5 // pred_check
        %p820 = pneg %p819
      $region98: #{tpu_custom_call.1} parent=5 // pred_check_branch
        %822 = sbr.rel (%p820) target = $region100
      $region99: #{tpu_custom_call.1} parent=5 // pred_region
        // Predicated region
        $region101: #{tpu_custom_call.1} parent=99 // pred_check
          %p823 = pneg %p90
        $region102: #{tpu_custom_call.1} parent=99 // pred_check_branch
          %825 = sbr.rel (%p823) target = $region104
        $region103: #{tpu_custom_call.1} parent=99 // pred_region
          %s826 = sand.u32 %s80, 1
          %s827 = scalar_lea.sflag [#allocation7], %s826
          %s828 = sand.u32 %s80, 1
          %s829 = smul.addr %s828, 8
          %s830 = scalar_lea.vmem [#allocation6], %s829
          %s832 = ssub.s32 128, 128
          %833 = vsyncadd %s827, %s832
          %s834 = sadd.s32 %s58, %s56
          %s835 = smul.addr %s834, 128
          %s836 = scalar_lea.hbm %s0, %s835
          %s838 = sshll.u32 %s830, 4
          %s839 = int_to_ptr.vmem [resolvable:$true] %s838
          %841 = dma.hbm_to_vmem [thread:$0]  %s836, 128, %s839, %s827
        $region104: #{tpu_custom_call.1} parent=99 // pred_fallthru
          _
        // Predicated region
        $region105: #{tpu_custom_call.1} parent=99 // pred_check
          %p842 = pneg %p118
        $region106: #{tpu_custom_call.1} parent=99 // pred_check_branch
          %844 = sbr.rel (%p842) target = $region108
        $region107: #{tpu_custom_call.1} parent=99 // pred_region
          %s845 = sand.u32 %s49, 1
          %s846 = scalar_lea.sflag [#allocation10], %s845
          %s847 = sand.u32 %s108, 1
          %s848 = smul.addr %s847, 8
          %s849 = scalar_lea.vmem [#allocation9], %s848
          %s851 = ssub.s32 128, 128
          %852 = vsyncadd %s846, %s851
          %s853 = sadd.s32 %s58, %s56
          %s854 = smul.addr %s853, 128
          %s855 = scalar_lea.hbm %s1, %s854
          %s857 = sshll.u32 %s849, 4
          %s858 = int_to_ptr.vmem [resolvable:$true] %s857
          %860 = dma.hbm_to_vmem [thread:$0]  %s855, 128, %s858, %s846
        $region108: #{tpu_custom_call.1} parent=99 // pred_fallthru
          _
      $region100: #{tpu_custom_call.1} parent=5 // pred_fallthru
        _
      %p861 = scmp.le.s32.totalorder 1, %s49
      %p862 = scmp.lt.s32.totalorder %s49, 5
      %p863 = pnand %p861, %p862
      %p864 = pneg %p863
      // Predicated region
      $region109: #{tpu_custom_call.1} parent=5 // pred_check
        _
      $region110: #{tpu_custom_call.1} parent=5 // pred_check_branch
        %866 = sbr.rel (%p863) target = $region112
      $region111: #{tpu_custom_call.1} parent=5 // pred_region
        %s867 = ssub.s32 %s49, 1
        %s868 = sand.u32 %s83, 1
        %s869 = scalar_lea.sflag [#allocation7], %s868
        %s870 = sand.u32 %s83, 1
        %s871 = smul.addr %s870, 8
        %s872 = scalar_lea.vmem [#allocation6], %s871
        // Predicated region
        $region113: #{tpu_custom_call.1} parent=111 // pred_check
          %p873 = pneg %p96
        $region114: #{tpu_custom_call.1} parent=111 // pred_check_branch
          %875 = sbr.rel (%p873) target = $region116
        $region115: #{tpu_custom_call.1} parent=111 // pred_region
          %876 = dma.done %s869, 128
        $region116: #{tpu_custom_call.1} parent=111 // pred_fallthru
          _
        %s877 = sand.u32 %s54, 1
        %s878 = scalar_lea.sflag [#allocation10], %s877
        %s879 = sand.u32 %s111, 1
        %s880 = smul.addr %s879, 8
        %s881 = scalar_lea.vmem [#allocation9], %s880
        // Predicated region
        $region117: #{tpu_custom_call.1} parent=111 // pred_check
          %p882 = pneg %p124
        $region118: #{tpu_custom_call.1} parent=111 // pred_check_branch
          %884 = sbr.rel (%p882) target = $region120
        $region119: #{tpu_custom_call.1} parent=111 // pred_region
          %885 = dma.done %s878, 128
        $region120: #{tpu_custom_call.1} parent=111 // pred_fallthru
          _
        // Predicated region
        $region121: #{tpu_custom_call.1} parent=111 // pred_check
          %p886 = pneg %p145
        $region122: #{tpu_custom_call.1} parent=111 // pred_check_branch
          %888 = sbr.rel (%p886) target = $region124
        $region123: #{tpu_custom_call.1} parent=111 // pred_region
          %889 = dma.done [#allocation10], 256
        $region124: #{tpu_custom_call.1} parent=111 // pred_fallthru
          _
        // Predicated region
        $region125: #{tpu_custom_call.1} parent=111 // pred_check
          %p890 = pneg %p166
        $region126: #{tpu_custom_call.1} parent=111 // pred_check_branch
          %892 = sbr.rel (%p890) target = $region128
        $region127: #{tpu_custom_call.1} parent=111 // pred_region
          %893 = dma.done [#allocation13], 256
        $region128: #{tpu_custom_call.1} parent=111 // pred_fallthru
          _
        // Predicated region
        $region129: #{tpu_custom_call.1} parent=111 // pred_check
          %p894 = pneg %p229
        $region130: #{tpu_custom_call.1} parent=111 // pred_check_branch
          %896 = sbr.rel (%p894) target = $region132
        $region131: #{tpu_custom_call.1} parent=111 // pred_region
          %897 = dma.done [#allocation13], 256
        $region132: #{tpu_custom_call.1} parent=111 // pred_fallthru
          _
        // Predicated region
        $region133: #{tpu_custom_call.1} parent=111 // pred_check
          %p898 = pneg %p250
        $region134: #{tpu_custom_call.1} parent=111 // pred_check_branch
          %900 = sbr.rel (%p898) target = $region136
        $region135: #{tpu_custom_call.1} parent=111 // pred_region
          %901 = dma.done [#allocation16], 256
        $region136: #{tpu_custom_call.1} parent=111 // pred_fallthru
          _
        // Predicated region
        $region137: #{tpu_custom_call.1} parent=111 // pred_check
          %p902 = pneg %p313
        $region138: #{tpu_custom_call.1} parent=111 // pred_check_branch
          %904 = sbr.rel (%p902) target = $region140
        $region139: #{tpu_custom_call.1} parent=111 // pred_region
          %905 = dma.done [#allocation16], 256
        $region140: #{tpu_custom_call.1} parent=111 // pred_fallthru
          _
        // Predicated region
        $region141: #{tpu_custom_call.1} parent=111 // pred_check
          %p906 = pneg %p334
        $region142: #{tpu_custom_call.1} parent=111 // pred_check_branch
          %908 = sbr.rel (%p906) target = $region144
        $region143: #{tpu_custom_call.1} parent=111 // pred_region
          %909 = dma.done [#allocation19], 256
        $region144: #{tpu_custom_call.1} parent=111 // pred_fallthru
          _
        // Predicated region
        $region145: #{tpu_custom_call.1} parent=111 // pred_check
          %p910 = pneg %p355
        $region146: #{tpu_custom_call.1} parent=111 // pred_check_branch
          %912 = sbr.rel (%p910) target = $region148
        $region147: #{tpu_custom_call.1} parent=111 // pred_region
          %913 = dma.done [#allocation19], 256
        $region148: #{tpu_custom_call.1} parent=111 // pred_fallthru
          _
        // Predicated region
        $region149: #{tpu_custom_call.1} parent=111 // pred_check
          %p914 = pneg %p376
        $region150: #{tpu_custom_call.1} parent=111 // pred_check_branch
          %916 = sbr.rel (%p914) target = $region152
        $region151: #{tpu_custom_call.1} parent=111 // pred_region
          %917 = dma.done [#allocation22], 256
        $region152: #{tpu_custom_call.1} parent=111 // pred_fallthru
          _
        // Predicated region
        $region153: #{tpu_custom_call.1} parent=111 // pred_check
          %p918 = pneg %p418
        $region154: #{tpu_custom_call.1} parent=111 // pred_check_branch
          %920 = sbr.rel (%p918) target = $region156
        $region155: #{tpu_custom_call.1} parent=111 // pred_region
          %921 = dma.done [#allocation22], 256
        $region156: #{tpu_custom_call.1} parent=111 // pred_fallthru
          _
        // Predicated region
        $region157: #{tpu_custom_call.1} parent=111 // pred_check
          %p922 = pneg %p439
        $region158: #{tpu_custom_call.1} parent=111 // pred_check_branch
          %924 = sbr.rel (%p922) target = $region160
        $region159: #{tpu_custom_call.1} parent=111 // pred_region
          %925 = dma.done [#allocation25], 256
        $region160: #{tpu_custom_call.1} parent=111 // pred_fallthru
          _
        // Predicated region
        $region161: #{tpu_custom_call.1} parent=111 // pred_check
          %p926 = pneg %p523
        $region162: #{tpu_custom_call.1} parent=111 // pred_check_branch
          %928 = sbr.rel (%p926) target = $region164
        $region163: #{tpu_custom_call.1} parent=111 // pred_region
          %929 = dma.done [#allocation25], 16
        $region164: #{tpu_custom_call.1} parent=111 // pred_fallthru
          _
        // Predicated region
        $region165: #{tpu_custom_call.1} parent=111 // pred_check
          %p930 = pneg %p544
        $region166: #{tpu_custom_call.1} parent=111 // pred_check_branch
          %932 = sbr.rel (%p930) target = $region168
        $region167: #{tpu_custom_call.1} parent=111 // pred_region
          %933 = dma.done [#allocation28], 16
        $region168: #{tpu_custom_call.1} parent=111 // pred_fallthru
          _
        %s934 = sand.u32 %s83, 1
        %s935 = scalar_lea.sflag [#allocation7], %s934
        %s936 = sand.u32 %s83, 1
        %s937 = smul.addr %s936, 8
        %s938 = scalar_lea.vmem [#allocation6], %s937
        %p939 = pneg %p96
        %p940 = pneg %p93
        %s941 = sand.u32 %s54, 1
        %s942 = scalar_lea.sflag [#allocation10], %s941
        %s943 = sand.u32 %s111, 1
        %s944 = smul.addr %s943, 8
        %s945 = scalar_lea.vmem [#allocation9], %s944
        %p946 = pneg %p124
        %p947 = pneg %p121
        %p948 = pneg %p145
        %p949 = pneg %p142
        %p950 = pneg %p166
        %p951 = pneg %p163
        %p952 = pneg %p187
        %p953 = pneg %p184
        %p954 = pneg %p208
        %p955 = pneg %p205
        %p956 = pneg %p229
        %p957 = pneg %p226
        %p958 = pneg %p250
        %p959 = pneg %p247
        %p960 = pneg %p271
        %p961 = pneg %p268
        %p962 = pneg %p292
        %p963 = pneg %p289
        %p964 = pneg %p313
        %p965 = pneg %p310
        %p966 = pneg %p334
        %p967 = pneg %p331
        %p968 = pneg %p355
        %p969 = pneg %p352
        %p970 = pneg %p376
        %p971 = pneg %p373
        %p972 = pneg %p397
        %p973 = pneg %p394
        %p974 = pneg %p418
        %p975 = pneg %p415
        %p976 = pneg %p439
        %p977 = pneg %p436
        %p978 = pneg %p460
        %p979 = pneg %p457
        %p980 = pneg %p481
        %p981 = pneg %p478
        %p982 = pneg %p502
        %p983 = pneg %p499
        %p984 = pneg %p523
        %p985 = pneg %p520
        %p986 = pneg %p544
        %p987 = pneg %p541
        %p988 = pneg %p565
        %p989 = pneg %p562
        %p990 = pneg %p595
        %p991 = pneg %p592
        %s992 = sand.u32 %s582, 1
        %s993 = scalar_lea.sflag [#allocation8], %s992
        %s994 = sand.u32 %s582, 1
        %s995 = smul.addr %s994, 8
        %s996 = scalar_lea.vmem [#allocation29], %s995
        %p997 = pneg %p625
        %p998 = pneg %p622
        %s999 = sand.u32 %s612, 1
        %s1000 = scalar_lea.sflag [#allocation31], %s999
        %s1001 = sand.u32 %s612, 1
        %s1002 = smul.addr %s1001, 8
        %s1003 = scalar_lea.vmem [#allocation30], %s1002
        %s1004 = smul.u32 %s61, %s60
        %s1005 = smul.u32 %s61, %s60
        %p1007 = scmp.eq.s32.totalorder %s60, 0
        // Predicated region
        $region169: #{tpu_custom_call.1} parent=111 // pred_check
          %p1008 = pneg %p1007
        $region170: #{tpu_custom_call.1} parent=111 // pred_check_branch
          %1010 = sbr.rel (%p1008) target = $region172
        $region171: #{tpu_custom_call.1} parent=111 // pred_region
          %p1011 = scmp.eq.s32.totalorder %s61, 0
          // Predicated region
          $region173: #{tpu_custom_call.1} parent=171 // pred_check
            %p1012 = pneg %p1011
          $region174: #{tpu_custom_call.1} parent=171 // pred_check_branch
            %1014 = sbr.rel (%p1012) target = $region176
          $region175: #{tpu_custom_call.1} parent=171 // pred_region
            %vm1015 = vcmask 261120
            %1016 = vst.msk [vmem:[#allocation2] sm:$0xff] %vm1015, 0.0
            %1017 = vst.msk [vmem:[#allocation2 + $0x8] sm:$0xff] %vm1015, 0.0
            %1018 = vst.msk [vmem:[#allocation2 + $0x10] sm:$0xff] %vm1015, 0.0
            %1019 = vst.msk [vmem:[#allocation2 + $0x18] sm:$0xff] %vm1015, 0.0
            %1020 = vst.msk [vmem:[#allocation3] sm:$0xff] %vm1015, 0.0
            %1021 = vst.msk [vmem:[#allocation3 + $0x8] sm:$0xff] %vm1015, 0.0
            %1022 = vst.msk [vmem:[#allocation3 + $0x10] sm:$0xff] %vm1015, 0.0
            %1023 = vst.msk [vmem:[#allocation3 + $0x18] sm:$0xff] %vm1015, 0.0
          $region176: #{tpu_custom_call.1} parent=171 // pred_fallthru
            _
          %v1024 = vld [vmem:[%s872] sm:$0xff]
          %v1025 = vpack.c.bf16 %v1024, %v1024
          %v1026 = vld [vmem:[%s881] sm:$0xff]
          %v1027 = vpack.c.bf16 %v1026, %v1026
          %v1028 = vld [vmem:[#allocation12] sm:$0xf]
          %v1029 = vld [vmem:[#allocation12 + $0x4] sm:$0xf]
          %v1030 = vld [vmem:[#allocation12 + $0x8] sm:$0xf]
          %v1031 = vld [vmem:[#allocation12 + $0xc] sm:$0xf]
          %v1032 = vld [vmem:[%s5] sm:$0x1]
          %v1034 = vlaneseq
          %v1035 = vshrl.u32 %v1034, 7
          %v1036 = vsub.s32 0, %v1035
          %v1037 = vrot.slane %v1032, %v1036
          %v1043 = vunpack.c.l.b16 %v1028
          %v1044 = vunpack.c.l.b16 %v1029
          %v1045 = vunpack.c.l.b16 %v1030
          %v1046 = vunpack.c.l.b16 %v1031
          %v1047 = vpack.c.b16 %v1044, %v1043
          %v1048 = vpack.c.b16 %v1046, %v1045
          %vm1051 = vcmask 261120
          %v1053 = vsel %vm1051, %v1025, 0
          %1055 = vmatprep.subr.bf16.mxu0 0
          %1056 = vmatpush1.bf16.msra.mxu0 0
          %1057 = vmatprep.subr.bf16.mxu0 0
          %1058 = vmatpush1.bf16.msra.mxu0 0
          %1059 = vmatprep.subr.bf16.mxu0 0
          %1060 = vmatpush1.bf16.msra.mxu0 0
          %1061 = vmatprep.subr.bf16.mxu0 0
          %1062 = vmatpush1.bf16.msra.mxu0 0
          %1063 = vmatprep.subr.bf16.mxu0 0
          %1064 = vmatpush1.bf16.msra.mxu0 0
          %1065 = vmatprep.subr.bf16.mxu0 0
          %1066 = vmatpush1.bf16.msra.mxu0 0
          %1067 = vmatprep.subr.bf16.mxu0 0
          %1068 = vmatpush1.bf16.msra.mxu0 %v1048
          %1069 = vmatprep.subr.bf16.mxu0 0
          %1070 = vmatpush1.bf16.msra.mxu0 %v1047
          %1071 = vmatprep.subr.bf16.mxu0 0
          %1072 = vmatpush2.bf16.msra.mxu0 0
          %1073 = vmatprep.subr.bf16.mxu0 0
          %1074 = vmatpush2.bf16.msra.mxu0 0
          %1075 = vmatprep.subr.bf16.mxu0 0
          %1076 = vmatpush2.bf16.msra.mxu0 0
          %1077 = vmatprep.subr.bf16.mxu0 0
          %1078 = vmatpush2.bf16.msra.mxu0 0
          %1079 = vmatprep.subr.bf16.mxu0 0
          %1080 = vmatpush2.bf16.msra.mxu0 0
          %1081 = vmatprep.subr.bf16.mxu0 0
          %1082 = vmatpush2.bf16.msra.mxu0 0
          %1083 = vmatprep.subr.bf16.mxu0 0
          %1084 = vmatpush2.bf16.msra.mxu0 0
          %1085 = vmatprep.subr.bf16.mxu0 0
          %1086 = vmatpush2.bf16.msra.mxu0 0
          %1087 = vmatprep.mubr.bf16.mxu0 0
          %1088 = vmatmul.mubr.bf16.gmra.mxu0 %v1053
          %v1089 = vpop.f32.mrf.mxu0
          %v1090 = vadd.f32 %v1037, %v1089
          %v1091 = vpop.f32.mrf.mxu0
          %v1092 = vpop.f32.mrf.mxu0
          %v1093 = vpop.f32.mrf.mxu0
          %1094 = vdwg.mxu0
          %v1095 = vmax.f32 %v1090, 0.0
          %v1096 = vld [vmem:[#allocation15] sm:$0xf]
          %v1097 = vld [vmem:[#allocation15 + $0x4] sm:$0xf]
          %v1098 = vld [vmem:[#allocation15 + $0x8] sm:$0xf]
          %v1099 = vld [vmem:[#allocation15 + $0xc] sm:$0xf]
          %v1100 = vld [vmem:[%s9] sm:$0x1]
          %v1102 = vlaneseq
          %v1103 = vshrl.u32 %v1102, 7
          %v1104 = vsub.s32 0, %v1103
          %v1105 = vrot.slane %v1100, %v1104
          %v1111 = vunpack.c.l.b16 %v1096
          %v1112 = vunpack.c.l.b16 %v1097
          %v1113 = vunpack.c.l.b16 %v1098
          %v1114 = vunpack.c.l.b16 %v1099
          %v1115 = vpack.c.b16 %v1112, %v1111
          %v1116 = vpack.c.b16 %v1114, %v1113
          %v1120 = vsel %vm1051, %v1027, 0
          %1122 = vmatprep.subr.bf16.mxu0 0
          %1123 = vmatpush1.bf16.msra.mxu0 0
          %1124 = vmatprep.subr.bf16.mxu0 0
          %1125 = vmatpush1.bf16.msra.mxu0 0
          %1126 = vmatprep.subr.bf16.mxu0 0
          %1127 = vmatpush1.bf16.msra.mxu0 0
          %1128 = vmatprep.subr.bf16.mxu0 0
          %1129 = vmatpush1.bf16.msra.mxu0 0
          %1130 = vmatprep.subr.bf16.mxu0 0
          %1131 = vmatpush1.bf16.msra.mxu0 0
          %1132 = vmatprep.subr.bf16.mxu0 0
          %1133 = vmatpush1.bf16.msra.mxu0 0
          %1134 = vmatprep.subr.bf16.mxu0 0
          %1135 = vmatpush1.bf16.msra.mxu0 %v1116
          %1136 = vmatprep.subr.bf16.mxu0 0
          %1137 = vmatpush1.bf16.msra.mxu0 %v1115
          %1138 = vmatprep.subr.bf16.mxu0 0
          %1139 = vmatpush2.bf16.msra.mxu0 0
          %1140 = vmatprep.subr.bf16.mxu0 0
          %1141 = vmatpush2.bf16.msra.mxu0 0
          %1142 = vmatprep.subr.bf16.mxu0 0
          %1143 = vmatpush2.bf16.msra.mxu0 0
          %1144 = vmatprep.subr.bf16.mxu0 0
          %1145 = vmatpush2.bf16.msra.mxu0 0
          %1146 = vmatprep.subr.bf16.mxu0 0
          %1147 = vmatpush2.bf16.msra.mxu0 0
          %1148 = vmatprep.subr.bf16.mxu0 0
          %1149 = vmatpush2.bf16.msra.mxu0 0
          %1150 = vmatprep.subr.bf16.mxu0 0
          %1151 = vmatpush2.bf16.msra.mxu0 0
          %1152 = vmatprep.subr.bf16.mxu0 0
          %1153 = vmatpush2.bf16.msra.mxu0 0
          %1154 = vmatprep.mubr.bf16.mxu0 0
          %1155 = vmatmul.mubr.bf16.gmra.mxu0 %v1120
          %v1156 = vpop.f32.mrf.mxu0
          %v1157 = vadd.f32 %v1105, %v1156
          %v1158 = vpop.f32.mrf.mxu0
          %v1159 = vpop.f32.mrf.mxu0
          %v1160 = vpop.f32.mrf.mxu0
          %1161 = vdwg.mxu0
          %v1162 = vmax.f32 %v1157, 0.0
          %v1163 = vpack.c.bf16 %v1095, %v1095
          %v1164 = vld [vmem:[#allocation17] sm:$0xf]
          %v1165 = vld [vmem:[#allocation17 + $0x4] sm:$0xf]
          %v1166 = vld [vmem:[#allocation17 + $0x8] sm:$0xf]
          %v1167 = vld [vmem:[#allocation17 + $0xc] sm:$0xf]
          %v1172 = vunpack.c.l.b16 %v1164
          %v1173 = vunpack.c.l.b16 %v1165
          %v1174 = vunpack.c.l.b16 %v1166
          %v1175 = vunpack.c.l.b16 %v1167
          %v1176 = vpack.c.b16 %v1173, %v1172
          %v1177 = vpack.c.b16 %v1175, %v1174
          %v1181 = vsel %vm1051, %v1163, 0
          %1183 = vmatprep.subr.bf16.mxu0 0
          %1184 = vmatpush1.bf16.msra.mxu0 0
          %1185 = vmatprep.subr.bf16.mxu0 0
          %1186 = vmatpush1.bf16.msra.mxu0 0
          %1187 = vmatprep.subr.bf16.mxu0 0
          %1188 = vmatpush1.bf16.msra.mxu0 0
          %1189 = vmatprep.subr.bf16.mxu0 0
          %1190 = vmatpush1.bf16.msra.mxu0 0
          %1191 = vmatprep.subr.bf16.mxu0 0
          %1192 = vmatpush1.bf16.msra.mxu0 0
          %1193 = vmatprep.subr.bf16.mxu0 0
          %1194 = vmatpush1.bf16.msra.mxu0 0
          %1195 = vmatprep.subr.bf16.mxu0 0
          %1196 = vmatpush1.bf16.msra.mxu0 %v1177
          %1197 = vmatprep.subr.bf16.mxu0 0
          %1198 = vmatpush1.bf16.msra.mxu0 %v1176
          %1199 = vmatprep.subr.bf16.mxu0 0
          %1200 = vmatpush2.bf16.msra.mxu0 0
          %1201 = vmatprep.subr.bf16.mxu0 0
          %1202 = vmatpush2.bf16.msra.mxu0 0
          %1203 = vmatprep.subr.bf16.mxu0 0
          %1204 = vmatpush2.bf16.msra.mxu0 0
          %1205 = vmatprep.subr.bf16.mxu0 0
          %1206 = vmatpush2.bf16.msra.mxu0 0
          %1207 = vmatprep.subr.bf16.mxu0 0
          %1208 = vmatpush2.bf16.msra.mxu0 0
          %1209 = vmatprep.subr.bf16.mxu0 0
          %1210 = vmatpush2.bf16.msra.mxu0 0
          %1211 = vmatprep.subr.bf16.mxu0 0
          %1212 = vmatpush2.bf16.msra.mxu0 0
          %1213 = vmatprep.subr.bf16.mxu0 0
          %1214 = vmatpush2.bf16.msra.mxu0 0
          %1215 = vmatprep.mubr.bf16.mxu0 0
          %1216 = vmatmul.mubr.bf16.gmra.mxu0 %v1181
          %v1217 = vpop.f32.mrf.mxu0
          %v1218 = vadd.f32 0.0, %v1217
          %v1219 = vpop.f32.mrf.mxu0
          %v1220 = vpop.f32.mrf.mxu0
          %v1221 = vpop.f32.mrf.mxu0
          %1222 = vdwg.mxu0
          %v1223 = vpack.c.bf16 %v1162, %v1162
          %v1224 = vld [vmem:[#allocation18] sm:$0xf]
          %v1225 = vld [vmem:[#allocation18 + $0x4] sm:$0xf]
          %v1226 = vld [vmem:[#allocation18 + $0x8] sm:$0xf]
          %v1227 = vld [vmem:[#allocation18 + $0xc] sm:$0xf]
          %v1232 = vunpack.c.l.b16 %v1224
          %v1233 = vunpack.c.l.b16 %v1225
          %v1234 = vunpack.c.l.b16 %v1226
          %v1235 = vunpack.c.l.b16 %v1227
          %v1236 = vpack.c.b16 %v1233, %v1232
          %v1237 = vpack.c.b16 %v1235, %v1234
          %v1241 = vsel %vm1051, %v1223, 0
          %1243 = vmatprep.subr.bf16.mxu0 0
          %1244 = vmatpush1.bf16.msra.mxu0 0
          %1245 = vmatprep.subr.bf16.mxu0 0
          %1246 = vmatpush1.bf16.msra.mxu0 0
          %1247 = vmatprep.subr.bf16.mxu0 0
          %1248 = vmatpush1.bf16.msra.mxu0 0
          %1249 = vmatprep.subr.bf16.mxu0 0
          %1250 = vmatpush1.bf16.msra.mxu0 0
          %1251 = vmatprep.subr.bf16.mxu0 0
          %1252 = vmatpush1.bf16.msra.mxu0 0
          %1253 = vmatprep.subr.bf16.mxu0 0
          %1254 = vmatpush1.bf16.msra.mxu0 0
          %1255 = vmatprep.subr.bf16.mxu0 0
          %1256 = vmatpush1.bf16.msra.mxu0 %v1237
          %1257 = vmatprep.subr.bf16.mxu0 0
          %1258 = vmatpush1.bf16.msra.mxu0 %v1236
          %1259 = vmatprep.subr.bf16.mxu0 0
          %1260 = vmatpush2.bf16.msra.mxu0 0
          %1261 = vmatprep.subr.bf16.mxu0 0
          %1262 = vmatpush2.bf16.msra.mxu0 0
          %1263 = vmatprep.subr.bf16.mxu0 0
          %1264 = vmatpush2.bf16.msra.mxu0 0
          %1265 = vmatprep.subr.bf16.mxu0 0
          %1266 = vmatpush2.bf16.msra.mxu0 0
          %1267 = vmatprep.subr.bf16.mxu0 0
          %1268 = vmatpush2.bf16.msra.mxu0 0
          %1269 = vmatprep.subr.bf16.mxu0 0
          %1270 = vmatpush2.bf16.msra.mxu0 0
          %1271 = vmatprep.subr.bf16.mxu0 0
          %1272 = vmatpush2.bf16.msra.mxu0 0
          %1273 = vmatprep.subr.bf16.mxu0 0
          %1274 = vmatpush2.bf16.msra.mxu0 0
          %1275 = vmatprep.mubr.bf16.mxu0 0
          %1276 = vmatmul.mubr.bf16.gmra.mxu0 %v1241
          %v1277 = vpop.f32.mrf.mxu0
          %v1278 = vadd.f32 0.0, %v1277
          %v1279 = vpop.f32.mrf.mxu0
          %v1280 = vpop.f32.mrf.mxu0
          %v1281 = vpop.f32.mrf.mxu0
          %1282 = vdwg.mxu0
          %v1283 = vpack.c.bf16 %v1218, %v1218
          %v1284 = vpack.c.bf16 %v1278, %v1278
          %v1285 = vld [vmem:[#allocation2] sm:$0xff]
          %v1286 = vld [vmem:[#allocation2 + $0x8] sm:$0xff]
          %v1287 = vld [vmem:[#allocation2 + $0x10] sm:$0xff]
          %v1288 = vld [vmem:[#allocation2 + $0x18] sm:$0xff]
          %1289 = vxpose.xlu0.c.b16.start [1/8] %v1283, 128
          %1290 = vxpose.xlu0.c.b16.cont [2/8] 0, 128
          %1291 = vxpose.xlu0.c.b16.cont [3/8] 0, 128
          %1292 = vxpose.xlu0.c.b16.cont [4/8] 0, 128
          %1293 = vxpose.xlu0.c.b16.cont [5/8] 0, 128
          %1294 = vxpose.xlu0.c.b16.cont [6/8] 0, 128
          %1295 = vxpose.xlu0.c.b16.cont [7/8] 0, 128
          %1296 = vxpose.xlu0.c.b16.end [8/8] 0, 128
          %v1297 = vpop.trf.xlu0
          %v1298 = vpop.trf.xlu0
          %v1299 = vpop.trf.xlu0
          %v1300 = vpop.trf.xlu0
          %v1301 = vpop.trf.xlu0
          %v1302 = vpop.trf.xlu0
          %v1303 = vpop.trf.xlu0
          %v1304 = vpop.trf.xlu0
          %1306 = vrot.lane.b32.xlu0 %v1283, 96
          %v1307 = vpop.permute.xlu0 %1306
          %vm1308 = vcmask 64512
          %v1310 = vsel %vm1308, %v1297, 0
          %v1313 = vsel %vm1308, %v1298, 0
          %vm1315 = vcmask 1043456
          %v1317 = vsel %vm1315, %v1307, 0
          %1319 = vmatprep.subr.bf16.mxu0 0
          %1320 = vmatpush1.bf16.msra.mxu0 0
          %1321 = vmatprep.subr.bf16.mxu0 0
          %1322 = vmatpush1.bf16.msra.mxu0 0
          %1323 = vmatprep.subr.bf16.mxu0 0
          %1324 = vmatpush1.bf16.msra.mxu0 0
          %1325 = vmatprep.subr.bf16.mxu0 0
          %1326 = vmatpush1.bf16.msra.mxu0 0
          %1327 = vmatprep.subr.bf16.mxu0 0
          %1328 = vmatpush1.bf16.msra.mxu0 0
          %1329 = vmatprep.subr.bf16.mxu0 0
          %1330 = vmatpush1.bf16.msra.mxu0 0
          %1331 = vmatprep.subr.bf16.mxu0 0
          %1332 = vmatpush1.bf16.msra.mxu0 0
          %1333 = vmatprep.subr.bf16.mxu0 0
          %1334 = vmatpush1.bf16.msra.mxu0 %v1317
          %1335 = vmatprep.subr.bf16.mxu0 0
          %1336 = vmatpush2.bf16.msra.mxu0 0
          %1337 = vmatprep.subr.bf16.mxu0 0
          %1338 = vmatpush2.bf16.msra.mxu0 0
          %1339 = vmatprep.subr.bf16.mxu0 0
          %1340 = vmatpush2.bf16.msra.mxu0 0
          %1341 = vmatprep.subr.bf16.mxu0 0
          %1342 = vmatpush2.bf16.msra.mxu0 0
          %1343 = vmatprep.subr.bf16.mxu0 0
          %1344 = vmatpush2.bf16.msra.mxu0 0
          %1345 = vmatprep.subr.bf16.mxu0 0
          %1346 = vmatpush2.bf16.msra.mxu0 0
          %1347 = vmatprep.subr.bf16.mxu0 0
          %1348 = vmatpush2.bf16.msra.mxu0 0
          %1349 = vmatprep.subr.bf16.mxu0 0
          %1350 = vmatpush2.bf16.msra.mxu0 0
          %1351 = vmatprep.mubr.bf16.mxu0 0
          %1352 = vmatmul.mubr.bf16.gmra.mxu0 %v1310
          %v1353 = vpop.f32.mrf.mxu0
          %v1354 = vadd.f32 0.0, %v1353
          %v1355 = vpop.f32.mrf.mxu0
          %v1356 = vpop.f32.mrf.mxu0
          %v1357 = vadd.f32 0.0, %v1356
          %v1358 = vpop.f32.mrf.mxu0
          %1359 = vmatprep.mubr.bf16.mxu0 0
          %1360 = vmatmul.mubr.bf16.gmra.mxu0 %v1313
          %v1361 = vpop.f32.mrf.mxu0
          %v1362 = vadd.f32 0.0, %v1361
          %v1363 = vpop.f32.mrf.mxu0
          %v1364 = vpop.f32.mrf.mxu0
          %v1365 = vadd.f32 0.0, %v1364
          %v1366 = vpop.f32.mrf.mxu0
          %1367 = vdwg.mxu0
          %v1368 = vadd.f32 %v1285, %v1354
          %v1369 = vadd.f32 %v1286, %v1357
          %v1370 = vadd.f32 %v1287, %v1362
          %v1371 = vadd.f32 %v1288, %v1365
          %1372 = vst.msk [vmem:[#allocation2] sm:$0xff] %vm1051, %v1368
          %1373 = vst.msk [vmem:[#allocation2 + $0x8] sm:$0xff] %vm1051, %v1369
          %1374 = vst.msk [vmem:[#allocation2 + $0x10] sm:$0xff] %vm1051, %v1370
          %1375 = vst.msk [vmem:[#allocation2 + $0x18] sm:$0xff] %vm1051, %v1371
          %v1376 = vld [vmem:[#allocation3] sm:$0xff]
          %v1377 = vld [vmem:[#allocation3 + $0x8] sm:$0xff]
          %v1378 = vld [vmem:[#allocation3 + $0x10] sm:$0xff]
          %v1379 = vld [vmem:[#allocation3 + $0x18] sm:$0xff]
          %1380 = vxpose.xlu0.c.b16.start [1/8] %v1284, 128
          %1381 = vxpose.xlu0.c.b16.cont [2/8] 0, 128
          %1382 = vxpose.xlu0.c.b16.cont [3/8] 0, 128
          %1383 = vxpose.xlu0.c.b16.cont [4/8] 0, 128
          %1384 = vxpose.xlu0.c.b16.cont [5/8] 0, 128
          %1385 = vxpose.xlu0.c.b16.cont [6/8] 0, 128
          %1386 = vxpose.xlu0.c.b16.cont [7/8] 0, 128
          %1387 = vxpose.xlu0.c.b16.end [8/8] 0, 128
          %v1388 = vpop.trf.xlu0
          %v1389 = vpop.trf.xlu0
          %v1390 = vpop.trf.xlu0
          %v1391 = vpop.trf.xlu0
          %v1392 = vpop.trf.xlu0
          %v1393 = vpop.trf.xlu0
          %v1394 = vpop.trf.xlu0
          %v1395 = vpop.trf.xlu0
          %1397 = vrot.lane.b32.xlu0 %v1284, 96
          %v1398 = vpop.permute.xlu0 %1397
          %v1400 = vsel %vm1308, %v1388, 0
          %v1403 = vsel %vm1308, %v1389, 0
          %v1406 = vsel %vm1315, %v1398, 0
          %1408 = vmatprep.subr.bf16.mxu0 0
          %1409 = vmatpush1.bf16.msra.mxu0 0
          %1410 = vmatprep.subr.bf16.mxu0 0
          %1411 = vmatpush1.bf16.msra.mxu0 0
          %1412 = vmatprep.subr.bf16.mxu0 0
          %1413 = vmatpush1.bf16.msra.mxu0 0
          %1414 = vmatprep.subr.bf16.mxu0 0
          %1415 = vmatpush1.bf16.msra.mxu0 0
          %1416 = vmatprep.subr.bf16.mxu0 0
          %1417 = vmatpush1.bf16.msra.mxu0 0
          %1418 = vmatprep.subr.bf16.mxu0 0
          %1419 = vmatpush1.bf16.msra.mxu0 0
          %1420 = vmatprep.subr.bf16.mxu0 0
          %1421 = vmatpush1.bf16.msra.mxu0 0
          %1422 = vmatprep.subr.bf16.mxu0 0
          %1423 = vmatpush1.bf16.msra.mxu0 %v1406
          %1424 = vmatprep.subr.bf16.mxu0 0
          %1425 = vmatpush2.bf16.msra.mxu0 0
          %1426 = vmatprep.subr.bf16.mxu0 0
          %1427 = vmatpush2.bf16.msra.mxu0 0
          %1428 = vmatprep.subr.bf16.mxu0 0
          %1429 = vmatpush2.bf16.msra.mxu0 0
          %1430 = vmatprep.subr.bf16.mxu0 0
          %1431 = vmatpush2.bf16.msra.mxu0 0
          %1432 = vmatprep.subr.bf16.mxu0 0
          %1433 = vmatpush2.bf16.msra.mxu0 0
          %1434 = vmatprep.subr.bf16.mxu0 0
          %1435 = vmatpush2.bf16.msra.mxu0 0
          %1436 = vmatprep.subr.bf16.mxu0 0
          %1437 = vmatpush2.bf16.msra.mxu0 0
          %1438 = vmatprep.subr.bf16.mxu0 0
          %1439 = vmatpush2.bf16.msra.mxu0 0
          %1440 = vmatprep.mubr.bf16.mxu0 0
          %1441 = vmatmul.mubr.bf16.gmra.mxu0 %v1400
          %v1442 = vpop.f32.mrf.mxu0
          %v1443 = vadd.f32 0.0, %v1442
          %v1444 = vpop.f32.mrf.mxu0
          %v1445 = vpop.f32.mrf.mxu0
          %v1446 = vadd.f32 0.0, %v1445
          %v1447 = vpop.f32.mrf.mxu0
          %1448 = vmatprep.mubr.bf16.mxu0 0
          %1449 = vmatmul.mubr.bf16.gmra.mxu0 %v1403
          %v1450 = vpop.f32.mrf.mxu0
          %v1451 = vadd.f32 0.0, %v1450
          %v1452 = vpop.f32.mrf.mxu0
          %v1453 = vpop.f32.mrf.mxu0
          %v1454 = vadd.f32 0.0, %v1453
          %v1455 = vpop.f32.mrf.mxu0
          %1456 = vdwg.mxu0
          %v1457 = vadd.f32 %v1376, %v1443
          %v1458 = vadd.f32 %v1377, %v1446
          %v1459 = vadd.f32 %v1378, %v1451
          %v1460 = vadd.f32 %v1379, %v1454
          %1461 = vst.msk [vmem:[#allocation3] sm:$0xff] %vm1051, %v1457
          %1462 = vst.msk [vmem:[#allocation3 + $0x8] sm:$0xff] %vm1051, %v1458
          %1463 = vst.msk [vmem:[#allocation3 + $0x10] sm:$0xff] %vm1051, %v1459
          %1464 = vst.msk [vmem:[#allocation3 + $0x18] sm:$0xff] %vm1051, %v1460
        $region172: #{tpu_custom_call.1} parent=111 // pred_fallthru
          _
        %p1465 = scmp.eq.s32.totalorder %s60, 1
        // Predicated region
        $region177: #{tpu_custom_call.1} parent=111 // pred_check
          %p1466 = pneg %p1465
        $region178: #{tpu_custom_call.1} parent=111 // pred_check_branch
          %1468 = sbr.rel (%p1466) target = $region180
        $region179: #{tpu_custom_call.1} parent=111 // pred_region
          %p1469 = scmp.eq.s32.totalorder %s61, 0
          // Predicated region
          $region181: #{tpu_custom_call.1} parent=179 // pred_check
            %p1470 = pneg %p1469
          $region182: #{tpu_custom_call.1} parent=179 // pred_check_branch
            %1472 = sbr.rel (%p1470) target = $region184
          $region183: #{tpu_custom_call.1} parent=179 // pred_region
            %v1473 = vld [vmem:[#allocation2] sm:$0xff]
            %v1474 = vld [vmem:[#allocation2 + $0x8] sm:$0xff]
            %v1475 = vld [vmem:[#allocation2 + $0x10] sm:$0xff]
            %v1476 = vld [vmem:[#allocation2 + $0x18] sm:$0xff]
            %v1477 = vmul.f32 %v1473, 0.35355338
            %v1478 = vmul.f32 %v1474, 0.35355338
            %v1479 = vmul.f32 %v1475, 0.35355338
            %v1480 = vmul.f32 %v1476, 0.35355338
            %v1481 = vld [vmem:[%s22] sm:$0xff]
            %v1482 = vld [vmem:[%s22 + $0x8] sm:$0xff]
            %v1483 = vld [vmem:[%s22 + $0x10] sm:$0xff]
            %v1484 = vld [vmem:[%s22 + $0x18] sm:$0xff]
            %v1485 = vadd.f32 %v1477, %v1481
            %v1486 = vadd.f32 %v1478, %v1482
            %v1487 = vadd.f32 %v1479, %v1483
            %v1488 = vadd.f32 %v1480, %v1484
            %vm1489 = vcmask 261120
            %v1490 = vsel %vm1489, %v1485, -inf
            %v1491 = vsel %vm1489, %v1486, -inf
            %v1492 = vsel %vm1489, %v1487, -inf
            %v1493 = vsel %vm1489, %v1488, -inf
            %v1494 = vmax.f32 %v1490, %v1491
            %v1495 = vmax.f32 %v1492, %v1493
            %v1496 = vmax.f32 %v1494, %v1495
            %v1497 = vrot.slane %v1496, 4
            %v1498 = vmax.f32 %v1496, %v1497
            %v1499 = vrot.slane %v1498, 2
            %v1500 = vmax.f32 %v1498, %v1499
            %v1501 = vrot.slane %v1500, 1
            %v1502 = vmax.f32 %v1500, %v1501
            %v1503 = vsub.f32 %v1485, %v1502
            %v1504 = vsub.f32 %v1486, %v1502
            %v1505 = vsub.f32 %v1487, %v1502
            %v1506 = vsub.f32 %v1488, %v1502
            %v1507 = vmul.f32 %v1503, 1.442695
            %v1508 = vpow.pop %v1507
            %v1509 = vmul.f32 %v1504, 1.442695
            %v1510 = vpow.pop %v1509
            %v1511 = vmul.f32 %v1505, 1.442695
            %v1512 = vpow.pop %v1511
            %v1513 = vmul.f32 %v1506, 1.442695
            %v1514 = vpow.pop %v1513
            %v1515 = vsel %vm1489, %v1508, 0.0
            %v1516 = vsel %vm1489, %v1510, 0.0
            %v1517 = vadd.f32 %v1515, %v1516
            %v1518 = vsel %vm1489, %v1512, 0.0
            %v1519 = vadd.f32 %v1517, %v1518
            %v1520 = vsel %vm1489, %v1514, 0.0
            %v1521 = vadd.f32 %v1519, %v1520
            %v1522 = vrot.slane %v1521, 4
            %v1523 = vadd.f32 %v1521, %v1522
            %v1524 = vrot.slane %v1523, 2
            %v1525 = vadd.f32 %v1523, %v1524
            %v1526 = vrot.slane %v1525, 1
            %v1527 = vadd.f32 %v1525, %v1526
            %v1528 = vrcp.pop %v1527
            %v1529 = vmul.f32 %v1508, %v1528
            %v1530 = vmul.f32 %v1510, %v1528
            %v1531 = vmul.f32 %v1512, %v1528
            %v1532 = vmul.f32 %v1514, %v1528
            %v1533 = vpack.c.bf16 %v1530, %v1529
            %v1534 = vpack.c.bf16 %v1532, %v1531
            %v1537 = vunpack.c.l.b16 %v1533
            %v1538 = vunpack.c.h.b16 %v1533
            %v1539 = vunpack.c.l.b16 %v1534
            %v1540 = vunpack.c.h.b16 %v1534
            %v1541 = vpack.c.b16 %v1537, %v1537
            %v1542 = vpack.c.b16 %v1538, %v1538
            %v1543 = vpack.c.b16 %v1539, %v1539
            %v1544 = vpack.c.b16 %v1540, %v1540
            %vm1549 = vcmask 257024
            %1550 = vst.msk [vmem:[#allocation4] sm:$0xf] %vm1549, %v1541
            %1551 = vst.msk [vmem:[#allocation4 + $0x4] sm:$0xf] %vm1549, %v1542
            %1552 = vst.msk [vmem:[#allocation4 + $0x8] sm:$0xf] %vm1549, %v1543
            %1553 = vst.msk [vmem:[#allocation4 + $0xc] sm:$0xf] %vm1549, %v1544
            %v1554 = vld [vmem:[#allocation3] sm:$0xff]
            %v1555 = vld [vmem:[#allocation3 + $0x8] sm:$0xff]
            %v1556 = vld [vmem:[#allocation3 + $0x10] sm:$0xff]
            %v1557 = vld [vmem:[#allocation3 + $0x18] sm:$0xff]
            %v1558 = vmul.f32 %v1554, 0.35355338
            %v1559 = vmul.f32 %v1555, 0.35355338
            %v1560 = vmul.f32 %v1556, 0.35355338
            %v1561 = vmul.f32 %v1557, 0.35355338
            %v1562 = vld [vmem:[%s22] sm:$0xff]
            %v1563 = vld [vmem:[%s22 + $0x8] sm:$0xff]
            %v1564 = vld [vmem:[%s22 + $0x10] sm:$0xff]
            %v1565 = vld [vmem:[%s22 + $0x18] sm:$0xff]
            %v1566 = vadd.f32 %v1558, %v1562
            %v1567 = vadd.f32 %v1559, %v1563
            %v1568 = vadd.f32 %v1560, %v1564
            %v1569 = vadd.f32 %v1561, %v1565
            %v1570 = vsel %vm1489, %v1566, -inf
            %v1571 = vsel %vm1489, %v1567, -inf
            %v1572 = vsel %vm1489, %v1568, -inf
            %v1573 = vsel %vm1489, %v1569, -inf
            %v1574 = vmax.f32 %v1570, %v1571
            %v1575 = vmax.f32 %v1572, %v1573
            %v1576 = vmax.f32 %v1574, %v1575
            %v1577 = vrot.slane %v1576, 4
            %v1578 = vmax.f32 %v1576, %v1577
            %v1579 = vrot.slane %v1578, 2
            %v1580 = vmax.f32 %v1578, %v1579
            %v1581 = vrot.slane %v1580, 1
            %v1582 = vmax.f32 %v1580, %v1581
            %v1583 = vsub.f32 %v1566, %v1582
            %v1584 = vsub.f32 %v1567, %v1582
            %v1585 = vsub.f32 %v1568, %v1582
            %v1586 = vsub.f32 %v1569, %v1582
            %v1587 = vmul.f32 %v1583, 1.442695
            %v1588 = vpow.pop %v1587
            %v1589 = vmul.f32 %v1584, 1.442695
            %v1590 = vpow.pop %v1589
            %v1591 = vmul.f32 %v1585, 1.442695
            %v1592 = vpow.pop %v1591
            %v1593 = vmul.f32 %v1586, 1.442695
            %v1594 = vpow.pop %v1593
            %v1595 = vsel %vm1489, %v1588, 0.0
            %v1596 = vsel %vm1489, %v1590, 0.0
            %v1597 = vadd.f32 %v1595, %v1596
            %v1598 = vsel %vm1489, %v1592, 0.0
            %v1599 = vadd.f32 %v1597, %v1598
            %v1600 = vsel %vm1489, %v1594, 0.0
            %v1601 = vadd.f32 %v1599, %v1600
            %v1602 = vrot.slane %v1601, 4
            %v1603 = vadd.f32 %v1601, %v1602
            %v1604 = vrot.slane %v1603, 2
            %v1605 = vadd.f32 %v1603, %v1604
            %v1606 = vrot.slane %v1605, 1
            %v1607 = vadd.f32 %v1605, %v1606
            %v1608 = vrcp.pop %v1607
            %v1609 = vmul.f32 %v1588, %v1608
            %v1610 = vmul.f32 %v1590, %v1608
            %v1611 = vmul.f32 %v1592, %v1608
            %v1612 = vmul.f32 %v1594, %v1608
            %v1613 = vpack.c.bf16 %v1610, %v1609
            %v1614 = vpack.c.bf16 %v1612, %v1611
            %v1617 = vunpack.c.l.b16 %v1613
            %v1618 = vunpack.c.h.b16 %v1613
            %v1619 = vunpack.c.l.b16 %v1614
            %v1620 = vunpack.c.h.b16 %v1614
            %v1621 = vpack.c.b16 %v1617, %v1617
            %v1622 = vpack.c.b16 %v1618, %v1618
            %v1623 = vpack.c.b16 %v1619, %v1619
            %v1624 = vpack.c.b16 %v1620, %v1620
            %1629 = vst.msk [vmem:[#allocation5] sm:$0xf] %vm1549, %v1621
            %1630 = vst.msk [vmem:[#allocation5 + $0x4] sm:$0xf] %vm1549, %v1622
            %1631 = vst.msk [vmem:[#allocation5 + $0x8] sm:$0xf] %vm1549, %v1623
            %1632 = vst.msk [vmem:[#allocation5 + $0xc] sm:$0xf] %vm1549, %v1624
          $region184: #{tpu_custom_call.1} parent=179 // pred_fallthru
            _
          %v1633 = vld [vmem:[%s872] sm:$0xff]
          %v1634 = vpack.c.bf16 %v1633, %v1633
          %v1635 = vld [vmem:[#allocation11] sm:$0xf]
          %v1636 = vld [vmem:[#allocation11 + $0x4] sm:$0xf]
          %v1637 = vld [vmem:[#allocation11 + $0x8] sm:$0xf]
          %v1638 = vld [vmem:[#allocation11 + $0xc] sm:$0xf]
          %v1639 = vld [vmem:[%s4] sm:$0x1]
          %v1641 = vlaneseq
          %v1642 = vshrl.u32 %v1641, 7
          %v1643 = vsub.s32 0, %v1642
          %v1644 = vrot.slane %v1639, %v1643
          %v1650 = vunpack.c.l.b16 %v1635
          %v1651 = vunpack.c.l.b16 %v1636
          %v1652 = vunpack.c.l.b16 %v1637
          %v1653 = vunpack.c.l.b16 %v1638
          %v1654 = vpack.c.b16 %v1651, %v1650
          %v1655 = vpack.c.b16 %v1653, %v1652
          %vm1658 = vcmask 261120
          %v1660 = vsel %vm1658, %v1634, 0
          %1662 = vmatprep.subr.bf16.mxu0 0
          %1663 = vmatpush1.bf16.msra.mxu0 0
          %1664 = vmatprep.subr.bf16.mxu0 0
          %1665 = vmatpush1.bf16.msra.mxu0 0
          %1666 = vmatprep.subr.bf16.mxu0 0
          %1667 = vmatpush1.bf16.msra.mxu0 0
          %1668 = vmatprep.subr.bf16.mxu0 0
          %1669 = vmatpush1.bf16.msra.mxu0 0
          %1670 = vmatprep.subr.bf16.mxu0 0
          %1671 = vmatpush1.bf16.msra.mxu0 0
          %1672 = vmatprep.subr.bf16.mxu0 0
          %1673 = vmatpush1.bf16.msra.mxu0 0
          %1674 = vmatprep.subr.bf16.mxu0 0
          %1675 = vmatpush1.bf16.msra.mxu0 %v1655
          %1676 = vmatprep.subr.bf16.mxu0 0
          %1677 = vmatpush1.bf16.msra.mxu0 %v1654
          %1678 = vmatprep.subr.bf16.mxu0 0
          %1679 = vmatpush2.bf16.msra.mxu0 0
          %1680 = vmatprep.subr.bf16.mxu0 0
          %1681 = vmatpush2.bf16.msra.mxu0 0
          %1682 = vmatprep.subr.bf16.mxu0 0
          %1683 = vmatpush2.bf16.msra.mxu0 0
          %1684 = vmatprep.subr.bf16.mxu0 0
          %1685 = vmatpush2.bf16.msra.mxu0 0
          %1686 = vmatprep.subr.bf16.mxu0 0
          %1687 = vmatpush2.bf16.msra.mxu0 0
          %1688 = vmatprep.subr.bf16.mxu0 0
          %1689 = vmatpush2.bf16.msra.mxu0 0
          %1690 = vmatprep.subr.bf16.mxu0 0
          %1691 = vmatpush2.bf16.msra.mxu0 0
          %1692 = vmatprep.subr.bf16.mxu0 0
          %1693 = vmatpush2.bf16.msra.mxu0 0
          %1694 = vmatprep.mubr.bf16.mxu0 0
          %1695 = vmatmul.mubr.bf16.gmra.mxu0 %v1660
          %v1696 = vpop.f32.mrf.mxu0
          %v1697 = vadd.f32 %v1644, %v1696
          %v1698 = vpop.f32.mrf.mxu0
          %v1699 = vpop.f32.mrf.mxu0
          %v1700 = vpop.f32.mrf.mxu0
          %1701 = vdwg.mxu0
          %v1702 = vmax.f32 %v1697, 0.0
          %v1703 = vpack.c.bf16 %v1702, %v1702
          %v1704 = vld [vmem:[#allocation20] sm:$0xf]
          %v1705 = vld [vmem:[#allocation20 + $0x4] sm:$0xf]
          %v1706 = vld [vmem:[#allocation20 + $0x8] sm:$0xf]
          %v1707 = vld [vmem:[#allocation20 + $0xc] sm:$0xf]
          %v1708 = vld [vmem:[%s14] sm:$0x1]
          %v1710 = vlaneseq
          %v1711 = vshrl.u32 %v1710, 7
          %v1712 = vsub.s32 0, %v1711
          %v1713 = vrot.slane %v1708, %v1712
          %v1719 = vunpack.c.l.b16 %v1704
          %v1720 = vunpack.c.l.b16 %v1705
          %v1721 = vunpack.c.l.b16 %v1706
          %v1722 = vunpack.c.l.b16 %v1707
          %v1723 = vpack.c.b16 %v1720, %v1719
          %v1724 = vpack.c.b16 %v1722, %v1721
          %v1728 = vsel %vm1658, %v1703, 0
          %1730 = vmatprep.subr.bf16.mxu0 0
          %1731 = vmatpush1.bf16.msra.mxu0 0
          %1732 = vmatprep.subr.bf16.mxu0 0
          %1733 = vmatpush1.bf16.msra.mxu0 0
          %1734 = vmatprep.subr.bf16.mxu0 0
          %1735 = vmatpush1.bf16.msra.mxu0 0
          %1736 = vmatprep.subr.bf16.mxu0 0
          %1737 = vmatpush1.bf16.msra.mxu0 0
          %1738 = vmatprep.subr.bf16.mxu0 0
          %1739 = vmatpush1.bf16.msra.mxu0 0
          %1740 = vmatprep.subr.bf16.mxu0 0
          %1741 = vmatpush1.bf16.msra.mxu0 0
          %1742 = vmatprep.subr.bf16.mxu0 0
          %1743 = vmatpush1.bf16.msra.mxu0 %v1724
          %1744 = vmatprep.subr.bf16.mxu0 0
          %1745 = vmatpush1.bf16.msra.mxu0 %v1723
          %1746 = vmatprep.subr.bf16.mxu0 0
          %1747 = vmatpush2.bf16.msra.mxu0 0
          %1748 = vmatprep.subr.bf16.mxu0 0
          %1749 = vmatpush2.bf16.msra.mxu0 0
          %1750 = vmatprep.subr.bf16.mxu0 0
          %1751 = vmatpush2.bf16.msra.mxu0 0
          %1752 = vmatprep.subr.bf16.mxu0 0
          %1753 = vmatpush2.bf16.msra.mxu0 0
          %1754 = vmatprep.subr.bf16.mxu0 0
          %1755 = vmatpush2.bf16.msra.mxu0 0
          %1756 = vmatprep.subr.bf16.mxu0 0
          %1757 = vmatpush2.bf16.msra.mxu0 0
          %1758 = vmatprep.subr.bf16.mxu0 0
          %1759 = vmatpush2.bf16.msra.mxu0 0
          %1760 = vmatprep.subr.bf16.mxu0 0
          %1761 = vmatpush2.bf16.msra.mxu0 0
          %1762 = vmatprep.mubr.bf16.mxu0 0
          %1763 = vmatmul.mubr.bf16.gmra.mxu0 %v1728
          %v1764 = vpop.f32.mrf.mxu0
          %v1765 = vadd.f32 %v1713, %v1764
          %v1766 = vpop.f32.mrf.mxu0
          %v1767 = vpop.f32.mrf.mxu0
          %v1768 = vpop.f32.mrf.mxu0
          %1769 = vdwg.mxu0
          %v1770 = vld [vmem:[#allocation12] sm:$0xf]
          %v1771 = vld [vmem:[#allocation12 + $0x4] sm:$0xf]
          %v1772 = vld [vmem:[#allocation12 + $0x8] sm:$0xf]
          %v1773 = vld [vmem:[#allocation12 + $0xc] sm:$0xf]
          %v1774 = vld [vmem:[%s5] sm:$0x1]
          %v1776 = vlaneseq
          %v1777 = vshrl.u32 %v1776, 7
          %v1778 = vsub.s32 0, %v1777
          %v1779 = vrot.slane %v1774, %v1778
          %v1785 = vunpack.c.l.b16 %v1770
          %v1786 = vunpack.c.l.b16 %v1771
          %v1787 = vunpack.c.l.b16 %v1772
          %v1788 = vunpack.c.l.b16 %v1773
          %v1789 = vpack.c.b16 %v1786, %v1785
          %v1790 = vpack.c.b16 %v1788, %v1787
          %1793 = vmatprep.subr.bf16.mxu0 0
          %1794 = vmatpush1.bf16.msra.mxu0 0
          %1795 = vmatprep.subr.bf16.mxu0 0
          %1796 = vmatpush1.bf16.msra.mxu0 0
          %1797 = vmatprep.subr.bf16.mxu0 0
          %1798 = vmatpush1.bf16.msra.mxu0 0
          %1799 = vmatprep.subr.bf16.mxu0 0
          %1800 = vmatpush1.bf16.msra.mxu0 0
          %1801 = vmatprep.subr.bf16.mxu0 0
          %1802 = vmatpush1.bf16.msra.mxu0 0
          %1803 = vmatprep.subr.bf16.mxu0 0
          %1804 = vmatpush1.bf16.msra.mxu0 0
          %1805 = vmatprep.subr.bf16.mxu0 0
          %1806 = vmatpush1.bf16.msra.mxu0 %v1790
          %1807 = vmatprep.subr.bf16.mxu0 0
          %1808 = vmatpush1.bf16.msra.mxu0 %v1789
          %1809 = vmatprep.subr.bf16.mxu0 0
          %1810 = vmatpush2.bf16.msra.mxu0 0
          %1811 = vmatprep.subr.bf16.mxu0 0
          %1812 = vmatpush2.bf16.msra.mxu0 0
          %1813 = vmatprep.subr.bf16.mxu0 0
          %1814 = vmatpush2.bf16.msra.mxu0 0
          %1815 = vmatprep.subr.bf16.mxu0 0
          %1816 = vmatpush2.bf16.msra.mxu0 0
          %1817 = vmatprep.subr.bf16.mxu0 0
          %1818 = vmatpush2.bf16.msra.mxu0 0
          %1819 = vmatprep.subr.bf16.mxu0 0
          %1820 = vmatpush2.bf16.msra.mxu0 0
          %1821 = vmatprep.subr.bf16.mxu0 0
          %1822 = vmatpush2.bf16.msra.mxu0 0
          %1823 = vmatprep.subr.bf16.mxu0 0
          %1824 = vmatpush2.bf16.msra.mxu0 0
          %1825 = vmatprep.mubr.bf16.mxu0 0
          %1826 = vmatmul.mubr.bf16.gmra.mxu0 %v1660
          %v1827 = vpop.f32.mrf.mxu0
          %v1828 = vadd.f32 %v1779, %v1827
          %v1829 = vpop.f32.mrf.mxu0
          %v1830 = vpop.f32.mrf.mxu0
          %v1831 = vpop.f32.mrf.mxu0
          %1832 = vdwg.mxu0
          %v1833 = vmax.f32 %v1828, 0.0
          %v1834 = vpack.c.bf16 %v1833, %v1833
          %v1835 = vld [vmem:[#allocation5] sm:$0xf]
          %v1836 = vld [vmem:[#allocation5 + $0x4] sm:$0xf]
          %v1837 = vld [vmem:[#allocation5 + $0x8] sm:$0xf]
          %v1838 = vld [vmem:[#allocation5 + $0xc] sm:$0xf]
          %v1843 = vunpack.c.l.b16 %v1835
          %v1844 = vunpack.c.l.b16 %v1836
          %v1845 = vunpack.c.l.b16 %v1837
          %v1846 = vunpack.c.l.b16 %v1838
          %v1847 = vpack.c.b16 %v1844, %v1843
          %v1848 = vpack.c.b16 %v1846, %v1845
          %v1852 = vsel %vm1658, %v1834, 0
          %1854 = vmatprep.subr.bf16.mxu0 0
          %1855 = vmatpush1.bf16.msra.mxu0 0
          %1856 = vmatprep.subr.bf16.mxu0 0
          %1857 = vmatpush1.bf16.msra.mxu0 0
          %1858 = vmatprep.subr.bf16.mxu0 0
          %1859 = vmatpush1.bf16.msra.mxu0 0
          %1860 = vmatprep.subr.bf16.mxu0 0
          %1861 = vmatpush1.bf16.msra.mxu0 0
          %1862 = vmatprep.subr.bf16.mxu0 0
          %1863 = vmatpush1.bf16.msra.mxu0 0
          %1864 = vmatprep.subr.bf16.mxu0 0
          %1865 = vmatpush1.bf16.msra.mxu0 0
          %1866 = vmatprep.subr.bf16.mxu0 0
          %1867 = vmatpush1.bf16.msra.mxu0 %v1848
          %1868 = vmatprep.subr.bf16.mxu0 0
          %1869 = vmatpush1.bf16.msra.mxu0 %v1847
          %1870 = vmatprep.subr.bf16.mxu0 0
          %1871 = vmatpush2.bf16.msra.mxu0 0
          %1872 = vmatprep.subr.bf16.mxu0 0
          %1873 = vmatpush2.bf16.msra.mxu0 0
          %1874 = vmatprep.subr.bf16.mxu0 0
          %1875 = vmatpush2.bf16.msra.mxu0 0
          %1876 = vmatprep.subr.bf16.mxu0 0
          %1877 = vmatpush2.bf16.msra.mxu0 0
          %1878 = vmatprep.subr.bf16.mxu0 0
          %1879 = vmatpush2.bf16.msra.mxu0 0
          %1880 = vmatprep.subr.bf16.mxu0 0
          %1881 = vmatpush2.bf16.msra.mxu0 0
          %1882 = vmatprep.subr.bf16.mxu0 0
          %1883 = vmatpush2.bf16.msra.mxu0 0
          %1884 = vmatprep.subr.bf16.mxu0 0
          %1885 = vmatpush2.bf16.msra.mxu0 0
          %1886 = vmatprep.mubr.bf16.mxu0 0
          %1887 = vmatmul.mubr.bf16.gmra.mxu0 %v1852
          %v1888 = vpop.f32.mrf.mxu0
          %v1889 = vadd.f32 0.0, %v1888
          %v1890 = vpop.f32.mrf.mxu0
          %v1891 = vpop.f32.mrf.mxu0
          %v1892 = vpop.f32.mrf.mxu0
          %1893 = vdwg.mxu0
          %v1894 = vpack.c.bf16 %v1889, %v1889
          %v1895 = vld [vmem:[#allocation21] sm:$0xf]
          %v1896 = vld [vmem:[#allocation21 + $0x4] sm:$0xf]
          %v1897 = vld [vmem:[#allocation21 + $0x8] sm:$0xf]
          %v1898 = vld [vmem:[#allocation21 + $0xc] sm:$0xf]
          %v1903 = vunpack.c.l.b16 %v1895
          %v1904 = vunpack.c.l.b16 %v1896
          %v1905 = vunpack.c.l.b16 %v1897
          %v1906 = vunpack.c.l.b16 %v1898
          %v1907 = vpack.c.b16 %v1904, %v1903
          %v1908 = vpack.c.b16 %v1906, %v1905
          %v1912 = vsel %vm1658, %v1894, 0
          %1914 = vmatprep.subr.bf16.mxu0 0
          %1915 = vmatpush1.bf16.msra.mxu0 0
          %1916 = vmatprep.subr.bf16.mxu0 0
          %1917 = vmatpush1.bf16.msra.mxu0 0
          %1918 = vmatprep.subr.bf16.mxu0 0
          %1919 = vmatpush1.bf16.msra.mxu0 0
          %1920 = vmatprep.subr.bf16.mxu0 0
          %1921 = vmatpush1.bf16.msra.mxu0 0
          %1922 = vmatprep.subr.bf16.mxu0 0
          %1923 = vmatpush1.bf16.msra.mxu0 0
          %1924 = vmatprep.subr.bf16.mxu0 0
          %1925 = vmatpush1.bf16.msra.mxu0 0
          %1926 = vmatprep.subr.bf16.mxu0 0
          %1927 = vmatpush1.bf16.msra.mxu0 %v1908
          %1928 = vmatprep.subr.bf16.mxu0 0
          %1929 = vmatpush1.bf16.msra.mxu0 %v1907
          %1930 = vmatprep.subr.bf16.mxu0 0
          %1931 = vmatpush2.bf16.msra.mxu0 0
          %1932 = vmatprep.subr.bf16.mxu0 0
          %1933 = vmatpush2.bf16.msra.mxu0 0
          %1934 = vmatprep.subr.bf16.mxu0 0
          %1935 = vmatpush2.bf16.msra.mxu0 0
          %1936 = vmatprep.subr.bf16.mxu0 0
          %1937 = vmatpush2.bf16.msra.mxu0 0
          %1938 = vmatprep.subr.bf16.mxu0 0
          %1939 = vmatpush2.bf16.msra.mxu0 0
          %1940 = vmatprep.subr.bf16.mxu0 0
          %1941 = vmatpush2.bf16.msra.mxu0 0
          %1942 = vmatprep.subr.bf16.mxu0 0
          %1943 = vmatpush2.bf16.msra.mxu0 0
          %1944 = vmatprep.subr.bf16.mxu0 0
          %1945 = vmatpush2.bf16.msra.mxu0 0
          %1946 = vmatprep.mubr.bf16.mxu0 0
          %1947 = vmatmul.mubr.bf16.gmra.mxu0 %v1912
          %v1948 = vpop.f32.mrf.mxu0
          %v1949 = vadd.f32 0.0, %v1948
          %v1950 = vpop.f32.mrf.mxu0
          %v1951 = vpop.f32.mrf.mxu0
          %v1952 = vpop.f32.mrf.mxu0
          %1953 = vdwg.mxu0
          %v1954 = vadd.f32 %v1765, %v1949
          %v1955 = vadd.f32 %v1633, %v1954
          %v1956 = vld [vmem:[%s18] sm:$0x1]
          %v1957 = vld [vmem:[%s19] sm:$0x1]
          %v1958 = vsel %vm1658, %v1955, 0.0
          %1959 = vadd.xlane.f32.xlu0 %v1958
          %v1960 = vpop.xlane.xlu0 %1959
          %v1961 = vrcp.pop 32.0
          %v1962 = vmul.f32 %v1960, %v1961
          %v1963 = vsub.f32 %v1955, %v1962
          %v1964 = vmul.f32 %v1963, %v1963
          %v1965 = vsel %vm1658, %v1964, 0.0
          %1966 = vadd.xlane.f32.xlu0 %v1965
          %v1967 = vpop.xlane.xlu0 %1966
          %v1968 = vmul.f32 %v1967, %v1961
          %v1969 = vadd.f32 %v1968, 1e-05
          %v1970 = vrsqrt.pop %v1969
          %v1971 = vmul.f32 %v1963, %v1970
          %v1973 = vlaneseq
          %v1974 = vshrl.u32 %v1973, 7
          %v1975 = vsub.s32 0, %v1974
          %v1976 = vrot.slane %v1956, %v1975
          %v1978 = vmul.f32 %v1971, %v1976
          %v1980 = vlaneseq
          %v1981 = vshrl.u32 %v1980, 7
          %v1982 = vsub.s32 0, %v1981
          %v1983 = vrot.slane %v1957, %v1982
          %v1985 = vadd.f32 %v1978, %v1983
          %1986 = vst.msk [vmem:[%s996] sm:$0xff] %vm1658, %v1985
          %v1987 = vld [vmem:[%s881] sm:$0xff]
          %v1988 = vpack.c.bf16 %v1987, %v1987
          %v1989 = vld [vmem:[#allocation14] sm:$0xf]
          %v1990 = vld [vmem:[#allocation14 + $0x4] sm:$0xf]
          %v1991 = vld [vmem:[#allocation14 + $0x8] sm:$0xf]
          %v1992 = vld [vmem:[#allocation14 + $0xc] sm:$0xf]
          %v1993 = vld [vmem:[%s8] sm:$0x1]
          %v1995 = vlaneseq
          %v1996 = vshrl.u32 %v1995, 7
          %v1997 = vsub.s32 0, %v1996
          %v1998 = vrot.slane %v1993, %v1997
          %v2004 = vunpack.c.l.b16 %v1989
          %v2005 = vunpack.c.l.b16 %v1990
          %v2006 = vunpack.c.l.b16 %v1991
          %v2007 = vunpack.c.l.b16 %v1992
          %v2008 = vpack.c.b16 %v2005, %v2004
          %v2009 = vpack.c.b16 %v2007, %v2006
          %v2013 = vsel %vm1658, %v1988, 0
          %2015 = vmatprep.subr.bf16.mxu0 0
          %2016 = vmatpush1.bf16.msra.mxu0 0
          %2017 = vmatprep.subr.bf16.mxu0 0
          %2018 = vmatpush1.bf16.msra.mxu0 0
          %2019 = vmatprep.subr.bf16.mxu0 0
          %2020 = vmatpush1.bf16.msra.mxu0 0
          %2021 = vmatprep.subr.bf16.mxu0 0
          %2022 = vmatpush1.bf16.msra.mxu0 0
          %2023 = vmatprep.subr.bf16.mxu0 0
          %2024 = vmatpush1.bf16.msra.mxu0 0
          %2025 = vmatprep.subr.bf16.mxu0 0
          %2026 = vmatpush1.bf16.msra.mxu0 0
          %2027 = vmatprep.subr.bf16.mxu0 0
          %2028 = vmatpush1.bf16.msra.mxu0 %v2009
          %2029 = vmatprep.subr.bf16.mxu0 0
          %2030 = vmatpush1.bf16.msra.mxu0 %v2008
          %2031 = vmatprep.subr.bf16.mxu0 0
          %2032 = vmatpush2.bf16.msra.mxu0 0
          %2033 = vmatprep.subr.bf16.mxu0 0
          %2034 = vmatpush2.bf16.msra.mxu0 0
          %2035 = vmatprep.subr.bf16.mxu0 0
          %2036 = vmatpush2.bf16.msra.mxu0 0
          %2037 = vmatprep.subr.bf16.mxu0 0
          %2038 = vmatpush2.bf16.msra.mxu0 0
          %2039 = vmatprep.subr.bf16.mxu0 0
          %2040 = vmatpush2.bf16.msra.mxu0 0
          %2041 = vmatprep.subr.bf16.mxu0 0
          %2042 = vmatpush2.bf16.msra.mxu0 0
          %2043 = vmatprep.subr.bf16.mxu0 0
          %2044 = vmatpush2.bf16.msra.mxu0 0
          %2045 = vmatprep.subr.bf16.mxu0 0
          %2046 = vmatpush2.bf16.msra.mxu0 0
          %2047 = vmatprep.mubr.bf16.mxu0 0
          %2048 = vmatmul.mubr.bf16.gmra.mxu0 %v2013
          %v2049 = vpop.f32.mrf.mxu0
          %v2050 = vadd.f32 %v1998, %v2049
          %v2051 = vpop.f32.mrf.mxu0
          %v2052 = vpop.f32.mrf.mxu0
          %v2053 = vpop.f32.mrf.mxu0
          %2054 = vdwg.mxu0
          %v2055 = vmax.f32 %v2050, 0.0
          %v2056 = vpack.c.bf16 %v2055, %v2055
          %v2057 = vld [vmem:[#allocation23] sm:$0xf]
          %v2058 = vld [vmem:[#allocation23 + $0x4] sm:$0xf]
          %v2059 = vld [vmem:[#allocation23 + $0x8] sm:$0xf]
          %v2060 = vld [vmem:[#allocation23 + $0xc] sm:$0xf]
          %v2061 = vld [vmem:[%s17] sm:$0x1]
          %v2063 = vlaneseq
          %v2064 = vshrl.u32 %v2063, 7
          %v2065 = vsub.s32 0, %v2064
          %v2066 = vrot.slane %v2061, %v2065
          %v2072 = vunpack.c.l.b16 %v2057
          %v2073 = vunpack.c.l.b16 %v2058
          %v2074 = vunpack.c.l.b16 %v2059
          %v2075 = vunpack.c.l.b16 %v2060
          %v2076 = vpack.c.b16 %v2073, %v2072
          %v2077 = vpack.c.b16 %v2075, %v2074
          %v2081 = vsel %vm1658, %v2056, 0
          %2083 = vmatprep.subr.bf16.mxu0 0
          %2084 = vmatpush1.bf16.msra.mxu0 0
          %2085 = vmatprep.subr.bf16.mxu0 0
          %2086 = vmatpush1.bf16.msra.mxu0 0
          %2087 = vmatprep.subr.bf16.mxu0 0
          %2088 = vmatpush1.bf16.msra.mxu0 0
          %2089 = vmatprep.subr.bf16.mxu0 0
          %2090 = vmatpush1.bf16.msra.mxu0 0
          %2091 = vmatprep.subr.bf16.mxu0 0
          %2092 = vmatpush1.bf16.msra.mxu0 0
          %2093 = vmatprep.subr.bf16.mxu0 0
          %2094 = vmatpush1.bf16.msra.mxu0 0
          %2095 = vmatprep.subr.bf16.mxu0 0
          %2096 = vmatpush1.bf16.msra.mxu0 %v2077
          %2097 = vmatprep.subr.bf16.mxu0 0
          %2098 = vmatpush1.bf16.msra.mxu0 %v2076
          %2099 = vmatprep.subr.bf16.mxu0 0
          %2100 = vmatpush2.bf16.msra.mxu0 0
          %2101 = vmatprep.subr.bf16.mxu0 0
          %2102 = vmatpush2.bf16.msra.mxu0 0
          %2103 = vmatprep.subr.bf16.mxu0 0
          %2104 = vmatpush2.bf16.msra.mxu0 0
          %2105 = vmatprep.subr.bf16.mxu0 0
          %2106 = vmatpush2.bf16.msra.mxu0 0
          %2107 = vmatprep.subr.bf16.mxu0 0
          %2108 = vmatpush2.bf16.msra.mxu0 0
          %2109 = vmatprep.subr.bf16.mxu0 0
          %2110 = vmatpush2.bf16.msra.mxu0 0
          %2111 = vmatprep.subr.bf16.mxu0 0
          %2112 = vmatpush2.bf16.msra.mxu0 0
          %2113 = vmatprep.subr.bf16.mxu0 0
          %2114 = vmatpush2.bf16.msra.mxu0 0
          %2115 = vmatprep.mubr.bf16.mxu0 0
          %2116 = vmatmul.mubr.bf16.gmra.mxu0 %v2081
          %v2117 = vpop.f32.mrf.mxu0
          %v2118 = vadd.f32 %v2066, %v2117
          %v2119 = vpop.f32.mrf.mxu0
          %v2120 = vpop.f32.mrf.mxu0
          %v2121 = vpop.f32.mrf.mxu0
          %2122 = vdwg.mxu0
          %v2123 = vld [vmem:[#allocation15] sm:$0xf]
          %v2124 = vld [vmem:[#allocation15 + $0x4] sm:$0xf]
          %v2125 = vld [vmem:[#allocation15 + $0x8] sm:$0xf]
          %v2126 = vld [vmem:[#allocation15 + $0xc] sm:$0xf]
          %v2127 = vld [vmem:[%s9] sm:$0x1]
          %v2129 = vlaneseq
          %v2130 = vshrl.u32 %v2129, 7
          %v2131 = vsub.s32 0, %v2130
          %v2132 = vrot.slane %v2127, %v2131
          %v2138 = vunpack.c.l.b16 %v2123
          %v2139 = vunpack.c.l.b16 %v2124
          %v2140 = vunpack.c.l.b16 %v2125
          %v2141 = vunpack.c.l.b16 %v2126
          %v2142 = vpack.c.b16 %v2139, %v2138
          %v2143 = vpack.c.b16 %v2141, %v2140
          %2146 = vmatprep.subr.bf16.mxu0 0
          %2147 = vmatpush1.bf16.msra.mxu0 0
          %2148 = vmatprep.subr.bf16.mxu0 0
          %2149 = vmatpush1.bf16.msra.mxu0 0
          %2150 = vmatprep.subr.bf16.mxu0 0
          %2151 = vmatpush1.bf16.msra.mxu0 0
          %2152 = vmatprep.subr.bf16.mxu0 0
          %2153 = vmatpush1.bf16.msra.mxu0 0
          %2154 = vmatprep.subr.bf16.mxu0 0
          %2155 = vmatpush1.bf16.msra.mxu0 0
          %2156 = vmatprep.subr.bf16.mxu0 0
          %2157 = vmatpush1.bf16.msra.mxu0 0
          %2158 = vmatprep.subr.bf16.mxu0 0
          %2159 = vmatpush1.bf16.msra.mxu0 %v2143
          %2160 = vmatprep.subr.bf16.mxu0 0
          %2161 = vmatpush1.bf16.msra.mxu0 %v2142
          %2162 = vmatprep.subr.bf16.mxu0 0
          %2163 = vmatpush2.bf16.msra.mxu0 0
          %2164 = vmatprep.subr.bf16.mxu0 0
          %2165 = vmatpush2.bf16.msra.mxu0 0
          %2166 = vmatprep.subr.bf16.mxu0 0
          %2167 = vmatpush2.bf16.msra.mxu0 0
          %2168 = vmatprep.subr.bf16.mxu0 0
          %2169 = vmatpush2.bf16.msra.mxu0 0
          %2170 = vmatprep.subr.bf16.mxu0 0
          %2171 = vmatpush2.bf16.msra.mxu0 0
          %2172 = vmatprep.subr.bf16.mxu0 0
          %2173 = vmatpush2.bf16.msra.mxu0 0
          %2174 = vmatprep.subr.bf16.mxu0 0
          %2175 = vmatpush2.bf16.msra.mxu0 0
          %2176 = vmatprep.subr.bf16.mxu0 0
          %2177 = vmatpush2.bf16.msra.mxu0 0
          %2178 = vmatprep.mubr.bf16.mxu0 0
          %2179 = vmatmul.mubr.bf16.gmra.mxu0 %v2013
          %v2180 = vpop.f32.mrf.mxu0
          %v2181 = vadd.f32 %v2132, %v2180
          %v2182 = vpop.f32.mrf.mxu0
          %v2183 = vpop.f32.mrf.mxu0
          %v2184 = vpop.f32.mrf.mxu0
          %2185 = vdwg.mxu0
          %v2186 = vmax.f32 %v2181, 0.0
          %v2187 = vpack.c.bf16 %v2186, %v2186
          %v2188 = vld [vmem:[#allocation4] sm:$0xf]
          %v2189 = vld [vmem:[#allocation4 + $0x4] sm:$0xf]
          %v2190 = vld [vmem:[#allocation4 + $0x8] sm:$0xf]
          %v2191 = vld [vmem:[#allocation4 + $0xc] sm:$0xf]
          %v2196 = vunpack.c.l.b16 %v2188
          %v2197 = vunpack.c.l.b16 %v2189
          %v2198 = vunpack.c.l.b16 %v2190
          %v2199 = vunpack.c.l.b16 %v2191
          %v2200 = vpack.c.b16 %v2197, %v2196
          %v2201 = vpack.c.b16 %v2199, %v2198
          %v2205 = vsel %vm1658, %v2187, 0
          %2207 = vmatprep.subr.bf16.mxu0 0
          %2208 = vmatpush1.bf16.msra.mxu0 0
          %2209 = vmatprep.subr.bf16.mxu0 0
          %2210 = vmatpush1.bf16.msra.mxu0 0
          %2211 = vmatprep.subr.bf16.mxu0 0
          %2212 = vmatpush1.bf16.msra.mxu0 0
          %2213 = vmatprep.subr.bf16.mxu0 0
          %2214 = vmatpush1.bf16.msra.mxu0 0
          %2215 = vmatprep.subr.bf16.mxu0 0
          %2216 = vmatpush1.bf16.msra.mxu0 0
          %2217 = vmatprep.subr.bf16.mxu0 0
          %2218 = vmatpush1.bf16.msra.mxu0 0
          %2219 = vmatprep.subr.bf16.mxu0 0
          %2220 = vmatpush1.bf16.msra.mxu0 %v2201
          %2221 = vmatprep.subr.bf16.mxu0 0
          %2222 = vmatpush1.bf16.msra.mxu0 %v2200
          %2223 = vmatprep.subr.bf16.mxu0 0
          %2224 = vmatpush2.bf16.msra.mxu0 0
          %2225 = vmatprep.subr.bf16.mxu0 0
          %2226 = vmatpush2.bf16.msra.mxu0 0
          %2227 = vmatprep.subr.bf16.mxu0 0
          %2228 = vmatpush2.bf16.msra.mxu0 0
          %2229 = vmatprep.subr.bf16.mxu0 0
          %2230 = vmatpush2.bf16.msra.mxu0 0
          %2231 = vmatprep.subr.bf16.mxu0 0
          %2232 = vmatpush2.bf16.msra.mxu0 0
          %2233 = vmatprep.subr.bf16.mxu0 0
          %2234 = vmatpush2.bf16.msra.mxu0 0
          %2235 = vmatprep.subr.bf16.mxu0 0
          %2236 = vmatpush2.bf16.msra.mxu0 0
          %2237 = vmatprep.subr.bf16.mxu0 0
          %2238 = vmatpush2.bf16.msra.mxu0 0
          %2239 = vmatprep.mubr.bf16.mxu0 0
          %2240 = vmatmul.mubr.bf16.gmra.mxu0 %v2205
          %v2241 = vpop.f32.mrf.mxu0
          %v2242 = vadd.f32 0.0, %v2241
          %v2243 = vpop.f32.mrf.mxu0
          %v2244 = vpop.f32.mrf.mxu0
          %v2245 = vpop.f32.mrf.mxu0
          %2246 = vdwg.mxu0
          %v2247 = vpack.c.bf16 %v2242, %v2242
          %v2248 = vld [vmem:[#allocation24] sm:$0xf]
          %v2249 = vld [vmem:[#allocation24 + $0x4] sm:$0xf]
          %v2250 = vld [vmem:[#allocation24 + $0x8] sm:$0xf]
          %v2251 = vld [vmem:[#allocation24 + $0xc] sm:$0xf]
          %v2256 = vunpack.c.l.b16 %v2248
          %v2257 = vunpack.c.l.b16 %v2249
          %v2258 = vunpack.c.l.b16 %v2250
          %v2259 = vunpack.c.l.b16 %v2251
          %v2260 = vpack.c.b16 %v2257, %v2256
          %v2261 = vpack.c.b16 %v2259, %v2258
          %v2265 = vsel %vm1658, %v2247, 0
          %2267 = vmatprep.subr.bf16.mxu0 0
          %2268 = vmatpush1.bf16.msra.mxu0 0
          %2269 = vmatprep.subr.bf16.mxu0 0
          %2270 = vmatpush1.bf16.msra.mxu0 0
          %2271 = vmatprep.subr.bf16.mxu0 0
          %2272 = vmatpush1.bf16.msra.mxu0 0
          %2273 = vmatprep.subr.bf16.mxu0 0
          %2274 = vmatpush1.bf16.msra.mxu0 0
          %2275 = vmatprep.subr.bf16.mxu0 0
          %2276 = vmatpush1.bf16.msra.mxu0 0
          %2277 = vmatprep.subr.bf16.mxu0 0
          %2278 = vmatpush1.bf16.msra.mxu0 0
          %2279 = vmatprep.subr.bf16.mxu0 0
          %2280 = vmatpush1.bf16.msra.mxu0 %v2261
          %2281 = vmatprep.subr.bf16.mxu0 0
          %2282 = vmatpush1.bf16.msra.mxu0 %v2260
          %2283 = vmatprep.subr.bf16.mxu0 0
          %2284 = vmatpush2.bf16.msra.mxu0 0
          %2285 = vmatprep.subr.bf16.mxu0 0
          %2286 = vmatpush2.bf16.msra.mxu0 0
          %2287 = vmatprep.subr.bf16.mxu0 0
          %2288 = vmatpush2.bf16.msra.mxu0 0
          %2289 = vmatprep.subr.bf16.mxu0 0
          %2290 = vmatpush2.bf16.msra.mxu0 0
          %2291 = vmatprep.subr.bf16.mxu0 0
          %2292 = vmatpush2.bf16.msra.mxu0 0
          %2293 = vmatprep.subr.bf16.mxu0 0
          %2294 = vmatpush2.bf16.msra.mxu0 0
          %2295 = vmatprep.subr.bf16.mxu0 0
          %2296 = vmatpush2.bf16.msra.mxu0 0
          %2297 = vmatprep.subr.bf16.mxu0 0
          %2298 = vmatpush2.bf16.msra.mxu0 0
          %2299 = vmatprep.mubr.bf16.mxu0 0
          %2300 = vmatmul.mubr.bf16.gmra.mxu0 %v2265
          %v2301 = vpop.f32.mrf.mxu0
          %v2302 = vadd.f32 0.0, %v2301
          %v2303 = vpop.f32.mrf.mxu0
          %v2304 = vpop.f32.mrf.mxu0
          %v2305 = vpop.f32.mrf.mxu0
          %2306 = vdwg.mxu0
          %v2307 = vadd.f32 %v2118, %v2302
          %v2308 = vadd.f32 %v1987, %v2307
          %v2309 = vld [vmem:[#allocation26] sm:$0x1]
          %v2310 = vld [vmem:[#allocation27] sm:$0x1]
          %v2311 = vsel %vm1658, %v2308, 0.0
          %2312 = vadd.xlane.f32.xlu0 %v2311
          %v2313 = vpop.xlane.xlu0 %2312
          %v2314 = vmul.f32 %v2313, %v1961
          %v2315 = vsub.f32 %v2308, %v2314
          %v2316 = vmul.f32 %v2315, %v2315
          %v2317 = vsel %vm1658, %v2316, 0.0
          %2318 = vadd.xlane.f32.xlu0 %v2317
          %v2319 = vpop.xlane.xlu0 %2318
          %v2320 = vmul.f32 %v2319, %v1961
          %v2321 = vadd.f32 %v2320, 1e-05
          %v2322 = vrsqrt.pop %v2321
          %v2323 = vmul.f32 %v2315, %v2322
          %v2325 = vlaneseq
          %v2326 = vshrl.u32 %v2325, 7
          %v2327 = vsub.s32 0, %v2326
          %v2328 = vrot.slane %v2309, %v2327
          %v2330 = vmul.f32 %v2323, %v2328
          %v2332 = vlaneseq
          %v2333 = vshrl.u32 %v2332, 7
          %v2334 = vsub.s32 0, %v2333
          %v2335 = vrot.slane %v2310, %v2334
          %v2337 = vadd.f32 %v2330, %v2335
          %2338 = vst.msk [vmem:[%s1003] sm:$0xff] %vm1658, %v2337
        $region180: #{tpu_custom_call.1} parent=111 // pred_fallthru
          _
        %s2339 = sand.u32 %s582, 1
        %s2340 = scalar_lea.sflag [#allocation8], %s2339
        %s2341 = sand.u32 %s582, 1
        %s2342 = smul.addr %s2341, 8
        %s2343 = scalar_lea.vmem [#allocation29], %s2342
        %s2344 = sand.u32 %s612, 1
        %s2345 = scalar_lea.sflag [#allocation31], %s2344
        %s2346 = sand.u32 %s612, 1
        %s2347 = smul.addr %s2346, 8
        %s2348 = scalar_lea.vmem [#allocation30], %s2347
        // Predicated region
        $region185: #{tpu_custom_call.1} parent=111 // pred_check
          %p2349 = pneg %p592
        $region186: #{tpu_custom_call.1} parent=111 // pred_check_branch
          %2351 = sbr.rel (%p2349) target = $region188
        $region187: #{tpu_custom_call.1} parent=111 // pred_region
          %s2352 = smul.u32 %s61, %s60
          %s2354 = ssub.s32 128, 128
          %2355 = vsyncadd %s2340, %s2354
          %s2356 = sadd.s32 %s2352, %s59
          %s2357 = smul.addr %s2356, 128
          %s2358 = scalar_lea.hbm %s23, %s2357
          %s2360 = sshll.u32 %s2343, 4
          %s2361 = int_to_ptr.vmem [resolvable:$true] %s2360
          %2363 = dma.vmem_to_hbm [thread:$0]  %s2361, 128, %s2358, %s2340
        $region188: #{tpu_custom_call.1} parent=111 // pred_fallthru
          _
        // Predicated region
        $region189: #{tpu_custom_call.1} parent=111 // pred_check
          %p2364 = pneg %p622
        $region190: #{tpu_custom_call.1} parent=111 // pred_check_branch
          %2366 = sbr.rel (%p2364) target = $region192
        $region191: #{tpu_custom_call.1} parent=111 // pred_region
          %s2367 = smul.u32 %s61, %s60
          %s2369 = ssub.s32 128, 128
          %2370 = vsyncadd %s2345, %s2369
          %s2371 = sadd.s32 %s2367, %s59
          %s2372 = smul.addr %s2371, 128
          %s2373 = scalar_lea.hbm %s24, %s2372
          %s2375 = sshll.u32 %s2348, 4
          %s2376 = int_to_ptr.vmem [resolvable:$true] %s2375
          %2378 = dma.vmem_to_hbm [thread:$0]  %s2376, 128, %s2373, %s2345
        $region192: #{tpu_custom_call.1} parent=111 // pred_fallthru
          _
      $region112: #{tpu_custom_call.1} parent=5 // pred_fallthru
        _
      %p2379 = scmp.le.s32.totalorder 2, %s49
      // Predicated region
      $region193: #{tpu_custom_call.1} parent=5 // pred_check
        %p2380 = pneg %p2379
      $region194: #{tpu_custom_call.1} parent=5 // pred_check_branch
        %2382 = sbr.rel (%p2380) target = $region196
      $region195: #{tpu_custom_call.1} parent=5 // pred_region
        %s2383 = ssub.s32 %s49, 2
        // Predicated region
        $region197: #{tpu_custom_call.1} parent=195 // pred_check
          %p2384 = pneg %p598
        $region198: #{tpu_custom_call.1} parent=195 // pred_check_branch
          %2386 = sbr.rel (%p2384) target = $region200
        $region199: #{tpu_custom_call.1} parent=195 // pred_region
          %s2387 = sand.u32 %s583, 1
          %s2388 = scalar_lea.sflag [#allocation8], %s2387
          %s2389 = sand.u32 %s583, 1
          %s2390 = smul.addr %s2389, 8
          %s2391 = scalar_lea.vmem [#allocation29], %s2390
          %2392 = dma.done %s2388, 128
        $region200: #{tpu_custom_call.1} parent=195 // pred_fallthru
          _
        // Predicated region
        $region201: #{tpu_custom_call.1} parent=195 // pred_check
          %p2393 = pneg %p628
        $region202: #{tpu_custom_call.1} parent=195 // pred_check_branch
          %2395 = sbr.rel (%p2393) target = $region204
        $region203: #{tpu_custom_call.1} parent=195 // pred_region
          %s2396 = sand.u32 %s613, 1
          %s2397 = scalar_lea.sflag [#allocation31], %s2396
          %s2398 = sand.u32 %s613, 1
          %s2399 = smul.addr %s2398, 8
          %s2400 = scalar_lea.vmem [#allocation30], %s2399
          %2401 = dma.done %s2397, 128
        $region204: #{tpu_custom_call.1} parent=195 // pred_fallthru
          _
      $region196: #{tpu_custom_call.1} parent=5 // pred_fallthru
        _
    $region6: #{tpu_custom_call.1} parent=1 // loop_footer
      %s53 = sadd.s32 1, %s49
    $region7: #{tpu_custom_call.1} parent=1 // loop_footer_branch
      %48 = sbr.rel target = $region3
    $region8: #{tpu_custom_call.1} parent=1 // loop_exit
      _
    %2402 = vsyncpa [#allocation7], 1
    %s2403 = scalar_lea.sflag [#allocation7], 1
    %2404 = vsyncpa %s2403, 1
    %2405 = vsyncpa [#allocation10], 1
    %s2406 = scalar_lea.sflag [#allocation10], 1
    %2407 = vsyncpa %s2406, 1
    %2408 = vsyncpa [#allocation13], 1
    %2409 = vsyncpa [#allocation16], 1
    %2410 = vsyncpa [#allocation19], 1
    %2411 = vsyncpa [#allocation22], 1
    %2412 = vsyncpa [#allocation25], 1
    %2413 = vsyncpa [#allocation28], 1
    %2414 = vsyncpa [#allocation8], 1
    %s2415 = scalar_lea.sflag [#allocation8], 1
    %2416 = vsyncpa %s2415, 1
    %2417 = vsyncpa [#allocation31], 1
    %s2418 = scalar_lea.sflag [#allocation31], 1
    %2419 = vsyncpa %s2418, 1

</llo_original>
